<compile_context>
chip_gen: v7x
topology: tpu7x:2x2x1
jax: 0.10.0
libtpu: 0.0.40
codegen_flags: <defaults>
</compile_context>

<pallas_src>
import functools

import jax
import jax.numpy as jnp
from jax.experimental import pallas as pl
from jax.experimental.pallas import tpu as pltpu


# --------------------------------------------------------------------------
# In-kernel conv helper (activations in channels-second / time-last layout).
# --------------------------------------------------------------------------
def _conv_mxu(x, w, b, K, mask, act):
    """'same' 1-D conv (stride 1) of x:(Cin, T) as ONE MXU matmul via im2col.

    x:    (Cin, T)       f32
    w:    (Cout, K*Cin)  bf16, tap-major (columns [j*Cin:(j+1)*Cin] hold tap j)
    b:    (Cout, 1)      f32
    mask: (1, T) f32 valid-sequence mask, or None
    """
    Cin, T = x.shape
    pad = K // 2
    if pad:
        z = jnp.zeros((Cin, pad), jnp.float32)
        xp = jnp.concatenate([z, x, z], axis=1)                    # (Cin, T+2p)
    else:
        xp = x
    cols = jnp.concatenate([xp[:, j:j + T] for j in range(K)], axis=0)  # (K*Cin, T)
    y = jnp.dot(w, cols.astype(w.dtype), preferred_element_type=jnp.float32)
    y = y + b
    if act == "relu":
        y = jnp.maximum(y, 0.0)
    elif act == "sigmoid":
        y = jax.nn.sigmoid(y)
    if mask is not None:
        y = y * mask
    return y


# --------------------------------------------------------------------------
# Fused forward kernel: one grid step = one (batch, time-tile).
# --------------------------------------------------------------------------
def _masking_fwd_kernel(*refs, Ks, K_fin, F, T_tile, H, T_true, NB):
    T_ext = T_tile + 2 * H
    F2 = F // 2
    K_max = max(Ks)

    xp_ref, xc_ref, xn_ref = refs[0:3]
    w1_ref, b1_ref = refs[3], refs[4]
    br2 = refs[5:5 + 2 * NB]
    br3 = refs[5 + 2 * NB:5 + 4 * NB]
    (fw1_ref, fb1_ref, fw2_ref, fb2_ref,
     fw3_ref, fb3_ref) = refs[5 + 4 * NB:11 + 4 * NB]
    o_ref = refs[11 + 4 * NB]

    t = pl.program_id(1)

    # Assemble the halo-extended tile in the input's natural (T, F) layout,
    # then pivot once to (F, T_ext) in VMEM so time rides the 128-lane axis.
    prev = xp_ref[0]                                   # (T_tile, F)
    cur = xc_ref[0]                                    # (T_tile, F)
    nxt = xn_ref[0]                                    # (T_tile, F)
    x_tf = jnp.concatenate([prev[T_tile - H:, :], cur, nxt[:H, :]], axis=0)
    x = jnp.transpose(x_tf, (1, 0)).astype(jnp.float32)          # (F, T_ext)

    # Valid-sequence mask: zero every column whose global position lies outside
    # [0, T_true).  Re-applied after each conv so the true sequence boundary
    # behaves exactly like PyTorch's per-layer padding=K//2 zeros, and so the
    # clamped-neighbour halos / padded tail never leak into valid positions.
    g = t * T_tile - H + jax.lax.broadcasted_iota(jnp.int32, (1, T_ext), 1)
    mask = ((g >= 0) & (g < T_true)).astype(jnp.float32)          # (1, T_ext)
    x = x * mask

    # Layer 1: the five branches share the input -> one merged MXU matmul
    # (taps centred / zero-padded to K_max, branches concatenated along Cout).
    h1 = _conv_mxu(x, w1_ref[...], b1_ref[...], K_max, mask, "relu")  # (5F/2, T_ext)

    # Layers 2/3: per-branch matmuls with exact K_i contraction (no block-diag
    # zeros).  Branch outputs are separate arrays, so the 5-way sum is plain
    # VPU adds — no misaligned sublane slices, nothing to fold away.
    s = None
    for i in range(NB):
        hi = h1[i * F2:(i + 1) * F2, :]                            # (F/2, T_ext)
        hi = _conv_mxu(hi, br2[2 * i][...], br2[2 * i + 1][...], Ks[i], mask, "relu")
        hi = _conv_mxu(hi, br3[2 * i][...], br3[2 * i + 1][...], Ks[i], mask, "relu")
        s = hi if s is None else s + hi                            # (F/8, T_ext)

    # Final stack, all on the MXU im2col path.
    s = _conv_mxu(s, fw1_ref[...], fb1_ref[...], K_fin, mask, "relu")     # (F/16, T)
    s = _conv_mxu(s, fw2_ref[...], fb2_ref[...], K_fin, mask, "relu")     # (F/32, T)
    s = _conv_mxu(s, fw3_ref[...], fb3_ref[...], K_fin, None, "sigmoid")  # (1, T)

    # Keep only the centre T_tile columns (halo fringe discarded).
    o_ref[0] = s[:, H:H + T_tile].astype(o_ref.dtype)             # lane-dense store


# --------------------------------------------------------------------------
# Parameter init (PyTorch layout: conv weight (Cout, Cin, K), bias (Cout,)).
# --------------------------------------------------------------------------
def _init_conv(key, Cout, Cin, K):
    kw, kb = jax.random.split(key)
    bound = 1.0 / float(Cin * K) ** 0.5
    w = jax.random.uniform(kw, (Cout, Cin, K), jnp.float32, -bound, bound)
    b = jax.random.uniform(kb, (Cout,), jnp.float32, -bound, bound)
    return w, b


def init_params(key, F, kernel_size, kernel_size_step, final_kernel_size):
    ks = [kernel_size + i * kernel_size_step for i in range(5)]
    keys = jax.random.split(key, 18)
    idx = 0
    chans = [F, F // 2, F // 4, F // 8]
    branches = []
    for i in range(5):
        layers = []
        for j in range(3):
            layers.append(_init_conv(keys[idx], chans[j + 1], chans[j], ks[i]))
            idx += 1
        branches.append(layers)
    fchans = [F // 8, F // 16, F // 32, 1]
    final = []
    for j in range(3):
        final.append(_init_conv(keys[idx], fchans[j + 1], fchans[j], final_kernel_size))
        idx += 1
    return {"branches": branches, "final": final,
            "kernel_sizes": ks, "final_kernel_size": final_kernel_size}


# --------------------------------------------------------------------------
# Host-side weight packing: merge layer 1 across branches, im2col-flatten taps,
# store MXU weight matrices in bf16 (biases stay f32).
# --------------------------------------------------------------------------
def _pad_taps(w, K_max):
    """(Cout, Cin, K) -> (Cout, Cin, K_max), taps centred (K, K_max odd)."""
    Cout, Cin, K = w.shape
    off = (K_max - K) // 2
    wp = jnp.zeros((Cout, Cin, K_max), w.dtype)
    return wp.at[:, :, off:off + K].set(w)


def _to_im2col(w):
    """(Cout, Cin, K) -> (Cout, K*Cin), tap-major along the last axis."""
    Cout, Cin, K = w.shape
    return jnp.transpose(w, (0, 2, 1)).reshape(Cout, K * Cin)


def pack_params(params, compute_dtype=jnp.bfloat16):
    branches = params["branches"]
    Ks = list(params["kernel_sizes"])
    K_fin = params["final_kernel_size"]
    K_max = max(Ks)
    assert all(k % 2 == 1 for k in Ks) and K_fin % 2 == 1, \
        "packed path assumes odd kernels (matches PyTorch padding=K//2 'same')"

    def _wb(w, b):
        return _to_im2col(w).astype(compute_dtype), b.reshape(-1, 1).astype(jnp.float32)

    # Layer 1: shared input -> concatenate along Cout, taps padded to K_max.
    w1 = jnp.concatenate([_pad_taps(br[0][0], K_max) for br in branches], axis=0)
    b1 = jnp.concatenate([br[0][1] for br in branches], axis=0)
    w1, b1 = _wb(w1, b1)

    packed = {
        "w1": w1, "b1": b1,
        "w2": [_wb(*br[1]) for br in branches],     # per-branch, exact K_i
        "w3": [_wb(*br[2]) for br in branches],
        "final": [_wb(w, b) for (w, b) in params["final"]],
        "Ks": Ks, "K_max": K_max, "K_fin": K_fin,
    }
    return packed


# --------------------------------------------------------------------------
# Forward pass: one fused pallas_call, grid = (batch, time tiles).
# --------------------------------------------------------------------------
def _vmem_limit_bytes():
    cap = 64 * 1024 * 1024
    try:
        info = pltpu.get_tpu_info()
        cap = int(getattr(info, "vmem_capacity_bytes", cap))
    except Exception:
        pass
    # ~3/4 of physical per-core VMEM, capped at 100 MiB: ~48 MiB on v7x,
    # ~96 MiB on v5e/v6e.
    return int(min(100 * 1024 * 1024, (cap * 3) // 4))


def masking_model_forward(packed, x, T_tile=None):
    B, T, F = x.shape
    Ks, K_fin, K_max = packed["Ks"], packed["K_fin"], packed["K_max"]
    NB = len(Ks)
    H = 3 * (K_max // 2) + 3 * (K_fin // 2)        # full-stack receptive halo

    if T_tile is None:
        T_tile = 512                                # production default
    assert T_tile % 128 == 0 and T_tile >= 128
    assert H <= T_tile, (H, T_tile)

    NT = pl.cdiv(T, T_tile)
    T_pad = NT * T_tile
    if T_pad != T:
        x = jnp.pad(x, ((0, 0), (0, T_pad - T), (0, 0)))

    weights = [packed["w1"], packed["b1"]]
    for (w, b) in packed["w2"]:
        weights += [w, b]
    for (w, b) in packed["w3"]:
        weights += [w, b]
    for (w, b) in packed["final"]:
        weights += [w, b]

    def _x_spec(index_map):
        return pl.BlockSpec((1, T_tile, F), index_map)

    def _const_spec(a):
        # Full-array block, constant index -> resident in VMEM across the grid.
        return pl.BlockSpec(a.shape, lambda b, t, n=a.ndim: (0,) * n)

    kern = functools.partial(_masking_fwd_kernel, Ks=tuple(Ks), K_fin=K_fin,
                             F=F, T_tile=T_tile, H=H, T_true=T, NB=NB)

    out = pl.pallas_call(
        kern,
        out_shape=jax.ShapeDtypeStruct((B, 1, T_pad), x.dtype),
        grid_spec=pltpu.PrefetchScalarGridSpec(
            num_scalar_prefetch=0,
            grid=(B, NT),
            in_specs=[
                _x_spec(lambda b, t: (b, jnp.maximum(t - 1, 0), 0)),   # left halo src
                _x_spec(lambda b, t: (b, t, 0)),                       # current tile
                _x_spec(lambda b, t: (b, jnp.minimum(t + 1, NT - 1), 0)),  # right halo
            ] + [_const_spec(a) for a in weights],
            out_specs=pl.BlockSpec((1, 1, T_tile), lambda b, t: (b, 0, t)),
        ),
        compiler_params=pltpu.CompilerParams(
            dimension_semantics=("parallel", "parallel"),
            vmem_limit_bytes=_vmem_limit_bytes()),
    )(x, x, x, *weights)
    return out[:, 0, :T]                             # (B, T)


# --------------------------------------------------------------------------
# Pure-JAX f32 reference (mirrors the PyTorch module exactly).
# --------------------------------------------------------------------------
def _conv_ref(x_ncw, w_oiw, b, act):
    K = w_oiw.shape[2]
    y = jax.lax.conv_general_dilated(
        x_ncw, w_oiw, window_strides=(1,), padding=[(K // 2, K // 2)],
        dimension_numbers=("NCW", "OIW", "NCW"))
    y = y + b[None, :, None]
    if act == "relu":
        y = jnp.maximum(y, 0.0)
    elif act == "sigmoid":
        y = jax.nn.sigmoid(y)
    return y


def masking_model_forward_ref(params, x):
    xT = jnp.transpose(x, (0, 2, 1))
    outs = []
    for layers in params["branches"]:
        h = xT
        for (w, b) in layers:
            h = _conv_ref(h, w, b, "relu")
        outs.append(h)
    out = outs[0]
    for o in outs[1:]:
        out = out + o
    for (w, b), act in zip(params["final"], ["relu", "relu", "sigmoid"]):
        out = _conv_ref(out, w, b, act)
    return out[:, 0, :]                              # (B, T)


if __name__ == "__main__":
    # Small shapes consistent with the module: batch=2, seq T=192 (exercises
    # two 128-wide time tiles + a masked ragged tail), feature_dim=32
    # (F//8=4, F//16=2, F//32=1); branch kernels 3,5,7,9,11; final kernel 3.
    B, T, F = 2, 192, 32
    kernel_size, kernel_size_step, final_kernel_size = 3, 2, 3

    key = jax.random.PRNGKey(0)
    k_params, k_x = jax.random.split(key)
    params = init_params(k_params, F, kernel_size, kernel_size_step,
                         final_kernel_size)
    packed = pack_params(params)                     # bf16 MXU weights
    x = jax.random.normal(k_x, (B, T, F), jnp.float32)

    out = jax.block_until_ready(masking_model_forward(packed, x, T_tile=128))
    assert out.shape == (B, T), out.shape

    ref = jax.block_until_ready(masking_model_forward_ref(params, x))
    err = float(jnp.max(jnp.abs(out - ref)))
    # bf16 MXU operands vs f32 reference -> loose-but-safe tolerance.
    assert err < 2e-2, err

    print("KERNEL_OK")
</pallas_src>

<mosaic_0001>
module attributes {stable_mosaic.version = 11 : i64} {
  func.func @_masking_fwd_kernel(%arg0: i32, %arg1: i32, %arg2: memref<1x128x32xf32, #tpu.memory_space<vmem>>, %arg3: memref<1x128x32xf32, #tpu.memory_space<vmem>>, %arg4: memref<1x128x32xf32, #tpu.memory_space<vmem>>, %arg5: memref<80x352xbf16, #tpu.memory_space<vmem>>, %arg6: memref<80x1xf32, #tpu.memory_space<vmem>>, %arg7: memref<8x48xbf16, #tpu.memory_space<vmem>>, %arg8: memref<8x1xf32, #tpu.memory_space<vmem>>, %arg9: memref<8x80xbf16, #tpu.memory_space<vmem>>, %arg10: memref<8x1xf32, #tpu.memory_space<vmem>>, %arg11: memref<8x112xbf16, #tpu.memory_space<vmem>>, %arg12: memref<8x1xf32, #tpu.memory_space<vmem>>, %arg13: memref<8x144xbf16, #tpu.memory_space<vmem>>, %arg14: memref<8x1xf32, #tpu.memory_space<vmem>>, %arg15: memref<8x176xbf16, #tpu.memory_space<vmem>>, %arg16: memref<8x1xf32, #tpu.memory_space<vmem>>, %arg17: memref<4x24xbf16, #tpu.memory_space<vmem>>, %arg18: memref<4x1xf32, #tpu.memory_space<vmem>>, %arg19: memref<4x40xbf16, #tpu.memory_space<vmem>>, %arg20: memref<4x1xf32, #tpu.memory_space<vmem>>, %arg21: memref<4x56xbf16, #tpu.memory_space<vmem>>, %arg22: memref<4x1xf32, #tpu.memory_space<vmem>>, %arg23: memref<4x72xbf16, #tpu.memory_space<vmem>>, %arg24: memref<4x1xf32, #tpu.memory_space<vmem>>, %arg25: memref<4x88xbf16, #tpu.memory_space<vmem>>, %arg26: memref<4x1xf32, #tpu.memory_space<vmem>>, %arg27: memref<2x12xbf16, #tpu.memory_space<vmem>>, %arg28: memref<2x1xf32, #tpu.memory_space<vmem>>, %arg29: memref<1x6xbf16, #tpu.memory_space<vmem>>, %arg30: memref<1x1xf32, #tpu.memory_space<vmem>>, %arg31: memref<1x3xbf16, #tpu.memory_space<vmem>>, %arg32: memref<1x1xf32, #tpu.memory_space<vmem>>, %arg33: memref<1x1x128xf32, #tpu.memory_space<vmem>>) attributes {dimension_semantics = [#tpu.dimension_semantics<parallel>, #tpu.dimension_semantics<parallel>], iteration_bounds = array<i64: 2, 2>, scalar_prefetch = 0 : i64, scratch_operands = 0 : i64, tpu.core_type = #tpu.core_type<tc>, window_params = [{transform_indices = @transform_0, window_bounds = array<i64: 1, 128, 32>}, {transform_indices = @transform_1, window_bounds = array<i64: 1, 128, 32>}, {transform_indices = @transform_2, window_bounds = array<i64: 1, 128, 32>}, {pipeline_mode = #tpu.pipeline_mode<synchronous>, transform_indices = @transform_3, window_bounds = array<i64: 80, 352>}, {pipeline_mode = #tpu.pipeline_mode<synchronous>, transform_indices = @transform_4, window_bounds = array<i64: 80, 1>}, {pipeline_mode = #tpu.pipeline_mode<synchronous>, transform_indices = @transform_5, window_bounds = array<i64: 8, 48>}, {pipeline_mode = #tpu.pipeline_mode<synchronous>, transform_indices = @transform_6, window_bounds = array<i64: 8, 1>}, {pipeline_mode = #tpu.pipeline_mode<synchronous>, transform_indices = @transform_7, window_bounds = array<i64: 8, 80>}, {pipeline_mode = #tpu.pipeline_mode<synchronous>, transform_indices = @transform_8, window_bounds = array<i64: 8, 1>}, {pipeline_mode = #tpu.pipeline_mode<synchronous>, transform_indices = @transform_9, window_bounds = array<i64: 8, 112>}, {pipeline_mode = #tpu.pipeline_mode<synchronous>, transform_indices = @transform_10, window_bounds = array<i64: 8, 1>}, {pipeline_mode = #tpu.pipeline_mode<synchronous>, transform_indices = @transform_11, window_bounds = array<i64: 8, 144>}, {pipeline_mode = #tpu.pipeline_mode<synchronous>, transform_indices = @transform_12, window_bounds = array<i64: 8, 1>}, {pipeline_mode = #tpu.pipeline_mode<synchronous>, transform_indices = @transform_13, window_bounds = array<i64: 8, 176>}, {pipeline_mode = #tpu.pipeline_mode<synchronous>, transform_indices = @transform_14, window_bounds = array<i64: 8, 1>}, {pipeline_mode = #tpu.pipeline_mode<synchronous>, transform_indices = @transform_15, window_bounds = array<i64: 4, 24>}, {pipeline_mode = #tpu.pipeline_mode<synchronous>, transform_indices = @transform_16, window_bounds = array<i64: 4, 1>}, {pipeline_mode = #tpu.pipeline_mode<synchronous>, transform_indices = @transform_17, window_bounds = array<i64: 4, 40>}, {pipeline_mode = #tpu.pipeline_mode<synchronous>, transform_indices = @transform_18, window_bounds = array<i64: 4, 1>}, {pipeline_mode = #tpu.pipeline_mode<synchronous>, transform_indices = @transform_19, window_bounds = array<i64: 4, 56>}, {pipeline_mode = #tpu.pipeline_mode<synchronous>, transform_indices = @transform_20, window_bounds = array<i64: 4, 1>}, {pipeline_mode = #tpu.pipeline_mode<synchronous>, transform_indices = @transform_21, window_bounds = array<i64: 4, 72>}, {pipeline_mode = #tpu.pipeline_mode<synchronous>, transform_indices = @transform_22, window_bounds = array<i64: 4, 1>}, {pipeline_mode = #tpu.pipeline_mode<synchronous>, transform_indices = @transform_23, window_bounds = array<i64: 4, 88>}, {pipeline_mode = #tpu.pipeline_mode<synchronous>, transform_indices = @transform_24, window_bounds = array<i64: 4, 1>}, {pipeline_mode = #tpu.pipeline_mode<synchronous>, transform_indices = @transform_25, window_bounds = array<i64: 2, 12>}, {pipeline_mode = #tpu.pipeline_mode<synchronous>, transform_indices = @transform_26, window_bounds = array<i64: 2, 1>}, {pipeline_mode = #tpu.pipeline_mode<synchronous>, transform_indices = @transform_27, window_bounds = array<i64: 1, 6>}, {pipeline_mode = #tpu.pipeline_mode<synchronous>, transform_indices = @transform_28, window_bounds = array<i64: 1, 1>}, {pipeline_mode = #tpu.pipeline_mode<synchronous>, transform_indices = @transform_29, window_bounds = array<i64: 1, 3>}, {pipeline_mode = #tpu.pipeline_mode<synchronous>, transform_indices = @transform_30, window_bounds = array<i64: 1, 1>}, {transform_indices = @transform_31, window_bounds = array<i64: 1, 1, 128>}]} {
    %c0 = arith.constant 0 : index
    %c0_0 = arith.constant 0 : index
    %c0_1 = arith.constant 0 : index
    %0 = vector.load %arg2[%c0, %c0_0, %c0_1] : memref<1x128x32xf32, #tpu.memory_space<vmem>>, vector<1x128x32xf32>
    %1 = vector.shape_cast %0 : vector<1x128x32xf32> to vector<128x32xf32>
    %c0_2 = arith.constant 0 : index
    %c0_3 = arith.constant 0 : index
    %c0_4 = arith.constant 0 : index
    %2 = vector.load %arg3[%c0_2, %c0_3, %c0_4] : memref<1x128x32xf32, #tpu.memory_space<vmem>>, vector<1x128x32xf32>
    %3 = vector.shape_cast %2 : vector<1x128x32xf32> to vector<128x32xf32>
    %c0_5 = arith.constant 0 : index
    %c0_6 = arith.constant 0 : index
    %c0_7 = arith.constant 0 : index
    %4 = vector.load %arg4[%c0_5, %c0_6, %c0_7] : memref<1x128x32xf32, #tpu.memory_space<vmem>>, vector<1x128x32xf32>
    %5 = vector.shape_cast %4 : vector<1x128x32xf32> to vector<128x32xf32>
    %6 = vector.extract_strided_slice %1 {offsets = [110, 0], sizes = [18, 32], strides = [1, 1]} : vector<128x32xf32> to vector<18x32xf32>
    %7 = vector.extract_strided_slice %5 {offsets = [0, 0], sizes = [18, 32], strides = [1, 1]} : vector<128x32xf32> to vector<18x32xf32>
    %8 = tpu.concatenate %6, %3, %7 in 0 : vector<18x32xf32>, vector<128x32xf32>, vector<18x32xf32> -> vector<164x32xf32>
    %9 = tpu.transpose %8, [1, 0] : vector<164x32xf32> -> vector<32x164xf32>
    %c128_i32 = arith.constant 128 : i32
    %10 = arith.muli %arg1, %c128_i32 : i32
    %c18_i32 = arith.constant 18 : i32
    %11 = arith.subi %10, %c18_i32 : i32
    %12 = tpu.iota {dimensions = array<i32: 1>} : vector<1x164xi32>
    %13 = vector.broadcast %11 : i32 to vector<1x164xi32>
    %14 = arith.addi %13, %12 : vector<1x164xi32>
    %c0_i32 = arith.constant 0 : i32
    %15 = vector.broadcast %c0_i32 : i32 to vector<1x164xi32>
    %16 = arith.cmpi sge, %14, %15 : vector<1x164xi32>
    %c192_i32 = arith.constant 192 : i32
    %17 = vector.broadcast %c192_i32 : i32 to vector<1x164xi32>
    %18 = arith.cmpi slt, %14, %17 : vector<1x164xi32>
    %19 = arith.andi %16, %18 : vector<1x164xi1>
    %20 = arith.extui %19 : vector<1x164xi1> to vector<1x164xi32>
    %21 = arith.sitofp %20 : vector<1x164xi32> to vector<1x164xf32>
    %22 = vector.broadcast %21 : vector<1x164xf32> to vector<32x164xf32>
    %23 = arith.mulf %9, %22 : vector<32x164xf32>
    %c0_8 = arith.constant 0 : index
    %c0_9 = arith.constant 0 : index
    %24 = vector.load %arg5[%c0_8, %c0_9] : memref<80x352xbf16, #tpu.memory_space<vmem>>, vector<80x352xbf16>
    %c0_10 = arith.constant 0 : index
    %c0_11 = arith.constant 0 : index
    %25 = vector.load %arg6[%c0_10, %c0_11] : memref<80x1xf32, #tpu.memory_space<vmem>>, vector<80x1xf32>
    %cst = arith.constant 0.000000e+00 : f32
    %26 = vector.broadcast %cst : f32 to vector<32x5xf32>
    %27 = tpu.concatenate %26, %23, %26 in 1 : vector<32x5xf32>, vector<32x164xf32>, vector<32x5xf32> -> vector<32x174xf32>
    %28 = vector.extract_strided_slice %27 {offsets = [0, 0], sizes = [32, 164], strides = [1, 1]} : vector<32x174xf32> to vector<32x164xf32>
    %29 = vector.extract_strided_slice %27 {offsets = [0, 1], sizes = [32, 164], strides = [1, 1]} : vector<32x174xf32> to vector<32x164xf32>
    %30 = vector.extract_strided_slice %27 {offsets = [0, 2], sizes = [32, 164], strides = [1, 1]} : vector<32x174xf32> to vector<32x164xf32>
    %31 = vector.extract_strided_slice %27 {offsets = [0, 3], sizes = [32, 164], strides = [1, 1]} : vector<32x174xf32> to vector<32x164xf32>
    %32 = vector.extract_strided_slice %27 {offsets = [0, 4], sizes = [32, 164], strides = [1, 1]} : vector<32x174xf32> to vector<32x164xf32>
    %33 = vector.extract_strided_slice %27 {offsets = [0, 5], sizes = [32, 164], strides = [1, 1]} : vector<32x174xf32> to vector<32x164xf32>
    %34 = vector.extract_strided_slice %27 {offsets = [0, 6], sizes = [32, 164], strides = [1, 1]} : vector<32x174xf32> to vector<32x164xf32>
    %35 = vector.extract_strided_slice %27 {offsets = [0, 7], sizes = [32, 164], strides = [1, 1]} : vector<32x174xf32> to vector<32x164xf32>
    %36 = vector.extract_strided_slice %27 {offsets = [0, 8], sizes = [32, 164], strides = [1, 1]} : vector<32x174xf32> to vector<32x164xf32>
    %37 = vector.extract_strided_slice %27 {offsets = [0, 9], sizes = [32, 164], strides = [1, 1]} : vector<32x174xf32> to vector<32x164xf32>
    %38 = vector.extract_strided_slice %27 {offsets = [0, 10], sizes = [32, 164], strides = [1, 1]} : vector<32x174xf32> to vector<32x164xf32>
    %39 = tpu.concatenate %28, %29, %30, %31, %32, %33, %34, %35, %36, %37, %38 in 0 : vector<32x164xf32>, vector<32x164xf32>, vector<32x164xf32>, vector<32x164xf32>, vector<32x164xf32>, vector<32x164xf32>, vector<32x164xf32>, vector<32x164xf32>, vector<32x164xf32>, vector<32x164xf32>, vector<32x164xf32> -> vector<352x164xf32>
    %40 = arith.truncf %39 : vector<352x164xf32> to vector<352x164xbf16>
    %cst_12 = arith.constant dense<0.000000e+00> : vector<80x164xf32>
    %41 = tpu.matmul %24, %40, %cst_12 {dimension_numbers = #tpu.dot_dimension_numbers<[1], [0], [0], [1], [0, 0, 1, 1], [], []>} : vector<80x352xbf16>, vector<352x164xbf16>, vector<80x164xf32> -> vector<80x164xf32>
    %42 = vector.broadcast %25 : vector<80x1xf32> to vector<80x164xf32>
    %43 = arith.addf %41, %42 : vector<80x164xf32>
    %cst_13 = arith.constant 0.000000e+00 : f32
    %44 = vector.broadcast %cst_13 : f32 to vector<80x164xf32>
    %45 = arith.maximumf %43, %44 : vector<80x164xf32>
    %46 = vector.broadcast %21 : vector<1x164xf32> to vector<80x164xf32>
    %47 = arith.mulf %45, %46 : vector<80x164xf32>
    %48 = vector.extract_strided_slice %47 {offsets = [0, 0], sizes = [16, 164], strides = [1, 1]} : vector<80x164xf32> to vector<16x164xf32>
    %c0_14 = arith.constant 0 : index
    %c0_15 = arith.constant 0 : index
    %49 = vector.load %arg7[%c0_14, %c0_15] : memref<8x48xbf16, #tpu.memory_space<vmem>>, vector<8x48xbf16>
    %c0_16 = arith.constant 0 : index
    %c0_17 = arith.constant 0 : index
    %50 = vector.load %arg8[%c0_16, %c0_17] : memref<8x1xf32, #tpu.memory_space<vmem>>, vector<8x1xf32>
    %cst_18 = arith.constant 0.000000e+00 : f32
    %51 = vector.broadcast %cst_18 : f32 to vector<16x1xf32>
    %52 = tpu.concatenate %51, %48, %51 in 1 : vector<16x1xf32>, vector<16x164xf32>, vector<16x1xf32> -> vector<16x166xf32>
    %53 = vector.extract_strided_slice %52 {offsets = [0, 0], sizes = [16, 164], strides = [1, 1]} : vector<16x166xf32> to vector<16x164xf32>
    %54 = vector.extract_strided_slice %52 {offsets = [0, 1], sizes = [16, 164], strides = [1, 1]} : vector<16x166xf32> to vector<16x164xf32>
    %55 = vector.extract_strided_slice %52 {offsets = [0, 2], sizes = [16, 164], strides = [1, 1]} : vector<16x166xf32> to vector<16x164xf32>
    %56 = tpu.concatenate %53, %54, %55 in 0 : vector<16x164xf32>, vector<16x164xf32>, vector<16x164xf32> -> vector<48x164xf32>
    %57 = arith.truncf %56 : vector<48x164xf32> to vector<48x164xbf16>
    %cst_19 = arith.constant dense<0.000000e+00> : vector<8x164xf32>
    %58 = tpu.matmul %49, %57, %cst_19 {dimension_numbers = #tpu.dot_dimension_numbers<[1], [0], [0], [1], [0, 0, 1, 1], [], []>} : vector<8x48xbf16>, vector<48x164xbf16>, vector<8x164xf32> -> vector<8x164xf32>
    %59 = vector.broadcast %50 : vector<8x1xf32> to vector<8x164xf32>
    %60 = arith.addf %58, %59 : vector<8x164xf32>
    %cst_20 = arith.constant 0.000000e+00 : f32
    %61 = vector.broadcast %cst_20 : f32 to vector<8x164xf32>
    %62 = arith.maximumf %60, %61 : vector<8x164xf32>
    %63 = vector.broadcast %21 : vector<1x164xf32> to vector<8x164xf32>
    %64 = arith.mulf %62, %63 : vector<8x164xf32>
    %c0_21 = arith.constant 0 : index
    %c0_22 = arith.constant 0 : index
    %65 = vector.load %arg17[%c0_21, %c0_22] : memref<4x24xbf16, #tpu.memory_space<vmem>>, vector<4x24xbf16>
    %c0_23 = arith.constant 0 : index
    %c0_24 = arith.constant 0 : index
    %66 = vector.load %arg18[%c0_23, %c0_24] : memref<4x1xf32, #tpu.memory_space<vmem>>, vector<4x1xf32>
    %cst_25 = arith.constant 0.000000e+00 : f32
    %67 = vector.broadcast %cst_25 : f32 to vector<8x1xf32>
    %68 = tpu.concatenate %67, %64, %67 in 1 : vector<8x1xf32>, vector<8x164xf32>, vector<8x1xf32> -> vector<8x166xf32>
    %69 = vector.extract_strided_slice %68 {offsets = [0, 0], sizes = [8, 164], strides = [1, 1]} : vector<8x166xf32> to vector<8x164xf32>
    %70 = vector.extract_strided_slice %68 {offsets = [0, 1], sizes = [8, 164], strides = [1, 1]} : vector<8x166xf32> to vector<8x164xf32>
    %71 = vector.extract_strided_slice %68 {offsets = [0, 2], sizes = [8, 164], strides = [1, 1]} : vector<8x166xf32> to vector<8x164xf32>
    %72 = tpu.concatenate %69, %70, %71 in 0 : vector<8x164xf32>, vector<8x164xf32>, vector<8x164xf32> -> vector<24x164xf32>
    %73 = arith.truncf %72 : vector<24x164xf32> to vector<24x164xbf16>
    %cst_26 = arith.constant dense<0.000000e+00> : vector<4x164xf32>
    %74 = tpu.matmul %65, %73, %cst_26 {dimension_numbers = #tpu.dot_dimension_numbers<[1], [0], [0], [1], [0, 0, 1, 1], [], []>} : vector<4x24xbf16>, vector<24x164xbf16>, vector<4x164xf32> -> vector<4x164xf32>
    %75 = vector.broadcast %66 : vector<4x1xf32> to vector<4x164xf32>
    %76 = arith.addf %74, %75 : vector<4x164xf32>
    %cst_27 = arith.constant 0.000000e+00 : f32
    %77 = vector.broadcast %cst_27 : f32 to vector<4x164xf32>
    %78 = arith.maximumf %76, %77 : vector<4x164xf32>
    %79 = vector.broadcast %21 : vector<1x164xf32> to vector<4x164xf32>
    %80 = arith.mulf %78, %79 : vector<4x164xf32>
    %81 = vector.extract_strided_slice %47 {offsets = [16, 0], sizes = [16, 164], strides = [1, 1]} : vector<80x164xf32> to vector<16x164xf32>
    %c0_28 = arith.constant 0 : index
    %c0_29 = arith.constant 0 : index
    %82 = vector.load %arg9[%c0_28, %c0_29] : memref<8x80xbf16, #tpu.memory_space<vmem>>, vector<8x80xbf16>
    %c0_30 = arith.constant 0 : index
    %c0_31 = arith.constant 0 : index
    %83 = vector.load %arg10[%c0_30, %c0_31] : memref<8x1xf32, #tpu.memory_space<vmem>>, vector<8x1xf32>
    %cst_32 = arith.constant 0.000000e+00 : f32
    %84 = vector.broadcast %cst_32 : f32 to vector<16x2xf32>
    %85 = tpu.concatenate %84, %81, %84 in 1 : vector<16x2xf32>, vector<16x164xf32>, vector<16x2xf32> -> vector<16x168xf32>
    %86 = vector.extract_strided_slice %85 {offsets = [0, 0], sizes = [16, 164], strides = [1, 1]} : vector<16x168xf32> to vector<16x164xf32>
    %87 = vector.extract_strided_slice %85 {offsets = [0, 1], sizes = [16, 164], strides = [1, 1]} : vector<16x168xf32> to vector<16x164xf32>
    %88 = vector.extract_strided_slice %85 {offsets = [0, 2], sizes = [16, 164], strides = [1, 1]} : vector<16x168xf32> to vector<16x164xf32>
    %89 = vector.extract_strided_slice %85 {offsets = [0, 3], sizes = [16, 164], strides = [1, 1]} : vector<16x168xf32> to vector<16x164xf32>
    %90 = vector.extract_strided_slice %85 {offsets = [0, 4], sizes = [16, 164], strides = [1, 1]} : vector<16x168xf32> to vector<16x164xf32>
    %91 = tpu.concatenate %86, %87, %88, %89, %90 in 0 : vector<16x164xf32>, vector<16x164xf32>, vector<16x164xf32>, vector<16x164xf32>, vector<16x164xf32> -> vector<80x164xf32>
    %92 = arith.truncf %91 : vector<80x164xf32> to vector<80x164xbf16>
    %cst_33 = arith.constant dense<0.000000e+00> : vector<8x164xf32>
    %93 = tpu.matmul %82, %92, %cst_33 {dimension_numbers = #tpu.dot_dimension_numbers<[1], [0], [0], [1], [0, 0, 1, 1], [], []>} : vector<8x80xbf16>, vector<80x164xbf16>, vector<8x164xf32> -> vector<8x164xf32>
    %94 = vector.broadcast %83 : vector<8x1xf32> to vector<8x164xf32>
    %95 = arith.addf %93, %94 : vector<8x164xf32>
    %cst_34 = arith.constant 0.000000e+00 : f32
    %96 = vector.broadcast %cst_34 : f32 to vector<8x164xf32>
    %97 = arith.maximumf %95, %96 : vector<8x164xf32>
    %98 = vector.broadcast %21 : vector<1x164xf32> to vector<8x164xf32>
    %99 = arith.mulf %97, %98 : vector<8x164xf32>
    %c0_35 = arith.constant 0 : index
    %c0_36 = arith.constant 0 : index
    %100 = vector.load %arg19[%c0_35, %c0_36] : memref<4x40xbf16, #tpu.memory_space<vmem>>, vector<4x40xbf16>
    %c0_37 = arith.constant 0 : index
    %c0_38 = arith.constant 0 : index
    %101 = vector.load %arg20[%c0_37, %c0_38] : memref<4x1xf32, #tpu.memory_space<vmem>>, vector<4x1xf32>
    %cst_39 = arith.constant 0.000000e+00 : f32
    %102 = vector.broadcast %cst_39 : f32 to vector<8x2xf32>
    %103 = tpu.concatenate %102, %99, %102 in 1 : vector<8x2xf32>, vector<8x164xf32>, vector<8x2xf32> -> vector<8x168xf32>
    %104 = vector.extract_strided_slice %103 {offsets = [0, 0], sizes = [8, 164], strides = [1, 1]} : vector<8x168xf32> to vector<8x164xf32>
    %105 = vector.extract_strided_slice %103 {offsets = [0, 1], sizes = [8, 164], strides = [1, 1]} : vector<8x168xf32> to vector<8x164xf32>
    %106 = vector.extract_strided_slice %103 {offsets = [0, 2], sizes = [8, 164], strides = [1, 1]} : vector<8x168xf32> to vector<8x164xf32>
    %107 = vector.extract_strided_slice %103 {offsets = [0, 3], sizes = [8, 164], strides = [1, 1]} : vector<8x168xf32> to vector<8x164xf32>
    %108 = vector.extract_strided_slice %103 {offsets = [0, 4], sizes = [8, 164], strides = [1, 1]} : vector<8x168xf32> to vector<8x164xf32>
    %109 = tpu.concatenate %104, %105, %106, %107, %108 in 0 : vector<8x164xf32>, vector<8x164xf32>, vector<8x164xf32>, vector<8x164xf32>, vector<8x164xf32> -> vector<40x164xf32>
    %110 = arith.truncf %109 : vector<40x164xf32> to vector<40x164xbf16>
    %cst_40 = arith.constant dense<0.000000e+00> : vector<4x164xf32>
    %111 = tpu.matmul %100, %110, %cst_40 {dimension_numbers = #tpu.dot_dimension_numbers<[1], [0], [0], [1], [0, 0, 1, 1], [], []>} : vector<4x40xbf16>, vector<40x164xbf16>, vector<4x164xf32> -> vector<4x164xf32>
    %112 = vector.broadcast %101 : vector<4x1xf32> to vector<4x164xf32>
    %113 = arith.addf %111, %112 : vector<4x164xf32>
    %cst_41 = arith.constant 0.000000e+00 : f32
    %114 = vector.broadcast %cst_41 : f32 to vector<4x164xf32>
    %115 = arith.maximumf %113, %114 : vector<4x164xf32>
    %116 = vector.broadcast %21 : vector<1x164xf32> to vector<4x164xf32>
    %117 = arith.mulf %115, %116 : vector<4x164xf32>
    %118 = arith.addf %80, %117 : vector<4x164xf32>
    %119 = vector.extract_strided_slice %47 {offsets = [32, 0], sizes = [16, 164], strides = [1, 1]} : vector<80x164xf32> to vector<16x164xf32>
    %c0_42 = arith.constant 0 : index
    %c0_43 = arith.constant 0 : index
    %120 = vector.load %arg11[%c0_42, %c0_43] : memref<8x112xbf16, #tpu.memory_space<vmem>>, vector<8x112xbf16>
    %c0_44 = arith.constant 0 : index
    %c0_45 = arith.constant 0 : index
    %121 = vector.load %arg12[%c0_44, %c0_45] : memref<8x1xf32, #tpu.memory_space<vmem>>, vector<8x1xf32>
    %cst_46 = arith.constant 0.000000e+00 : f32
    %122 = vector.broadcast %cst_46 : f32 to vector<16x3xf32>
    %123 = tpu.concatenate %122, %119, %122 in 1 : vector<16x3xf32>, vector<16x164xf32>, vector<16x3xf32> -> vector<16x170xf32>
    %124 = vector.extract_strided_slice %123 {offsets = [0, 0], sizes = [16, 164], strides = [1, 1]} : vector<16x170xf32> to vector<16x164xf32>
    %125 = vector.extract_strided_slice %123 {offsets = [0, 1], sizes = [16, 164], strides = [1, 1]} : vector<16x170xf32> to vector<16x164xf32>
    %126 = vector.extract_strided_slice %123 {offsets = [0, 2], sizes = [16, 164], strides = [1, 1]} : vector<16x170xf32> to vector<16x164xf32>
    %127 = vector.extract_strided_slice %123 {offsets = [0, 3], sizes = [16, 164], strides = [1, 1]} : vector<16x170xf32> to vector<16x164xf32>
    %128 = vector.extract_strided_slice %123 {offsets = [0, 4], sizes = [16, 164], strides = [1, 1]} : vector<16x170xf32> to vector<16x164xf32>
    %129 = vector.extract_strided_slice %123 {offsets = [0, 5], sizes = [16, 164], strides = [1, 1]} : vector<16x170xf32> to vector<16x164xf32>
    %130 = vector.extract_strided_slice %123 {offsets = [0, 6], sizes = [16, 164], strides = [1, 1]} : vector<16x170xf32> to vector<16x164xf32>
    %131 = tpu.concatenate %124, %125, %126, %127, %128, %129, %130 in 0 : vector<16x164xf32>, vector<16x164xf32>, vector<16x164xf32>, vector<16x164xf32>, vector<16x164xf32>, vector<16x164xf32>, vector<16x164xf32> -> vector<112x164xf32>
    %132 = arith.truncf %131 : vector<112x164xf32> to vector<112x164xbf16>
    %cst_47 = arith.constant dense<0.000000e+00> : vector<8x164xf32>
    %133 = tpu.matmul %120, %132, %cst_47 {dimension_numbers = #tpu.dot_dimension_numbers<[1], [0], [0], [1], [0, 0, 1, 1], [], []>} : vector<8x112xbf16>, vector<112x164xbf16>, vector<8x164xf32> -> vector<8x164xf32>
    %134 = vector.broadcast %121 : vector<8x1xf32> to vector<8x164xf32>
    %135 = arith.addf %133, %134 : vector<8x164xf32>
    %cst_48 = arith.constant 0.000000e+00 : f32
    %136 = vector.broadcast %cst_48 : f32 to vector<8x164xf32>
    %137 = arith.maximumf %135, %136 : vector<8x164xf32>
    %138 = vector.broadcast %21 : vector<1x164xf32> to vector<8x164xf32>
    %139 = arith.mulf %137, %138 : vector<8x164xf32>
    %c0_49 = arith.constant 0 : index
    %c0_50 = arith.constant 0 : index
    %140 = vector.load %arg21[%c0_49, %c0_50] : memref<4x56xbf16, #tpu.memory_space<vmem>>, vector<4x56xbf16>
    %c0_51 = arith.constant 0 : index
    %c0_52 = arith.constant 0 : index
    %141 = vector.load %arg22[%c0_51, %c0_52] : memref<4x1xf32, #tpu.memory_space<vmem>>, vector<4x1xf32>
    %cst_53 = arith.constant 0.000000e+00 : f32
    %142 = vector.broadcast %cst_53 : f32 to vector<8x3xf32>
    %143 = tpu.concatenate %142, %139, %142 in 1 : vector<8x3xf32>, vector<8x164xf32>, vector<8x3xf32> -> vector<8x170xf32>
    %144 = vector.extract_strided_slice %143 {offsets = [0, 0], sizes = [8, 164], strides = [1, 1]} : vector<8x170xf32> to vector<8x164xf32>
    %145 = vector.extract_strided_slice %143 {offsets = [0, 1], sizes = [8, 164], strides = [1, 1]} : vector<8x170xf32> to vector<8x164xf32>
    %146 = vector.extract_strided_slice %143 {offsets = [0, 2], sizes = [8, 164], strides = [1, 1]} : vector<8x170xf32> to vector<8x164xf32>
    %147 = vector.extract_strided_slice %143 {offsets = [0, 3], sizes = [8, 164], strides = [1, 1]} : vector<8x170xf32> to vector<8x164xf32>
    %148 = vector.extract_strided_slice %143 {offsets = [0, 4], sizes = [8, 164], strides = [1, 1]} : vector<8x170xf32> to vector<8x164xf32>
    %149 = vector.extract_strided_slice %143 {offsets = [0, 5], sizes = [8, 164], strides = [1, 1]} : vector<8x170xf32> to vector<8x164xf32>
    %150 = vector.extract_strided_slice %143 {offsets = [0, 6], sizes = [8, 164], strides = [1, 1]} : vector<8x170xf32> to vector<8x164xf32>
    %151 = tpu.concatenate %144, %145, %146, %147, %148, %149, %150 in 0 : vector<8x164xf32>, vector<8x164xf32>, vector<8x164xf32>, vector<8x164xf32>, vector<8x164xf32>, vector<8x164xf32>, vector<8x164xf32> -> vector<56x164xf32>
    %152 = arith.truncf %151 : vector<56x164xf32> to vector<56x164xbf16>
    %cst_54 = arith.constant dense<0.000000e+00> : vector<4x164xf32>
    %153 = tpu.matmul %140, %152, %cst_54 {dimension_numbers = #tpu.dot_dimension_numbers<[1], [0], [0], [1], [0, 0, 1, 1], [], []>} : vector<4x56xbf16>, vector<56x164xbf16>, vector<4x164xf32> -> vector<4x164xf32>
    %154 = vector.broadcast %141 : vector<4x1xf32> to vector<4x164xf32>
    %155 = arith.addf %153, %154 : vector<4x164xf32>
    %cst_55 = arith.constant 0.000000e+00 : f32
    %156 = vector.broadcast %cst_55 : f32 to vector<4x164xf32>
    %157 = arith.maximumf %155, %156 : vector<4x164xf32>
    %158 = vector.broadcast %21 : vector<1x164xf32> to vector<4x164xf32>
    %159 = arith.mulf %157, %158 : vector<4x164xf32>
    %160 = arith.addf %118, %159 : vector<4x164xf32>
    %161 = vector.extract_strided_slice %47 {offsets = [48, 0], sizes = [16, 164], strides = [1, 1]} : vector<80x164xf32> to vector<16x164xf32>
    %c0_56 = arith.constant 0 : index
    %c0_57 = arith.constant 0 : index
    %162 = vector.load %arg13[%c0_56, %c0_57] : memref<8x144xbf16, #tpu.memory_space<vmem>>, vector<8x144xbf16>
    %c0_58 = arith.constant 0 : index
    %c0_59 = arith.constant 0 : index
    %163 = vector.load %arg14[%c0_58, %c0_59] : memref<8x1xf32, #tpu.memory_space<vmem>>, vector<8x1xf32>
    %cst_60 = arith.constant 0.000000e+00 : f32
    %164 = vector.broadcast %cst_60 : f32 to vector<16x4xf32>
    %165 = tpu.concatenate %164, %161, %164 in 1 : vector<16x4xf32>, vector<16x164xf32>, vector<16x4xf32> -> vector<16x172xf32>
    %166 = vector.extract_strided_slice %165 {offsets = [0, 0], sizes = [16, 164], strides = [1, 1]} : vector<16x172xf32> to vector<16x164xf32>
    %167 = vector.extract_strided_slice %165 {offsets = [0, 1], sizes = [16, 164], strides = [1, 1]} : vector<16x172xf32> to vector<16x164xf32>
    %168 = vector.extract_strided_slice %165 {offsets = [0, 2], sizes = [16, 164], strides = [1, 1]} : vector<16x172xf32> to vector<16x164xf32>
    %169 = vector.extract_strided_slice %165 {offsets = [0, 3], sizes = [16, 164], strides = [1, 1]} : vector<16x172xf32> to vector<16x164xf32>
    %170 = vector.extract_strided_slice %165 {offsets = [0, 4], sizes = [16, 164], strides = [1, 1]} : vector<16x172xf32> to vector<16x164xf32>
    %171 = vector.extract_strided_slice %165 {offsets = [0, 5], sizes = [16, 164], strides = [1, 1]} : vector<16x172xf32> to vector<16x164xf32>
    %172 = vector.extract_strided_slice %165 {offsets = [0, 6], sizes = [16, 164], strides = [1, 1]} : vector<16x172xf32> to vector<16x164xf32>
    %173 = vector.extract_strided_slice %165 {offsets = [0, 7], sizes = [16, 164], strides = [1, 1]} : vector<16x172xf32> to vector<16x164xf32>
    %174 = vector.extract_strided_slice %165 {offsets = [0, 8], sizes = [16, 164], strides = [1, 1]} : vector<16x172xf32> to vector<16x164xf32>
    %175 = tpu.concatenate %166, %167, %168, %169, %170, %171, %172, %173, %174 in 0 : vector<16x164xf32>, vector<16x164xf32>, vector<16x164xf32>, vector<16x164xf32>, vector<16x164xf32>, vector<16x164xf32>, vector<16x164xf32>, vector<16x164xf32>, vector<16x164xf32> -> vector<144x164xf32>
    %176 = arith.truncf %175 : vector<144x164xf32> to vector<144x164xbf16>
    %cst_61 = arith.constant dense<0.000000e+00> : vector<8x164xf32>
    %177 = tpu.matmul %162, %176, %cst_61 {dimension_numbers = #tpu.dot_dimension_numbers<[1], [0], [0], [1], [0, 0, 1, 1], [], []>} : vector<8x144xbf16>, vector<144x164xbf16>, vector<8x164xf32> -> vector<8x164xf32>
    %178 = vector.broadcast %163 : vector<8x1xf32> to vector<8x164xf32>
    %179 = arith.addf %177, %178 : vector<8x164xf32>
    %cst_62 = arith.constant 0.000000e+00 : f32
    %180 = vector.broadcast %cst_62 : f32 to vector<8x164xf32>
    %181 = arith.maximumf %179, %180 : vector<8x164xf32>
    %182 = vector.broadcast %21 : vector<1x164xf32> to vector<8x164xf32>
    %183 = arith.mulf %181, %182 : vector<8x164xf32>
    %c0_63 = arith.constant 0 : index
    %c0_64 = arith.constant 0 : index
    %184 = vector.load %arg23[%c0_63, %c0_64] : memref<4x72xbf16, #tpu.memory_space<vmem>>, vector<4x72xbf16>
    %c0_65 = arith.constant 0 : index
    %c0_66 = arith.constant 0 : index
    %185 = vector.load %arg24[%c0_65, %c0_66] : memref<4x1xf32, #tpu.memory_space<vmem>>, vector<4x1xf32>
    %cst_67 = arith.constant 0.000000e+00 : f32
    %186 = vector.broadcast %cst_67 : f32 to vector<8x4xf32>
    %187 = tpu.concatenate %186, %183, %186 in 1 : vector<8x4xf32>, vector<8x164xf32>, vector<8x4xf32> -> vector<8x172xf32>
    %188 = vector.extract_strided_slice %187 {offsets = [0, 0], sizes = [8, 164], strides = [1, 1]} : vector<8x172xf32> to vector<8x164xf32>
    %189 = vector.extract_strided_slice %187 {offsets = [0, 1], sizes = [8, 164], strides = [1, 1]} : vector<8x172xf32> to vector<8x164xf32>
    %190 = vector.extract_strided_slice %187 {offsets = [0, 2], sizes = [8, 164], strides = [1, 1]} : vector<8x172xf32> to vector<8x164xf32>
    %191 = vector.extract_strided_slice %187 {offsets = [0, 3], sizes = [8, 164], strides = [1, 1]} : vector<8x172xf32> to vector<8x164xf32>
    %192 = vector.extract_strided_slice %187 {offsets = [0, 4], sizes = [8, 164], strides = [1, 1]} : vector<8x172xf32> to vector<8x164xf32>
    %193 = vector.extract_strided_slice %187 {offsets = [0, 5], sizes = [8, 164], strides = [1, 1]} : vector<8x172xf32> to vector<8x164xf32>
    %194 = vector.extract_strided_slice %187 {offsets = [0, 6], sizes = [8, 164], strides = [1, 1]} : vector<8x172xf32> to vector<8x164xf32>
    %195 = vector.extract_strided_slice %187 {offsets = [0, 7], sizes = [8, 164], strides = [1, 1]} : vector<8x172xf32> to vector<8x164xf32>
    %196 = vector.extract_strided_slice %187 {offsets = [0, 8], sizes = [8, 164], strides = [1, 1]} : vector<8x172xf32> to vector<8x164xf32>
    %197 = tpu.concatenate %188, %189, %190, %191, %192, %193, %194, %195, %196 in 0 : vector<8x164xf32>, vector<8x164xf32>, vector<8x164xf32>, vector<8x164xf32>, vector<8x164xf32>, vector<8x164xf32>, vector<8x164xf32>, vector<8x164xf32>, vector<8x164xf32> -> vector<72x164xf32>
    %198 = arith.truncf %197 : vector<72x164xf32> to vector<72x164xbf16>
    %cst_68 = arith.constant dense<0.000000e+00> : vector<4x164xf32>
    %199 = tpu.matmul %184, %198, %cst_68 {dimension_numbers = #tpu.dot_dimension_numbers<[1], [0], [0], [1], [0, 0, 1, 1], [], []>} : vector<4x72xbf16>, vector<72x164xbf16>, vector<4x164xf32> -> vector<4x164xf32>
    %200 = vector.broadcast %185 : vector<4x1xf32> to vector<4x164xf32>
    %201 = arith.addf %199, %200 : vector<4x164xf32>
    %cst_69 = arith.constant 0.000000e+00 : f32
    %202 = vector.broadcast %cst_69 : f32 to vector<4x164xf32>
    %203 = arith.maximumf %201, %202 : vector<4x164xf32>
    %204 = vector.broadcast %21 : vector<1x164xf32> to vector<4x164xf32>
    %205 = arith.mulf %203, %204 : vector<4x164xf32>
    %206 = arith.addf %160, %205 : vector<4x164xf32>
    %207 = vector.extract_strided_slice %47 {offsets = [64, 0], sizes = [16, 164], strides = [1, 1]} : vector<80x164xf32> to vector<16x164xf32>
    %c0_70 = arith.constant 0 : index
    %c0_71 = arith.constant 0 : index
    %208 = vector.load %arg15[%c0_70, %c0_71] : memref<8x176xbf16, #tpu.memory_space<vmem>>, vector<8x176xbf16>
    %c0_72 = arith.constant 0 : index
    %c0_73 = arith.constant 0 : index
    %209 = vector.load %arg16[%c0_72, %c0_73] : memref<8x1xf32, #tpu.memory_space<vmem>>, vector<8x1xf32>
    %cst_74 = arith.constant 0.000000e+00 : f32
    %210 = vector.broadcast %cst_74 : f32 to vector<16x5xf32>
    %211 = tpu.concatenate %210, %207, %210 in 1 : vector<16x5xf32>, vector<16x164xf32>, vector<16x5xf32> -> vector<16x174xf32>
    %212 = vector.extract_strided_slice %211 {offsets = [0, 0], sizes = [16, 164], strides = [1, 1]} : vector<16x174xf32> to vector<16x164xf32>
    %213 = vector.extract_strided_slice %211 {offsets = [0, 1], sizes = [16, 164], strides = [1, 1]} : vector<16x174xf32> to vector<16x164xf32>
    %214 = vector.extract_strided_slice %211 {offsets = [0, 2], sizes = [16, 164], strides = [1, 1]} : vector<16x174xf32> to vector<16x164xf32>
    %215 = vector.extract_strided_slice %211 {offsets = [0, 3], sizes = [16, 164], strides = [1, 1]} : vector<16x174xf32> to vector<16x164xf32>
    %216 = vector.extract_strided_slice %211 {offsets = [0, 4], sizes = [16, 164], strides = [1, 1]} : vector<16x174xf32> to vector<16x164xf32>
    %217 = vector.extract_strided_slice %211 {offsets = [0, 5], sizes = [16, 164], strides = [1, 1]} : vector<16x174xf32> to vector<16x164xf32>
    %218 = vector.extract_strided_slice %211 {offsets = [0, 6], sizes = [16, 164], strides = [1, 1]} : vector<16x174xf32> to vector<16x164xf32>
    %219 = vector.extract_strided_slice %211 {offsets = [0, 7], sizes = [16, 164], strides = [1, 1]} : vector<16x174xf32> to vector<16x164xf32>
    %220 = vector.extract_strided_slice %211 {offsets = [0, 8], sizes = [16, 164], strides = [1, 1]} : vector<16x174xf32> to vector<16x164xf32>
    %221 = vector.extract_strided_slice %211 {offsets = [0, 9], sizes = [16, 164], strides = [1, 1]} : vector<16x174xf32> to vector<16x164xf32>
    %222 = vector.extract_strided_slice %211 {offsets = [0, 10], sizes = [16, 164], strides = [1, 1]} : vector<16x174xf32> to vector<16x164xf32>
    %223 = tpu.concatenate %212, %213, %214, %215, %216, %217, %218, %219, %220, %221, %222 in 0 : vector<16x164xf32>, vector<16x164xf32>, vector<16x164xf32>, vector<16x164xf32>, vector<16x164xf32>, vector<16x164xf32>, vector<16x164xf32>, vector<16x164xf32>, vector<16x164xf32>, vector<16x164xf32>, vector<16x164xf32> -> vector<176x164xf32>
    %224 = arith.truncf %223 : vector<176x164xf32> to vector<176x164xbf16>
    %cst_75 = arith.constant dense<0.000000e+00> : vector<8x164xf32>
    %225 = tpu.matmul %208, %224, %cst_75 {dimension_numbers = #tpu.dot_dimension_numbers<[1], [0], [0], [1], [0, 0, 1, 1], [], []>} : vector<8x176xbf16>, vector<176x164xbf16>, vector<8x164xf32> -> vector<8x164xf32>
    %226 = vector.broadcast %209 : vector<8x1xf32> to vector<8x164xf32>
    %227 = arith.addf %225, %226 : vector<8x164xf32>
    %cst_76 = arith.constant 0.000000e+00 : f32
    %228 = vector.broadcast %cst_76 : f32 to vector<8x164xf32>
    %229 = arith.maximumf %227, %228 : vector<8x164xf32>
    %230 = vector.broadcast %21 : vector<1x164xf32> to vector<8x164xf32>
    %231 = arith.mulf %229, %230 : vector<8x164xf32>
    %c0_77 = arith.constant 0 : index
    %c0_78 = arith.constant 0 : index
    %232 = vector.load %arg25[%c0_77, %c0_78] : memref<4x88xbf16, #tpu.memory_space<vmem>>, vector<4x88xbf16>
    %c0_79 = arith.constant 0 : index
    %c0_80 = arith.constant 0 : index
    %233 = vector.load %arg26[%c0_79, %c0_80] : memref<4x1xf32, #tpu.memory_space<vmem>>, vector<4x1xf32>
    %cst_81 = arith.constant 0.000000e+00 : f32
    %234 = vector.broadcast %cst_81 : f32 to vector<8x5xf32>
    %235 = tpu.concatenate %234, %231, %234 in 1 : vector<8x5xf32>, vector<8x164xf32>, vector<8x5xf32> -> vector<8x174xf32>
    %236 = vector.extract_strided_slice %235 {offsets = [0, 0], sizes = [8, 164], strides = [1, 1]} : vector<8x174xf32> to vector<8x164xf32>
    %237 = vector.extract_strided_slice %235 {offsets = [0, 1], sizes = [8, 164], strides = [1, 1]} : vector<8x174xf32> to vector<8x164xf32>
    %238 = vector.extract_strided_slice %235 {offsets = [0, 2], sizes = [8, 164], strides = [1, 1]} : vector<8x174xf32> to vector<8x164xf32>
    %239 = vector.extract_strided_slice %235 {offsets = [0, 3], sizes = [8, 164], strides = [1, 1]} : vector<8x174xf32> to vector<8x164xf32>
    %240 = vector.extract_strided_slice %235 {offsets = [0, 4], sizes = [8, 164], strides = [1, 1]} : vector<8x174xf32> to vector<8x164xf32>
    %241 = vector.extract_strided_slice %235 {offsets = [0, 5], sizes = [8, 164], strides = [1, 1]} : vector<8x174xf32> to vector<8x164xf32>
    %242 = vector.extract_strided_slice %235 {offsets = [0, 6], sizes = [8, 164], strides = [1, 1]} : vector<8x174xf32> to vector<8x164xf32>
    %243 = vector.extract_strided_slice %235 {offsets = [0, 7], sizes = [8, 164], strides = [1, 1]} : vector<8x174xf32> to vector<8x164xf32>
    %244 = vector.extract_strided_slice %235 {offsets = [0, 8], sizes = [8, 164], strides = [1, 1]} : vector<8x174xf32> to vector<8x164xf32>
    %245 = vector.extract_strided_slice %235 {offsets = [0, 9], sizes = [8, 164], strides = [1, 1]} : vector<8x174xf32> to vector<8x164xf32>
    %246 = vector.extract_strided_slice %235 {offsets = [0, 10], sizes = [8, 164], strides = [1, 1]} : vector<8x174xf32> to vector<8x164xf32>
    %247 = tpu.concatenate %236, %237, %238, %239, %240, %241, %242, %243, %244, %245, %246 in 0 : vector<8x164xf32>, vector<8x164xf32>, vector<8x164xf32>, vector<8x164xf32>, vector<8x164xf32>, vector<8x164xf32>, vector<8x164xf32>, vector<8x164xf32>, vector<8x164xf32>, vector<8x164xf32>, vector<8x164xf32> -> vector<88x164xf32>
    %248 = arith.truncf %247 : vector<88x164xf32> to vector<88x164xbf16>
    %cst_82 = arith.constant dense<0.000000e+00> : vector<4x164xf32>
    %249 = tpu.matmul %232, %248, %cst_82 {dimension_numbers = #tpu.dot_dimension_numbers<[1], [0], [0], [1], [0, 0, 1, 1], [], []>} : vector<4x88xbf16>, vector<88x164xbf16>, vector<4x164xf32> -> vector<4x164xf32>
    %250 = vector.broadcast %233 : vector<4x1xf32> to vector<4x164xf32>
    %251 = arith.addf %249, %250 : vector<4x164xf32>
    %cst_83 = arith.constant 0.000000e+00 : f32
    %252 = vector.broadcast %cst_83 : f32 to vector<4x164xf32>
    %253 = arith.maximumf %251, %252 : vector<4x164xf32>
    %254 = vector.broadcast %21 : vector<1x164xf32> to vector<4x164xf32>
    %255 = arith.mulf %253, %254 : vector<4x164xf32>
    %256 = arith.addf %206, %255 : vector<4x164xf32>
    %c0_84 = arith.constant 0 : index
    %c0_85 = arith.constant 0 : index
    %257 = vector.load %arg27[%c0_84, %c0_85] : memref<2x12xbf16, #tpu.memory_space<vmem>>, vector<2x12xbf16>
    %c0_86 = arith.constant 0 : index
    %c0_87 = arith.constant 0 : index
    %258 = vector.load %arg28[%c0_86, %c0_87] : memref<2x1xf32, #tpu.memory_space<vmem>>, vector<2x1xf32>
    %cst_88 = arith.constant 0.000000e+00 : f32
    %259 = vector.broadcast %cst_88 : f32 to vector<4x1xf32>
    %260 = tpu.concatenate %259, %256, %259 in 1 : vector<4x1xf32>, vector<4x164xf32>, vector<4x1xf32> -> vector<4x166xf32>
    %261 = vector.extract_strided_slice %260 {offsets = [0, 0], sizes = [4, 164], strides = [1, 1]} : vector<4x166xf32> to vector<4x164xf32>
    %262 = vector.extract_strided_slice %260 {offsets = [0, 1], sizes = [4, 164], strides = [1, 1]} : vector<4x166xf32> to vector<4x164xf32>
    %263 = vector.extract_strided_slice %260 {offsets = [0, 2], sizes = [4, 164], strides = [1, 1]} : vector<4x166xf32> to vector<4x164xf32>
    %264 = tpu.concatenate %261, %262, %263 in 0 : vector<4x164xf32>, vector<4x164xf32>, vector<4x164xf32> -> vector<12x164xf32>
    %265 = arith.truncf %264 : vector<12x164xf32> to vector<12x164xbf16>
    %cst_89 = arith.constant dense<0.000000e+00> : vector<2x164xf32>
    %266 = tpu.matmul %257, %265, %cst_89 {dimension_numbers = #tpu.dot_dimension_numbers<[1], [0], [0], [1], [0, 0, 1, 1], [], []>} : vector<2x12xbf16>, vector<12x164xbf16>, vector<2x164xf32> -> vector<2x164xf32>
    %267 = vector.broadcast %258 : vector<2x1xf32> to vector<2x164xf32>
    %268 = arith.addf %266, %267 : vector<2x164xf32>
    %cst_90 = arith.constant 0.000000e+00 : f32
    %269 = vector.broadcast %cst_90 : f32 to vector<2x164xf32>
    %270 = arith.maximumf %268, %269 : vector<2x164xf32>
    %271 = vector.broadcast %21 : vector<1x164xf32> to vector<2x164xf32>
    %272 = arith.mulf %270, %271 : vector<2x164xf32>
    %c0_91 = arith.constant 0 : index
    %c0_92 = arith.constant 0 : index
    %273 = vector.load %arg29[%c0_91, %c0_92] : memref<1x6xbf16, #tpu.memory_space<vmem>>, vector<1x6xbf16>
    %c0_93 = arith.constant 0 : index
    %c0_94 = arith.constant 0 : index
    %274 = vector.load %arg30[%c0_93, %c0_94] : memref<1x1xf32, #tpu.memory_space<vmem>>, vector<1x1xf32>
    %cst_95 = arith.constant 0.000000e+00 : f32
    %275 = vector.broadcast %cst_95 : f32 to vector<2x1xf32>
    %276 = tpu.concatenate %275, %272, %275 in 1 : vector<2x1xf32>, vector<2x164xf32>, vector<2x1xf32> -> vector<2x166xf32>
    %277 = vector.extract_strided_slice %276 {offsets = [0, 0], sizes = [2, 164], strides = [1, 1]} : vector<2x166xf32> to vector<2x164xf32>
    %278 = vector.extract_strided_slice %276 {offsets = [0, 1], sizes = [2, 164], strides = [1, 1]} : vector<2x166xf32> to vector<2x164xf32>
    %279 = vector.extract_strided_slice %276 {offsets = [0, 2], sizes = [2, 164], strides = [1, 1]} : vector<2x166xf32> to vector<2x164xf32>
    %280 = tpu.concatenate %277, %278, %279 in 0 : vector<2x164xf32>, vector<2x164xf32>, vector<2x164xf32> -> vector<6x164xf32>
    %281 = arith.truncf %280 : vector<6x164xf32> to vector<6x164xbf16>
    %cst_96 = arith.constant dense<0.000000e+00> : vector<1x164xf32>
    %282 = tpu.matmul %273, %281, %cst_96 {dimension_numbers = #tpu.dot_dimension_numbers<[1], [0], [0], [1], [0, 0, 1, 1], [], []>} : vector<1x6xbf16>, vector<6x164xbf16>, vector<1x164xf32> -> vector<1x164xf32>
    %283 = vector.broadcast %274 : vector<1x1xf32> to vector<1x164xf32>
    %284 = arith.addf %282, %283 : vector<1x164xf32>
    %cst_97 = arith.constant 0.000000e+00 : f32
    %285 = vector.broadcast %cst_97 : f32 to vector<1x164xf32>
    %286 = arith.maximumf %284, %285 : vector<1x164xf32>
    %287 = arith.mulf %286, %21 : vector<1x164xf32>
    %c0_98 = arith.constant 0 : index
    %c0_99 = arith.constant 0 : index
    %288 = vector.load %arg31[%c0_98, %c0_99] : memref<1x3xbf16, #tpu.memory_space<vmem>>, vector<1x3xbf16>
    %c0_100 = arith.constant 0 : index
    %c0_101 = arith.constant 0 : index
    %289 = vector.load %arg32[%c0_100, %c0_101] : memref<1x1xf32, #tpu.memory_space<vmem>>, vector<1x1xf32>
    %cst_102 = arith.constant 0.000000e+00 : f32
    %290 = vector.broadcast %cst_102 : f32 to vector<1x1xf32>
    %291 = tpu.concatenate %290, %287, %290 in 1 : vector<1x1xf32>, vector<1x164xf32>, vector<1x1xf32> -> vector<1x166xf32>
    %292 = vector.extract_strided_slice %291 {offsets = [0, 0], sizes = [1, 164], strides = [1, 1]} : vector<1x166xf32> to vector<1x164xf32>
    %293 = vector.extract_strided_slice %291 {offsets = [0, 1], sizes = [1, 164], strides = [1, 1]} : vector<1x166xf32> to vector<1x164xf32>
    %294 = vector.extract_strided_slice %291 {offsets = [0, 2], sizes = [1, 164], strides = [1, 1]} : vector<1x166xf32> to vector<1x164xf32>
    %295 = tpu.concatenate %292, %293, %294 in 0 : vector<1x164xf32>, vector<1x164xf32>, vector<1x164xf32> -> vector<3x164xf32>
    %296 = arith.truncf %295 : vector<3x164xf32> to vector<3x164xbf16>
    %cst_103 = arith.constant dense<0.000000e+00> : vector<1x164xf32>
    %297 = tpu.matmul %288, %296, %cst_103 {dimension_numbers = #tpu.dot_dimension_numbers<[1], [0], [0], [1], [0, 0, 1, 1], [], []>} : vector<1x3xbf16>, vector<3x164xbf16>, vector<1x164xf32> -> vector<1x164xf32>
    %298 = vector.broadcast %289 : vector<1x1xf32> to vector<1x164xf32>
    %299 = arith.addf %297, %298 : vector<1x164xf32>
    %300 = arith.negf %299 : vector<1x164xf32>
    %301 = math.exp %300 : vector<1x164xf32>
    %cst_104 = arith.constant 1.000000e+00 : f32
    %302 = vector.broadcast %cst_104 : f32 to vector<1x164xf32>
    %303 = arith.addf %302, %301 : vector<1x164xf32>
    %304 = arith.divf %302, %303 : vector<1x164xf32>
    %305 = vector.extract_strided_slice %304 {offsets = [0, 18], sizes = [1, 128], strides = [1, 1]} : vector<1x164xf32> to vector<1x128xf32>
    %c0_105 = arith.constant 0 : index
    %c0_106 = arith.constant 0 : index
    %c0_107 = arith.constant 0 : index
    %306 = vector.load %arg33[%c0_105, %c0_106, %c0_107] : memref<1x1x128xf32, #tpu.memory_space<vmem>>, vector<1x1x128xf32>
    %307 = vector.shape_cast %306 : vector<1x1x128xf32> to vector<1x128xf32>
    %308 = vector.shape_cast %305 : vector<1x128xf32> to vector<1x1x128xf32>
    tpu.vector_store %arg33[%c0_105, %c0_106, %c0_107], %308 {strides = array<i32>} : memref<1x1x128xf32, #tpu.memory_space<vmem>>, vector<1x1x128xf32>,
    return
  }
  func.func @transform_0(%arg0: i32, %arg1: i32) -> (i32, i32, i32) {
    %c1_i32 = arith.constant 1 : i32
    %0 = arith.subi %arg1, %c1_i32 : i32
    %c0_i32 = arith.constant 0 : i32
    %1 = arith.maxsi %0, %c0_i32 : i32
    %c0_i32_0 = arith.constant 0 : i32
    %c0_i32_1 = arith.constant 0 : i32
    return %arg0, %1, %c0_i32_0 : i32, i32, i32
  }
  func.func @transform_1(%arg0: i32, %arg1: i32) -> (i32, i32, i32) {
    %c0_i32 = arith.constant 0 : i32
    %c0_i32_0 = arith.constant 0 : i32
    return %arg0, %arg1, %c0_i32 : i32, i32, i32
  }
  func.func @transform_2(%arg0: i32, %arg1: i32) -> (i32, i32, i32) {
    %c1_i32 = arith.constant 1 : i32
    %0 = arith.addi %arg1, %c1_i32 : i32
    %c1_i32_0 = arith.constant 1 : i32
    %1 = arith.minsi %0, %c1_i32_0 : i32
    %c0_i32 = arith.constant 0 : i32
    %c0_i32_1 = arith.constant 0 : i32
    return %arg0, %1, %c0_i32 : i32, i32, i32
  }
  func.func @transform_3(%arg0: i32, %arg1: i32) -> (i32, i32) {
    %c0_i32 = arith.constant 0 : i32
    %c0_i32_0 = arith.constant 0 : i32
    %c0_i32_1 = arith.constant 0 : i32
    return %c0_i32, %c0_i32_0 : i32, i32
  }
  func.func @transform_4(%arg0: i32, %arg1: i32) -> (i32, i32) {
    %c0_i32 = arith.constant 0 : i32
    %c0_i32_0 = arith.constant 0 : i32
    %c0_i32_1 = arith.constant 0 : i32
    return %c0_i32, %c0_i32_0 : i32, i32
  }
  func.func @transform_5(%arg0: i32, %arg1: i32) -> (i32, i32) {
    %c0_i32 = arith.constant 0 : i32
    %c0_i32_0 = arith.constant 0 : i32
    %c0_i32_1 = arith.constant 0 : i32
    return %c0_i32, %c0_i32_0 : i32, i32
  }
  func.func @transform_6(%arg0: i32, %arg1: i32) -> (i32, i32) {
    %c0_i32 = arith.constant 0 : i32
    %c0_i32_0 = arith.constant 0 : i32
    %c0_i32_1 = arith.constant 0 : i32
    return %c0_i32, %c0_i32_0 : i32, i32
  }
  func.func @transform_7(%arg0: i32, %arg1: i32) -> (i32, i32) {
    %c0_i32 = arith.constant 0 : i32
    %c0_i32_0 = arith.constant 0 : i32
    %c0_i32_1 = arith.constant 0 : i32
    return %c0_i32, %c0_i32_0 : i32, i32
  }
  func.func @transform_8(%arg0: i32, %arg1: i32) -> (i32, i32) {
    %c0_i32 = arith.constant 0 : i32
    %c0_i32_0 = arith.constant 0 : i32
    %c0_i32_1 = arith.constant 0 : i32
    return %c0_i32, %c0_i32_0 : i32, i32
  }
  func.func @transform_9(%arg0: i32, %arg1: i32) -> (i32, i32) {
    %c0_i32 = arith.constant 0 : i32
    %c0_i32_0 = arith.constant 0 : i32
    %c0_i32_1 = arith.constant 0 : i32
    return %c0_i32, %c0_i32_0 : i32, i32
  }
  func.func @transform_10(%arg0: i32, %arg1: i32) -> (i32, i32) {
    %c0_i32 = arith.constant 0 : i32
    %c0_i32_0 = arith.constant 0 : i32
    %c0_i32_1 = arith.constant 0 : i32
    return %c0_i32, %c0_i32_0 : i32, i32
  }
  func.func @transform_11(%arg0: i32, %arg1: i32) -> (i32, i32) {
    %c0_i32 = arith.constant 0 : i32
    %c0_i32_0 = arith.constant 0 : i32
    %c0_i32_1 = arith.constant 0 : i32
    return %c0_i32, %c0_i32_0 : i32, i32
  }
  func.func @transform_12(%arg0: i32, %arg1: i32) -> (i32, i32) {
    %c0_i32 = arith.constant 0 : i32
    %c0_i32_0 = arith.constant 0 : i32
    %c0_i32_1 = arith.constant 0 : i32
    return %c0_i32, %c0_i32_0 : i32, i32
  }
  func.func @transform_13(%arg0: i32, %arg1: i32) -> (i32, i32) {
    %c0_i32 = arith.constant 0 : i32
    %c0_i32_0 = arith.constant 0 : i32
    %c0_i32_1 = arith.constant 0 : i32
    return %c0_i32, %c0_i32_0 : i32, i32
  }
  func.func @transform_14(%arg0: i32, %arg1: i32) -> (i32, i32) {
    %c0_i32 = arith.constant 0 : i32
    %c0_i32_0 = arith.constant 0 : i32
    %c0_i32_1 = arith.constant 0 : i32
    return %c0_i32, %c0_i32_0 : i32, i32
  }
  func.func @transform_15(%arg0: i32, %arg1: i32) -> (i32, i32) {
    %c0_i32 = arith.constant 0 : i32
    %c0_i32_0 = arith.constant 0 : i32
    %c0_i32_1 = arith.constant 0 : i32
    return %c0_i32, %c0_i32_0 : i32, i32
  }
  func.func @transform_16(%arg0: i32, %arg1: i32) -> (i32, i32) {
    %c0_i32 = arith.constant 0 : i32
    %c0_i32_0 = arith.constant 0 : i32
    %c0_i32_1 = arith.constant 0 : i32
    return %c0_i32, %c0_i32_0 : i32, i32
  }
  func.func @transform_17(%arg0: i32, %arg1: i32) -> (i32, i32) {
    %c0_i32 = arith.constant 0 : i32
    %c0_i32_0 = arith.constant 0 : i32
    %c0_i32_1 = arith.constant 0 : i32
    return %c0_i32, %c0_i32_0 : i32, i32
  }
  func.func @transform_18(%arg0: i32, %arg1: i32) -> (i32, i32) {
    %c0_i32 = arith.constant 0 : i32
    %c0_i32_0 = arith.constant 0 : i32
    %c0_i32_1 = arith.constant 0 : i32
    return %c0_i32, %c0_i32_0 : i32, i32
  }
  func.func @transform_19(%arg0: i32, %arg1: i32) -> (i32, i32) {
    %c0_i32 = arith.constant 0 : i32
    %c0_i32_0 = arith.constant 0 : i32
    %c0_i32_1 = arith.constant 0 : i32
    return %c0_i32, %c0_i32_0 : i32, i32
  }
  func.func @transform_20(%arg0: i32, %arg1: i32) -> (i32, i32) {
    %c0_i32 = arith.constant 0 : i32
    %c0_i32_0 = arith.constant 0 : i32
    %c0_i32_1 = arith.constant 0 : i32
    return %c0_i32, %c0_i32_0 : i32, i32
  }
  func.func @transform_21(%arg0: i32, %arg1: i32) -> (i32, i32) {
    %c0_i32 = arith.constant 0 : i32
    %c0_i32_0 = arith.constant 0 : i32
    %c0_i32_1 = arith.constant 0 : i32
    return %c0_i32, %c0_i32_0 : i32, i32
  }
  func.func @transform_22(%arg0: i32, %arg1: i32) -> (i32, i32) {
    %c0_i32 = arith.constant 0 : i32
    %c0_i32_0 = arith.constant 0 : i32
    %c0_i32_1 = arith.constant 0 : i32
    return %c0_i32, %c0_i32_0 : i32, i32
  }
  func.func @transform_23(%arg0: i32, %arg1: i32) -> (i32, i32) {
    %c0_i32 = arith.constant 0 : i32
    %c0_i32_0 = arith.constant 0 : i32
    %c0_i32_1 = arith.constant 0 : i32
    return %c0_i32, %c0_i32_0 : i32, i32
  }
  func.func @transform_24(%arg0: i32, %arg1: i32) -> (i32, i32) {
    %c0_i32 = arith.constant 0 : i32
    %c0_i32_0 = arith.constant 0 : i32
    %c0_i32_1 = arith.constant 0 : i32
    return %c0_i32, %c0_i32_0 : i32, i32
  }
  func.func @transform_25(%arg0: i32, %arg1: i32) -> (i32, i32) {
    %c0_i32 = arith.constant 0 : i32
    %c0_i32_0 = arith.constant 0 : i32
    %c0_i32_1 = arith.constant 0 : i32
    return %c0_i32, %c0_i32_0 : i32, i32
  }
  func.func @transform_26(%arg0: i32, %arg1: i32) -> (i32, i32) {
    %c0_i32 = arith.constant 0 : i32
    %c0_i32_0 = arith.constant 0 : i32
    %c0_i32_1 = arith.constant 0 : i32
    return %c0_i32, %c0_i32_0 : i32, i32
  }
  func.func @transform_27(%arg0: i32, %arg1: i32) -> (i32, i32) {
    %c0_i32 = arith.constant 0 : i32
    %c0_i32_0 = arith.constant 0 : i32
    %c0_i32_1 = arith.constant 0 : i32
    return %c0_i32, %c0_i32_0 : i32, i32
  }
  func.func @transform_28(%arg0: i32, %arg1: i32) -> (i32, i32) {
    %c0_i32 = arith.constant 0 : i32
    %c0_i32_0 = arith.constant 0 : i32
    %c0_i32_1 = arith.constant 0 : i32
    return %c0_i32, %c0_i32_0 : i32, i32
  }
  func.func @transform_29(%arg0: i32, %arg1: i32) -> (i32, i32) {
    %c0_i32 = arith.constant 0 : i32
    %c0_i32_0 = arith.constant 0 : i32
    %c0_i32_1 = arith.constant 0 : i32
    return %c0_i32, %c0_i32_0 : i32, i32
  }
  func.func @transform_30(%arg0: i32, %arg1: i32) -> (i32, i32) {
    %c0_i32 = arith.constant 0 : i32
    %c0_i32_0 = arith.constant 0 : i32
    %c0_i32_1 = arith.constant 0 : i32
    return %c0_i32, %c0_i32_0 : i32, i32
  }
  func.func @transform_31(%arg0: i32, %arg1: i32) -> (i32, i32, i32) {
    %c0_i32 = arith.constant 0 : i32
    %c0_i32_0 = arith.constant 0 : i32
    return %arg0, %c0_i32, %arg1 : i32, i32, i32
  }
}

</mosaic_0001>

<llo_original>
// kernel: tpu_custom_call.1
$region0: #{tpu_custom_call.1}
  #allocation0 [shape = 'u32[]', space=smem, size = 0x4, offset = 0x4, fixed_abs, tag = 'smem constant byte address 0x4 - core index']
  #allocation1 [shape = 'u32[144,128]{1,0:T(1,128)}', space=vmem, size = 0x12000, scoped, tag = 'internal scratch']
  #allocation2 [shape = 'f32[1,1]{1,0:T(1,128)S(1)}', space=vmem, size = 0x200, scoped, tag = 'scoped memory for tpu_custom_call.1']
  #allocation3 [shape = 'f32[1,1]{1,0:T(1,128)S(1)}', space=vmem, size = 0x200, scoped, tag = 'scoped memory for tpu_custom_call.1']
  %s0 = inlined_call_operand.smem [shape: u32[32], index: -1, kind: input, shape index: {}]
  %s1 = sld [smem:[%s0]]
  %s2 = scalar_lea.smem %s0, 1
  %s3 = sld [smem:[%s2]]
  %s4 = scalar_lea.smem %s0, 2
  %s5 = sld [smem:[%s4]]
  %s6 = scalar_lea.smem %s0, 3
  %s7 = sld [smem:[%s6]]
  %s8 = scalar_lea.smem %s0, 4
  %s9 = sld [smem:[%s8]]
  %s10 = scalar_lea.smem %s0, 5
  %s11 = sld [smem:[%s10]]
  %s12 = scalar_lea.smem %s0, 6
  %s13 = sld [smem:[%s12]]
  %s14 = scalar_lea.smem %s0, 7
  %s15 = sld [smem:[%s14]]
  %s16 = scalar_lea.smem %s0, 8
  %s17 = sld [smem:[%s16]]
  %s18 = scalar_lea.smem %s0, 9
  %s19 = sld [smem:[%s18]]
  %s20 = scalar_lea.smem %s0, 10
  %s21 = sld [smem:[%s20]]
  %s22 = scalar_lea.smem %s0, 11
  %s23 = sld [smem:[%s22]]
  %s24 = scalar_lea.smem %s0, 12
  %s25 = sld [smem:[%s24]]
  %s26 = scalar_lea.smem %s0, 13
  %s27 = sld [smem:[%s26]]
  %s28 = scalar_lea.smem %s0, 14
  %s29 = sld [smem:[%s28]]
  %s30 = scalar_lea.smem %s0, 15
  %s31 = sld [smem:[%s30]]
  %s32 = scalar_lea.smem %s0, 16
  %s33 = sld [smem:[%s32]]
  %s34 = scalar_lea.smem %s0, 17
  %s35 = sld [smem:[%s34]]
  %s36 = scalar_lea.smem %s0, 18
  %s37 = sld [smem:[%s36]]
  %s38 = scalar_lea.smem %s0, 19
  %s39 = sld [smem:[%s38]]
  %s40 = scalar_lea.smem %s0, 20
  %s41 = sld [smem:[%s40]]
  %s42 = scalar_lea.smem %s0, 21
  %s43 = sld [smem:[%s42]]
  %s44 = scalar_lea.smem %s0, 22
  %s45 = sld [smem:[%s44]]
  %s46 = scalar_lea.smem %s0, 23
  %s47 = sld [smem:[%s46]]
  %s48 = scalar_lea.smem %s0, 24
  %s49 = sld [smem:[%s48]]
  %s50 = scalar_lea.smem %s0, 25
  %s51 = sld [smem:[%s50]]
  %s52 = scalar_lea.smem %s0, 26
  %s53 = sld [smem:[%s52]]
  %s54 = scalar_lea.smem %s0, 27
  %s55 = sld [smem:[%s54]]
  %s56 = scalar_lea.smem %s0, 28
  %s57 = sld [smem:[%s56]]
  %s58 = scalar_lea.smem %s0, 29
  %s59 = sld [smem:[%s58]]
  %s60 = scalar_lea.smem %s0, 30
  %s61 = sld [smem:[%s60]]
  %s62 = scalar_lea.smem %s0, 31
  %s63 = sld [smem:[%s62]]
  %s64 = sld [smem:[#allocation0]]
  $region157: #{tpu_custom_call.1} parent=0
    _
  %s66 = ssub.s32 1, %s64
  %s67 = scalar_select 0, %s66, %s64
  %v68 = vstv %s57
  %69 = vst [vmem:[#allocation2] sm:$0x1] %v68
  %v70 = vstv %s61
  %71 = vst [vmem:[#allocation3] sm:$0x1] %v70
  $region1: #{tpu_custom_call.1} parent=0
    #allocation4 [shape = 'u8[1024]{0}', space=vmem, size = 0x400, scoped, tag = 'output window, operand 0']
    #allocation5 [shape = 's32[2]{0}', space=sflag, size = 0x8, scoped, tag = 'scoped memory for tpu_custom_call.1']
    %72 = vsyncpa [#allocation5], 0
    %s73 = scalar_lea.sflag [#allocation5], 1
    %74 = vsyncpa %s73, 0
    loop: start=0, step=1, limit=6
    $region2: #{tpu_custom_call.1} parent=1 // loop_pre_header
      _
    $region3: #{tpu_custom_call.1} parent=1 // loop_header
      %s76 = sphi 0, %s80
      %p77 = scmp.ge.s32.totalorder %s76, 6
      %s83 = sphi 0, %s95
      %s84 = sphi 0, %s91
      %s85 = sphi 0, %s83
      %s86 = sphi 0, %s84
      %s87 = sphi 0, %s85
      %s88 = sphi 0, %s86
      %s106 = sphi 0, %s108
      %s109 = sphi 0, %s106
      %s110 = sphi 0, %s109
      %s126 = sphi 0, %s110
      %s134 = sphi 0, %s136
      %s137 = sphi 0, %s134
      %s138 = sphi 0, %s137
      %s154 = sphi 0, %s138
      %s168 = sphi 0, %s170
      %s171 = sphi 0, %s168
      %s172 = sphi 0, %s171
      %s188 = sphi 0, %s172
      %s192 = sphi 0, %s192
      %s194 = sphi 0, %s192
      %s195 = sphi 0, %s194
      %s209 = sphi 0, %s195
      %s213 = sphi 0, %s213
      %s215 = sphi 0, %s213
      %s216 = sphi 0, %s215
      %s230 = sphi 0, %s216
      %s234 = sphi 0, %s234
      %s236 = sphi 0, %s234
      %s237 = sphi 0, %s236
      %s251 = sphi 0, %s237
      %s255 = sphi 0, %s255
      %s257 = sphi 0, %s255
      %s258 = sphi 0, %s257
      %s272 = sphi 0, %s258
      %s276 = sphi 0, %s276
      %s278 = sphi 0, %s276
      %s279 = sphi 0, %s278
      %s293 = sphi 0, %s279
      %s297 = sphi 0, %s297
      %s299 = sphi 0, %s297
      %s300 = sphi 0, %s299
      %s314 = sphi 0, %s300
      %s318 = sphi 0, %s318
      %s320 = sphi 0, %s318
      %s321 = sphi 0, %s320
      %s335 = sphi 0, %s321
      %s339 = sphi 0, %s339
      %s341 = sphi 0, %s339
      %s342 = sphi 0, %s341
      %s356 = sphi 0, %s342
      %s360 = sphi 0, %s360
      %s362 = sphi 0, %s360
      %s363 = sphi 0, %s362
      %s377 = sphi 0, %s363
      %s381 = sphi 0, %s381
      %s383 = sphi 0, %s381
      %s384 = sphi 0, %s383
      %s398 = sphi 0, %s384
      %s402 = sphi 0, %s402
      %s404 = sphi 0, %s402
      %s405 = sphi 0, %s404
      %s419 = sphi 0, %s405
      %s423 = sphi 0, %s423
      %s425 = sphi 0, %s423
      %s426 = sphi 0, %s425
      %s440 = sphi 0, %s426
      %s444 = sphi 0, %s444
      %s446 = sphi 0, %s444
      %s447 = sphi 0, %s446
      %s461 = sphi 0, %s447
      %s465 = sphi 0, %s465
      %s467 = sphi 0, %s465
      %s468 = sphi 0, %s467
      %s482 = sphi 0, %s468
      %s486 = sphi 0, %s486
      %s488 = sphi 0, %s486
      %s489 = sphi 0, %s488
      %s503 = sphi 0, %s489
      %s507 = sphi 0, %s507
      %s509 = sphi 0, %s507
      %s510 = sphi 0, %s509
      %s524 = sphi 0, %s510
      %s528 = sphi 0, %s528
      %s530 = sphi 0, %s528
      %s531 = sphi 0, %s530
      %s545 = sphi 0, %s531
      %s549 = sphi 0, %s549
      %s551 = sphi 0, %s549
      %s552 = sphi 0, %s551
      %s566 = sphi 0, %s552
      %s570 = sphi 0, %s570
      %s572 = sphi 0, %s570
      %s573 = sphi 0, %s572
      %s587 = sphi 0, %s573
      %s591 = sphi 0, %s591
      %s593 = sphi 0, %s591
      %s594 = sphi 0, %s593
      %s608 = sphi 0, %s594
      %s612 = sphi 0, %s612
      %s614 = sphi 0, %s612
      %s615 = sphi 0, %s614
      %s629 = sphi 0, %s615
      %s633 = sphi 0, %s633
      %s635 = sphi 0, %s633
      %s636 = sphi 0, %s635
      %s650 = sphi 0, %s636
      %s654 = sphi 0, %s654
      %s656 = sphi 0, %s654
      %s657 = sphi 0, %s656
      %s671 = sphi 0, %s657
      %s675 = sphi 0, %s675
      %s677 = sphi 0, %s675
      %s678 = sphi 0, %s677
      %s692 = sphi 0, %s678
      %s696 = sphi 0, %s696
      %s698 = sphi 0, %s696
      %s699 = sphi 0, %s698
      %s713 = sphi 0, %s699
      %s717 = sphi 0, %s717
      %s719 = sphi 0, %s717
      %s720 = sphi 0, %s719
      %s734 = sphi 0, %s720
      %s738 = sphi 0, %s738
      %s740 = sphi 0, %s738
      %s741 = sphi 0, %s740
      %s755 = sphi 0, %s741
      %s759 = sphi 0, %s759
      %s761 = sphi 0, %s759
      %s762 = sphi 0, %s761
      %s776 = sphi 0, %s762
      %s784 = sphi 0, %s786
      %s787 = sphi 0, %s784
      %s788 = sphi 0, %s787
      %s804 = sphi 0, %s788
    $region4: #{tpu_custom_call.1} parent=1 // loop_header_branch
      %79 = sbr.rel (%p77) target = $region8
    $region5: #{tpu_custom_call.1} parent=1 // loop_body
      %s81 = ssub.s32 %s76, 1
      %s82 = ssub.s32 %s76, 2
      %s89 = sadd.s32 1, %s84
      %p90 = scmp.ge.s32.totalorder %s89, 2
      %s91 = scalar_select %p90, 0, %s89
      %s92 = sadd.s32 1, %s83
      %s93 = scalar_select %p90, %s92, %s83
      %p94 = scmp.ge.s32.totalorder %s93, 2
      %s95 = scalar_select %p94, 0, %s93
      %s96 = ssub.s32 %s84, 1
      %p97 = scmp.gt.s32.totalorder %s96, 0
      %s98 = scalar_select %p97, %s96, 0
      %s99 = ssub.s32 %s91, 1
      %p100 = scmp.gt.s32.totalorder %s99, 0
      %s101 = scalar_select %p100, %s99, 0
      %s102 = ssub.s32 %s83, %s95
      %s103 = ssub.s32 %s98, %s101
      %s104 = sor.u32 %s102, %s103
      %p105 = scmp.eq.s32.totalorder %s104, 0
      %s107 = sadd.s32 %s106, 1
      %s108 = scalar_select %p105, %s106, %s107
      %p111 = pneg %p105
      %p112 = scmp.eq.s32.totalorder %s76, 3
      %p113 = por %p111, %p112
      %p114 = scmp.ne.s32.totalorder %s106, %s109
      %p115 = scmp.eq.s32.totalorder %s76, 0
      %p116 = por %p114, %p115
      %p117 = scmp.ne.s32.totalorder %s106, %s109
      %p118 = scmp.eq.s32.totalorder %s81, 3
      %p119 = por %p117, %p118
      %p120 = scmp.ne.s32.totalorder %s109, %s110
      %p121 = scmp.eq.s32.totalorder %s81, 0
      %p122 = por %p120, %p121
      %p123 = scmp.ne.s32.totalorder %s109, %s110
      %p124 = scmp.eq.s32.totalorder %s82, 3
      %p125 = por %p123, %p124
      %p127 = scmp.ne.s32.totalorder %s110, %s126
      %p128 = scmp.eq.s32.totalorder %s82, 0
      %p129 = por %p127, %p128
      %s130 = ssub.s32 %s83, %s95
      %s131 = ssub.s32 %s84, %s91
      %s132 = sor.u32 %s130, %s131
      %p133 = scmp.eq.s32.totalorder %s132, 0
      %s135 = sadd.s32 %s134, 1
      %s136 = scalar_select %p133, %s134, %s135
      %p139 = pneg %p133
      %p140 = scmp.eq.s32.totalorder %s76, 3
      %p141 = por %p139, %p140
      %p142 = scmp.ne.s32.totalorder %s134, %s137
      %p143 = scmp.eq.s32.totalorder %s76, 0
      %p144 = por %p142, %p143
      %p145 = scmp.ne.s32.totalorder %s134, %s137
      %p146 = scmp.eq.s32.totalorder %s81, 3
      %p147 = por %p145, %p146
      %p148 = scmp.ne.s32.totalorder %s137, %s138
      %p149 = scmp.eq.s32.totalorder %s81, 0
      %p150 = por %p148, %p149
      %p151 = scmp.ne.s32.totalorder %s137, %s138
      %p152 = scmp.eq.s32.totalorder %s82, 3
      %p153 = por %p151, %p152
      %p155 = scmp.ne.s32.totalorder %s138, %s154
      %p156 = scmp.eq.s32.totalorder %s82, 0
      %p157 = por %p155, %p156
      %s158 = sadd.s32 %s84, 1
      %p159 = scmp.lt.s32.totalorder %s158, 1
      %s160 = scalar_select %p159, %s158, 1
      %s161 = sadd.s32 %s91, 1
      %p162 = scmp.lt.s32.totalorder %s161, 1
      %s163 = scalar_select %p162, %s161, 1
      %s164 = ssub.s32 %s83, %s95
      %s165 = ssub.s32 %s160, %s163
      %s166 = sor.u32 %s164, %s165
      %p167 = scmp.eq.s32.totalorder %s166, 0
      %s169 = sadd.s32 %s168, 1
      %s170 = scalar_select %p167, %s168, %s169
      %p173 = pneg %p167
      %p174 = scmp.eq.s32.totalorder %s76, 3
      %p175 = por %p173, %p174
      %p176 = scmp.ne.s32.totalorder %s168, %s171
      %p177 = scmp.eq.s32.totalorder %s76, 0
      %p178 = por %p176, %p177
      %p179 = scmp.ne.s32.totalorder %s168, %s171
      %p180 = scmp.eq.s32.totalorder %s81, 3
      %p181 = por %p179, %p180
      %p182 = scmp.ne.s32.totalorder %s171, %s172
      %p183 = scmp.eq.s32.totalorder %s81, 0
      %p184 = por %p182, %p183
      %p185 = scmp.ne.s32.totalorder %s171, %s172
      %p186 = scmp.eq.s32.totalorder %s82, 3
      %p187 = por %p185, %p186
      %p189 = scmp.ne.s32.totalorder %s172, %s188
      %p190 = scmp.eq.s32.totalorder %s82, 0
      %p191 = por %p189, %p190
      %s193 = sadd.s32 %s192, 1
      %p196 = scmp.eq.s32.totalorder %s76, 3
      %p197 = scmp.ne.s32.totalorder %s192, %s194
      %p198 = scmp.eq.s32.totalorder %s76, 0
      %p199 = por %p197, %p198
      %p200 = scmp.ne.s32.totalorder %s192, %s194
      %p201 = scmp.eq.s32.totalorder %s81, 3
      %p202 = por %p200, %p201
      %p203 = scmp.ne.s32.totalorder %s194, %s195
      %p204 = scmp.eq.s32.totalorder %s81, 0
      %p205 = por %p203, %p204
      %p206 = scmp.ne.s32.totalorder %s194, %s195
      %p207 = scmp.eq.s32.totalorder %s82, 3
      %p208 = por %p206, %p207
      %p210 = scmp.ne.s32.totalorder %s195, %s209
      %p211 = scmp.eq.s32.totalorder %s82, 0
      %p212 = por %p210, %p211
      %s214 = sadd.s32 %s213, 1
      %p217 = scmp.eq.s32.totalorder %s76, 3
      %p218 = scmp.ne.s32.totalorder %s213, %s215
      %p219 = scmp.eq.s32.totalorder %s76, 0
      %p220 = por %p218, %p219
      %p221 = scmp.ne.s32.totalorder %s213, %s215
      %p222 = scmp.eq.s32.totalorder %s81, 3
      %p223 = por %p221, %p222
      %p224 = scmp.ne.s32.totalorder %s215, %s216
      %p225 = scmp.eq.s32.totalorder %s81, 0
      %p226 = por %p224, %p225
      %p227 = scmp.ne.s32.totalorder %s215, %s216
      %p228 = scmp.eq.s32.totalorder %s82, 3
      %p229 = por %p227, %p228
      %p231 = scmp.ne.s32.totalorder %s216, %s230
      %p232 = scmp.eq.s32.totalorder %s82, 0
      %p233 = por %p231, %p232
      %s235 = sadd.s32 %s234, 1
      %p238 = scmp.eq.s32.totalorder %s76, 3
      %p239 = scmp.ne.s32.totalorder %s234, %s236
      %p240 = scmp.eq.s32.totalorder %s76, 0
      %p241 = por %p239, %p240
      %p242 = scmp.ne.s32.totalorder %s234, %s236
      %p243 = scmp.eq.s32.totalorder %s81, 3
      %p244 = por %p242, %p243
      %p245 = scmp.ne.s32.totalorder %s236, %s237
      %p246 = scmp.eq.s32.totalorder %s81, 0
      %p247 = por %p245, %p246
      %p248 = scmp.ne.s32.totalorder %s236, %s237
      %p249 = scmp.eq.s32.totalorder %s82, 3
      %p250 = por %p248, %p249
      %p252 = scmp.ne.s32.totalorder %s237, %s251
      %p253 = scmp.eq.s32.totalorder %s82, 0
      %p254 = por %p252, %p253
      %s256 = sadd.s32 %s255, 1
      %p259 = scmp.eq.s32.totalorder %s76, 3
      %p260 = scmp.ne.s32.totalorder %s255, %s257
      %p261 = scmp.eq.s32.totalorder %s76, 0
      %p262 = por %p260, %p261
      %p263 = scmp.ne.s32.totalorder %s255, %s257
      %p264 = scmp.eq.s32.totalorder %s81, 3
      %p265 = por %p263, %p264
      %p266 = scmp.ne.s32.totalorder %s257, %s258
      %p267 = scmp.eq.s32.totalorder %s81, 0
      %p268 = por %p266, %p267
      %p269 = scmp.ne.s32.totalorder %s257, %s258
      %p270 = scmp.eq.s32.totalorder %s82, 3
      %p271 = por %p269, %p270
      %p273 = scmp.ne.s32.totalorder %s258, %s272
      %p274 = scmp.eq.s32.totalorder %s82, 0
      %p275 = por %p273, %p274
      %s277 = sadd.s32 %s276, 1
      %p280 = scmp.eq.s32.totalorder %s76, 3
      %p281 = scmp.ne.s32.totalorder %s276, %s278
      %p282 = scmp.eq.s32.totalorder %s76, 0
      %p283 = por %p281, %p282
      %p284 = scmp.ne.s32.totalorder %s276, %s278
      %p285 = scmp.eq.s32.totalorder %s81, 3
      %p286 = por %p284, %p285
      %p287 = scmp.ne.s32.totalorder %s278, %s279
      %p288 = scmp.eq.s32.totalorder %s81, 0
      %p289 = por %p287, %p288
      %p290 = scmp.ne.s32.totalorder %s278, %s279
      %p291 = scmp.eq.s32.totalorder %s82, 3
      %p292 = por %p290, %p291
      %p294 = scmp.ne.s32.totalorder %s279, %s293
      %p295 = scmp.eq.s32.totalorder %s82, 0
      %p296 = por %p294, %p295
      %s298 = sadd.s32 %s297, 1
      %p301 = scmp.eq.s32.totalorder %s76, 3
      %p302 = scmp.ne.s32.totalorder %s297, %s299
      %p303 = scmp.eq.s32.totalorder %s76, 0
      %p304 = por %p302, %p303
      %p305 = scmp.ne.s32.totalorder %s297, %s299
      %p306 = scmp.eq.s32.totalorder %s81, 3
      %p307 = por %p305, %p306
      %p308 = scmp.ne.s32.totalorder %s299, %s300
      %p309 = scmp.eq.s32.totalorder %s81, 0
      %p310 = por %p308, %p309
      %p311 = scmp.ne.s32.totalorder %s299, %s300
      %p312 = scmp.eq.s32.totalorder %s82, 3
      %p313 = por %p311, %p312
      %p315 = scmp.ne.s32.totalorder %s300, %s314
      %p316 = scmp.eq.s32.totalorder %s82, 0
      %p317 = por %p315, %p316
      %s319 = sadd.s32 %s318, 1
      %p322 = scmp.eq.s32.totalorder %s76, 3
      %p323 = scmp.ne.s32.totalorder %s318, %s320
      %p324 = scmp.eq.s32.totalorder %s76, 0
      %p325 = por %p323, %p324
      %p326 = scmp.ne.s32.totalorder %s318, %s320
      %p327 = scmp.eq.s32.totalorder %s81, 3
      %p328 = por %p326, %p327
      %p329 = scmp.ne.s32.totalorder %s320, %s321
      %p330 = scmp.eq.s32.totalorder %s81, 0
      %p331 = por %p329, %p330
      %p332 = scmp.ne.s32.totalorder %s320, %s321
      %p333 = scmp.eq.s32.totalorder %s82, 3
      %p334 = por %p332, %p333
      %p336 = scmp.ne.s32.totalorder %s321, %s335
      %p337 = scmp.eq.s32.totalorder %s82, 0
      %p338 = por %p336, %p337
      %s340 = sadd.s32 %s339, 1
      %p343 = scmp.eq.s32.totalorder %s76, 3
      %p344 = scmp.ne.s32.totalorder %s339, %s341
      %p345 = scmp.eq.s32.totalorder %s76, 0
      %p346 = por %p344, %p345
      %p347 = scmp.ne.s32.totalorder %s339, %s341
      %p348 = scmp.eq.s32.totalorder %s81, 3
      %p349 = por %p347, %p348
      %p350 = scmp.ne.s32.totalorder %s341, %s342
      %p351 = scmp.eq.s32.totalorder %s81, 0
      %p352 = por %p350, %p351
      %p353 = scmp.ne.s32.totalorder %s341, %s342
      %p354 = scmp.eq.s32.totalorder %s82, 3
      %p355 = por %p353, %p354
      %p357 = scmp.ne.s32.totalorder %s342, %s356
      %p358 = scmp.eq.s32.totalorder %s82, 0
      %p359 = por %p357, %p358
      %s361 = sadd.s32 %s360, 1
      %p364 = scmp.eq.s32.totalorder %s76, 3
      %p365 = scmp.ne.s32.totalorder %s360, %s362
      %p366 = scmp.eq.s32.totalorder %s76, 0
      %p367 = por %p365, %p366
      %p368 = scmp.ne.s32.totalorder %s360, %s362
      %p369 = scmp.eq.s32.totalorder %s81, 3
      %p370 = por %p368, %p369
      %p371 = scmp.ne.s32.totalorder %s362, %s363
      %p372 = scmp.eq.s32.totalorder %s81, 0
      %p373 = por %p371, %p372
      %p374 = scmp.ne.s32.totalorder %s362, %s363
      %p375 = scmp.eq.s32.totalorder %s82, 3
      %p376 = por %p374, %p375
      %p378 = scmp.ne.s32.totalorder %s363, %s377
      %p379 = scmp.eq.s32.totalorder %s82, 0
      %p380 = por %p378, %p379
      %s382 = sadd.s32 %s381, 1
      %p385 = scmp.eq.s32.totalorder %s76, 3
      %p386 = scmp.ne.s32.totalorder %s381, %s383
      %p387 = scmp.eq.s32.totalorder %s76, 0
      %p388 = por %p386, %p387
      %p389 = scmp.ne.s32.totalorder %s381, %s383
      %p390 = scmp.eq.s32.totalorder %s81, 3
      %p391 = por %p389, %p390
      %p392 = scmp.ne.s32.totalorder %s383, %s384
      %p393 = scmp.eq.s32.totalorder %s81, 0
      %p394 = por %p392, %p393
      %p395 = scmp.ne.s32.totalorder %s383, %s384
      %p396 = scmp.eq.s32.totalorder %s82, 3
      %p397 = por %p395, %p396
      %p399 = scmp.ne.s32.totalorder %s384, %s398
      %p400 = scmp.eq.s32.totalorder %s82, 0
      %p401 = por %p399, %p400
      %s403 = sadd.s32 %s402, 1
      %p406 = scmp.eq.s32.totalorder %s76, 3
      %p407 = scmp.ne.s32.totalorder %s402, %s404
      %p408 = scmp.eq.s32.totalorder %s76, 0
      %p409 = por %p407, %p408
      %p410 = scmp.ne.s32.totalorder %s402, %s404
      %p411 = scmp.eq.s32.totalorder %s81, 3
      %p412 = por %p410, %p411
      %p413 = scmp.ne.s32.totalorder %s404, %s405
      %p414 = scmp.eq.s32.totalorder %s81, 0
      %p415 = por %p413, %p414
      %p416 = scmp.ne.s32.totalorder %s404, %s405
      %p417 = scmp.eq.s32.totalorder %s82, 3
      %p418 = por %p416, %p417
      %p420 = scmp.ne.s32.totalorder %s405, %s419
      %p421 = scmp.eq.s32.totalorder %s82, 0
      %p422 = por %p420, %p421
      %s424 = sadd.s32 %s423, 1
      %p427 = scmp.eq.s32.totalorder %s76, 3
      %p428 = scmp.ne.s32.totalorder %s423, %s425
      %p429 = scmp.eq.s32.totalorder %s76, 0
      %p430 = por %p428, %p429
      %p431 = scmp.ne.s32.totalorder %s423, %s425
      %p432 = scmp.eq.s32.totalorder %s81, 3
      %p433 = por %p431, %p432
      %p434 = scmp.ne.s32.totalorder %s425, %s426
      %p435 = scmp.eq.s32.totalorder %s81, 0
      %p436 = por %p434, %p435
      %p437 = scmp.ne.s32.totalorder %s425, %s426
      %p438 = scmp.eq.s32.totalorder %s82, 3
      %p439 = por %p437, %p438
      %p441 = scmp.ne.s32.totalorder %s426, %s440
      %p442 = scmp.eq.s32.totalorder %s82, 0
      %p443 = por %p441, %p442
      %s445 = sadd.s32 %s444, 1
      %p448 = scmp.eq.s32.totalorder %s76, 3
      %p449 = scmp.ne.s32.totalorder %s444, %s446
      %p450 = scmp.eq.s32.totalorder %s76, 0
      %p451 = por %p449, %p450
      %p452 = scmp.ne.s32.totalorder %s444, %s446
      %p453 = scmp.eq.s32.totalorder %s81, 3
      %p454 = por %p452, %p453
      %p455 = scmp.ne.s32.totalorder %s446, %s447
      %p456 = scmp.eq.s32.totalorder %s81, 0
      %p457 = por %p455, %p456
      %p458 = scmp.ne.s32.totalorder %s446, %s447
      %p459 = scmp.eq.s32.totalorder %s82, 3
      %p460 = por %p458, %p459
      %p462 = scmp.ne.s32.totalorder %s447, %s461
      %p463 = scmp.eq.s32.totalorder %s82, 0
      %p464 = por %p462, %p463
      %s466 = sadd.s32 %s465, 1
      %p469 = scmp.eq.s32.totalorder %s76, 3
      %p470 = scmp.ne.s32.totalorder %s465, %s467
      %p471 = scmp.eq.s32.totalorder %s76, 0
      %p472 = por %p470, %p471
      %p473 = scmp.ne.s32.totalorder %s465, %s467
      %p474 = scmp.eq.s32.totalorder %s81, 3
      %p475 = por %p473, %p474
      %p476 = scmp.ne.s32.totalorder %s467, %s468
      %p477 = scmp.eq.s32.totalorder %s81, 0
      %p478 = por %p476, %p477
      %p479 = scmp.ne.s32.totalorder %s467, %s468
      %p480 = scmp.eq.s32.totalorder %s82, 3
      %p481 = por %p479, %p480
      %p483 = scmp.ne.s32.totalorder %s468, %s482
      %p484 = scmp.eq.s32.totalorder %s82, 0
      %p485 = por %p483, %p484
      %s487 = sadd.s32 %s486, 1
      %p490 = scmp.eq.s32.totalorder %s76, 3
      %p491 = scmp.ne.s32.totalorder %s486, %s488
      %p492 = scmp.eq.s32.totalorder %s76, 0
      %p493 = por %p491, %p492
      %p494 = scmp.ne.s32.totalorder %s486, %s488
      %p495 = scmp.eq.s32.totalorder %s81, 3
      %p496 = por %p494, %p495
      %p497 = scmp.ne.s32.totalorder %s488, %s489
      %p498 = scmp.eq.s32.totalorder %s81, 0
      %p499 = por %p497, %p498
      %p500 = scmp.ne.s32.totalorder %s488, %s489
      %p501 = scmp.eq.s32.totalorder %s82, 3
      %p502 = por %p500, %p501
      %p504 = scmp.ne.s32.totalorder %s489, %s503
      %p505 = scmp.eq.s32.totalorder %s82, 0
      %p506 = por %p504, %p505
      %s508 = sadd.s32 %s507, 1
      %p511 = scmp.eq.s32.totalorder %s76, 3
      %p512 = scmp.ne.s32.totalorder %s507, %s509
      %p513 = scmp.eq.s32.totalorder %s76, 0
      %p514 = por %p512, %p513
      %p515 = scmp.ne.s32.totalorder %s507, %s509
      %p516 = scmp.eq.s32.totalorder %s81, 3
      %p517 = por %p515, %p516
      %p518 = scmp.ne.s32.totalorder %s509, %s510
      %p519 = scmp.eq.s32.totalorder %s81, 0
      %p520 = por %p518, %p519
      %p521 = scmp.ne.s32.totalorder %s509, %s510
      %p522 = scmp.eq.s32.totalorder %s82, 3
      %p523 = por %p521, %p522
      %p525 = scmp.ne.s32.totalorder %s510, %s524
      %p526 = scmp.eq.s32.totalorder %s82, 0
      %p527 = por %p525, %p526
      %s529 = sadd.s32 %s528, 1
      %p532 = scmp.eq.s32.totalorder %s76, 3
      %p533 = scmp.ne.s32.totalorder %s528, %s530
      %p534 = scmp.eq.s32.totalorder %s76, 0
      %p535 = por %p533, %p534
      %p536 = scmp.ne.s32.totalorder %s528, %s530
      %p537 = scmp.eq.s32.totalorder %s81, 3
      %p538 = por %p536, %p537
      %p539 = scmp.ne.s32.totalorder %s530, %s531
      %p540 = scmp.eq.s32.totalorder %s81, 0
      %p541 = por %p539, %p540
      %p542 = scmp.ne.s32.totalorder %s530, %s531
      %p543 = scmp.eq.s32.totalorder %s82, 3
      %p544 = por %p542, %p543
      %p546 = scmp.ne.s32.totalorder %s531, %s545
      %p547 = scmp.eq.s32.totalorder %s82, 0
      %p548 = por %p546, %p547
      %s550 = sadd.s32 %s549, 1
      %p553 = scmp.eq.s32.totalorder %s76, 3
      %p554 = scmp.ne.s32.totalorder %s549, %s551
      %p555 = scmp.eq.s32.totalorder %s76, 0
      %p556 = por %p554, %p555
      %p557 = scmp.ne.s32.totalorder %s549, %s551
      %p558 = scmp.eq.s32.totalorder %s81, 3
      %p559 = por %p557, %p558
      %p560 = scmp.ne.s32.totalorder %s551, %s552
      %p561 = scmp.eq.s32.totalorder %s81, 0
      %p562 = por %p560, %p561
      %p563 = scmp.ne.s32.totalorder %s551, %s552
      %p564 = scmp.eq.s32.totalorder %s82, 3
      %p565 = por %p563, %p564
      %p567 = scmp.ne.s32.totalorder %s552, %s566
      %p568 = scmp.eq.s32.totalorder %s82, 0
      %p569 = por %p567, %p568
      %s571 = sadd.s32 %s570, 1
      %p574 = scmp.eq.s32.totalorder %s76, 3
      %p575 = scmp.ne.s32.totalorder %s570, %s572
      %p576 = scmp.eq.s32.totalorder %s76, 0
      %p577 = por %p575, %p576
      %p578 = scmp.ne.s32.totalorder %s570, %s572
      %p579 = scmp.eq.s32.totalorder %s81, 3
      %p580 = por %p578, %p579
      %p581 = scmp.ne.s32.totalorder %s572, %s573
      %p582 = scmp.eq.s32.totalorder %s81, 0
      %p583 = por %p581, %p582
      %p584 = scmp.ne.s32.totalorder %s572, %s573
      %p585 = scmp.eq.s32.totalorder %s82, 3
      %p586 = por %p584, %p585
      %p588 = scmp.ne.s32.totalorder %s573, %s587
      %p589 = scmp.eq.s32.totalorder %s82, 0
      %p590 = por %p588, %p589
      %s592 = sadd.s32 %s591, 1
      %p595 = scmp.eq.s32.totalorder %s76, 3
      %p596 = scmp.ne.s32.totalorder %s591, %s593
      %p597 = scmp.eq.s32.totalorder %s76, 0
      %p598 = por %p596, %p597
      %p599 = scmp.ne.s32.totalorder %s591, %s593
      %p600 = scmp.eq.s32.totalorder %s81, 3
      %p601 = por %p599, %p600
      %p602 = scmp.ne.s32.totalorder %s593, %s594
      %p603 = scmp.eq.s32.totalorder %s81, 0
      %p604 = por %p602, %p603
      %p605 = scmp.ne.s32.totalorder %s593, %s594
      %p606 = scmp.eq.s32.totalorder %s82, 3
      %p607 = por %p605, %p606
      %p609 = scmp.ne.s32.totalorder %s594, %s608
      %p610 = scmp.eq.s32.totalorder %s82, 0
      %p611 = por %p609, %p610
      %s613 = sadd.s32 %s612, 1
      %p616 = scmp.eq.s32.totalorder %s76, 3
      %p617 = scmp.ne.s32.totalorder %s612, %s614
      %p618 = scmp.eq.s32.totalorder %s76, 0
      %p619 = por %p617, %p618
      %p620 = scmp.ne.s32.totalorder %s612, %s614
      %p621 = scmp.eq.s32.totalorder %s81, 3
      %p622 = por %p620, %p621
      %p623 = scmp.ne.s32.totalorder %s614, %s615
      %p624 = scmp.eq.s32.totalorder %s81, 0
      %p625 = por %p623, %p624
      %p626 = scmp.ne.s32.totalorder %s614, %s615
      %p627 = scmp.eq.s32.totalorder %s82, 3
      %p628 = por %p626, %p627
      %p630 = scmp.ne.s32.totalorder %s615, %s629
      %p631 = scmp.eq.s32.totalorder %s82, 0
      %p632 = por %p630, %p631
      %s634 = sadd.s32 %s633, 1
      %p637 = scmp.eq.s32.totalorder %s76, 3
      %p638 = scmp.ne.s32.totalorder %s633, %s635
      %p639 = scmp.eq.s32.totalorder %s76, 0
      %p640 = por %p638, %p639
      %p641 = scmp.ne.s32.totalorder %s633, %s635
      %p642 = scmp.eq.s32.totalorder %s81, 3
      %p643 = por %p641, %p642
      %p644 = scmp.ne.s32.totalorder %s635, %s636
      %p645 = scmp.eq.s32.totalorder %s81, 0
      %p646 = por %p644, %p645
      %p647 = scmp.ne.s32.totalorder %s635, %s636
      %p648 = scmp.eq.s32.totalorder %s82, 3
      %p649 = por %p647, %p648
      %p651 = scmp.ne.s32.totalorder %s636, %s650
      %p652 = scmp.eq.s32.totalorder %s82, 0
      %p653 = por %p651, %p652
      %s655 = sadd.s32 %s654, 1
      %p658 = scmp.eq.s32.totalorder %s76, 3
      %p659 = scmp.ne.s32.totalorder %s654, %s656
      %p660 = scmp.eq.s32.totalorder %s76, 0
      %p661 = por %p659, %p660
      %p662 = scmp.ne.s32.totalorder %s654, %s656
      %p663 = scmp.eq.s32.totalorder %s81, 3
      %p664 = por %p662, %p663
      %p665 = scmp.ne.s32.totalorder %s656, %s657
      %p666 = scmp.eq.s32.totalorder %s81, 0
      %p667 = por %p665, %p666
      %p668 = scmp.ne.s32.totalorder %s656, %s657
      %p669 = scmp.eq.s32.totalorder %s82, 3
      %p670 = por %p668, %p669
      %p672 = scmp.ne.s32.totalorder %s657, %s671
      %p673 = scmp.eq.s32.totalorder %s82, 0
      %p674 = por %p672, %p673
      %s676 = sadd.s32 %s675, 1
      %p679 = scmp.eq.s32.totalorder %s76, 3
      %p680 = scmp.ne.s32.totalorder %s675, %s677
      %p681 = scmp.eq.s32.totalorder %s76, 0
      %p682 = por %p680, %p681
      %p683 = scmp.ne.s32.totalorder %s675, %s677
      %p684 = scmp.eq.s32.totalorder %s81, 3
      %p685 = por %p683, %p684
      %p686 = scmp.ne.s32.totalorder %s677, %s678
      %p687 = scmp.eq.s32.totalorder %s81, 0
      %p688 = por %p686, %p687
      %p689 = scmp.ne.s32.totalorder %s677, %s678
      %p690 = scmp.eq.s32.totalorder %s82, 3
      %p691 = por %p689, %p690
      %p693 = scmp.ne.s32.totalorder %s678, %s692
      %p694 = scmp.eq.s32.totalorder %s82, 0
      %p695 = por %p693, %p694
      %s697 = sadd.s32 %s696, 1
      %p700 = scmp.eq.s32.totalorder %s76, 3
      %p701 = scmp.ne.s32.totalorder %s696, %s698
      %p702 = scmp.eq.s32.totalorder %s76, 0
      %p703 = por %p701, %p702
      %p704 = scmp.ne.s32.totalorder %s696, %s698
      %p705 = scmp.eq.s32.totalorder %s81, 3
      %p706 = por %p704, %p705
      %p707 = scmp.ne.s32.totalorder %s698, %s699
      %p708 = scmp.eq.s32.totalorder %s81, 0
      %p709 = por %p707, %p708
      %p710 = scmp.ne.s32.totalorder %s698, %s699
      %p711 = scmp.eq.s32.totalorder %s82, 3
      %p712 = por %p710, %p711
      %p714 = scmp.ne.s32.totalorder %s699, %s713
      %p715 = scmp.eq.s32.totalorder %s82, 0
      %p716 = por %p714, %p715
      %s718 = sadd.s32 %s717, 1
      %p721 = scmp.eq.s32.totalorder %s76, 3
      %p722 = scmp.ne.s32.totalorder %s717, %s719
      %p723 = scmp.eq.s32.totalorder %s76, 0
      %p724 = por %p722, %p723
      %p725 = scmp.ne.s32.totalorder %s717, %s719
      %p726 = scmp.eq.s32.totalorder %s81, 3
      %p727 = por %p725, %p726
      %p728 = scmp.ne.s32.totalorder %s719, %s720
      %p729 = scmp.eq.s32.totalorder %s81, 0
      %p730 = por %p728, %p729
      %p731 = scmp.ne.s32.totalorder %s719, %s720
      %p732 = scmp.eq.s32.totalorder %s82, 3
      %p733 = por %p731, %p732
      %p735 = scmp.ne.s32.totalorder %s720, %s734
      %p736 = scmp.eq.s32.totalorder %s82, 0
      %p737 = por %p735, %p736
      %s739 = sadd.s32 %s738, 1
      %p742 = scmp.eq.s32.totalorder %s76, 3
      %p743 = scmp.ne.s32.totalorder %s738, %s740
      %p744 = scmp.eq.s32.totalorder %s76, 0
      %p745 = por %p743, %p744
      %p746 = scmp.ne.s32.totalorder %s738, %s740
      %p747 = scmp.eq.s32.totalorder %s81, 3
      %p748 = por %p746, %p747
      %p749 = scmp.ne.s32.totalorder %s740, %s741
      %p750 = scmp.eq.s32.totalorder %s81, 0
      %p751 = por %p749, %p750
      %p752 = scmp.ne.s32.totalorder %s740, %s741
      %p753 = scmp.eq.s32.totalorder %s82, 3
      %p754 = por %p752, %p753
      %p756 = scmp.ne.s32.totalorder %s741, %s755
      %p757 = scmp.eq.s32.totalorder %s82, 0
      %p758 = por %p756, %p757
      %s760 = sadd.s32 %s759, 1
      %p763 = scmp.eq.s32.totalorder %s76, 3
      %p764 = scmp.ne.s32.totalorder %s759, %s761
      %p765 = scmp.eq.s32.totalorder %s76, 0
      %p766 = por %p764, %p765
      %p767 = scmp.ne.s32.totalorder %s759, %s761
      %p768 = scmp.eq.s32.totalorder %s81, 3
      %p769 = por %p767, %p768
      %p770 = scmp.ne.s32.totalorder %s761, %s762
      %p771 = scmp.eq.s32.totalorder %s81, 0
      %p772 = por %p770, %p771
      %p773 = scmp.ne.s32.totalorder %s761, %s762
      %p774 = scmp.eq.s32.totalorder %s82, 3
      %p775 = por %p773, %p774
      %p777 = scmp.ne.s32.totalorder %s762, %s776
      %p778 = scmp.eq.s32.totalorder %s82, 0
      %p779 = por %p777, %p778
      %s780 = ssub.s32 %s83, %s95
      %s781 = ssub.s32 %s84, %s91
      %s782 = sor.u32 %s780, %s781
      %p783 = scmp.eq.s32.totalorder %s782, 0
      %s785 = sadd.s32 %s784, 1
      %s786 = scalar_select %p783, %s784, %s785
      %p789 = pneg %p783
      %p790 = scmp.eq.s32.totalorder %s76, 3
      %p791 = por %p789, %p790
      %p792 = scmp.ne.s32.totalorder %s784, %s787
      %p793 = scmp.eq.s32.totalorder %s76, 0
      %p794 = por %p792, %p793
      %p795 = scmp.ne.s32.totalorder %s784, %s787
      %p796 = scmp.eq.s32.totalorder %s81, 3
      %p797 = por %p795, %p796
      %p798 = scmp.ne.s32.totalorder %s787, %s788
      %p799 = scmp.eq.s32.totalorder %s81, 0
      %p800 = por %p798, %p799
      %p801 = scmp.ne.s32.totalorder %s787, %s788
      %p802 = scmp.eq.s32.totalorder %s82, 3
      %p803 = por %p801, %p802
      %p805 = scmp.ne.s32.totalorder %s788, %s804
      %p806 = scmp.eq.s32.totalorder %s82, 0
      %p807 = por %p805, %p806
      %p808 = scmp.le.s32.totalorder 1, %s76
      %p809 = scmp.lt.s32.totalorder %s76, 5
      %p810 = pnand %p808, %p809
      %p811 = pneg %p810
      // Predicated region
      $region9: #{tpu_custom_call.1} parent=5 // pred_check
        _
      $region10: #{tpu_custom_call.1} parent=5 // pred_check_branch
        %813 = sbr.rel (%p810) target = $region12
      $region11: #{tpu_custom_call.1} parent=5 // pred_region
        %s814 = ssub.s32 %s76, 1
        // Predicated region
        $region13: #{tpu_custom_call.1} parent=11 // pred_check
          %p815 = pneg %p205
        $region14: #{tpu_custom_call.1} parent=11 // pred_check_branch
          %817 = sbr.rel (%p815) target = $region16
        $region15: #{tpu_custom_call.1} parent=11 // pred_region
          _
        $region16: #{tpu_custom_call.1} parent=11 // pred_fallthru
          _
        // Predicated region
        $region17: #{tpu_custom_call.1} parent=11 // pred_check
          %p818 = pneg %p226
        $region18: #{tpu_custom_call.1} parent=11 // pred_check_branch
          %820 = sbr.rel (%p818) target = $region20
        $region19: #{tpu_custom_call.1} parent=11 // pred_region
          _
        $region20: #{tpu_custom_call.1} parent=11 // pred_fallthru
          _
        // Predicated region
        $region21: #{tpu_custom_call.1} parent=11 // pred_check
          %p821 = pneg %p247
        $region22: #{tpu_custom_call.1} parent=11 // pred_check_branch
          %823 = sbr.rel (%p821) target = $region24
        $region23: #{tpu_custom_call.1} parent=11 // pred_region
          _
        $region24: #{tpu_custom_call.1} parent=11 // pred_fallthru
          _
        // Predicated region
        $region25: #{tpu_custom_call.1} parent=11 // pred_check
          %p824 = pneg %p268
        $region26: #{tpu_custom_call.1} parent=11 // pred_check_branch
          %826 = sbr.rel (%p824) target = $region28
        $region27: #{tpu_custom_call.1} parent=11 // pred_region
          _
        $region28: #{tpu_custom_call.1} parent=11 // pred_fallthru
          _
        // Predicated region
        $region29: #{tpu_custom_call.1} parent=11 // pred_check
          %p827 = pneg %p289
        $region30: #{tpu_custom_call.1} parent=11 // pred_check_branch
          %829 = sbr.rel (%p827) target = $region32
        $region31: #{tpu_custom_call.1} parent=11 // pred_region
          _
        $region32: #{tpu_custom_call.1} parent=11 // pred_fallthru
          _
        // Predicated region
        $region33: #{tpu_custom_call.1} parent=11 // pred_check
          %p830 = pneg %p310
        $region34: #{tpu_custom_call.1} parent=11 // pred_check_branch
          %832 = sbr.rel (%p830) target = $region36
        $region35: #{tpu_custom_call.1} parent=11 // pred_region
          _
        $region36: #{tpu_custom_call.1} parent=11 // pred_fallthru
          _
        // Predicated region
        $region37: #{tpu_custom_call.1} parent=11 // pred_check
          %p833 = pneg %p331
        $region38: #{tpu_custom_call.1} parent=11 // pred_check_branch
          %835 = sbr.rel (%p833) target = $region40
        $region39: #{tpu_custom_call.1} parent=11 // pred_region
          _
        $region40: #{tpu_custom_call.1} parent=11 // pred_fallthru
          _
        // Predicated region
        $region41: #{tpu_custom_call.1} parent=11 // pred_check
          %p836 = pneg %p352
        $region42: #{tpu_custom_call.1} parent=11 // pred_check_branch
          %838 = sbr.rel (%p836) target = $region44
        $region43: #{tpu_custom_call.1} parent=11 // pred_region
          _
        $region44: #{tpu_custom_call.1} parent=11 // pred_fallthru
          _
        // Predicated region
        $region45: #{tpu_custom_call.1} parent=11 // pred_check
          %p839 = pneg %p373
        $region46: #{tpu_custom_call.1} parent=11 // pred_check_branch
          %841 = sbr.rel (%p839) target = $region48
        $region47: #{tpu_custom_call.1} parent=11 // pred_region
          _
        $region48: #{tpu_custom_call.1} parent=11 // pred_fallthru
          _
        // Predicated region
        $region49: #{tpu_custom_call.1} parent=11 // pred_check
          %p842 = pneg %p394
        $region50: #{tpu_custom_call.1} parent=11 // pred_check_branch
          %844 = sbr.rel (%p842) target = $region52
        $region51: #{tpu_custom_call.1} parent=11 // pred_region
          _
        $region52: #{tpu_custom_call.1} parent=11 // pred_fallthru
          _
        // Predicated region
        $region53: #{tpu_custom_call.1} parent=11 // pred_check
          %p845 = pneg %p415
        $region54: #{tpu_custom_call.1} parent=11 // pred_check_branch
          %847 = sbr.rel (%p845) target = $region56
        $region55: #{tpu_custom_call.1} parent=11 // pred_region
          _
        $region56: #{tpu_custom_call.1} parent=11 // pred_fallthru
          _
        // Predicated region
        $region57: #{tpu_custom_call.1} parent=11 // pred_check
          %p848 = pneg %p436
        $region58: #{tpu_custom_call.1} parent=11 // pred_check_branch
          %850 = sbr.rel (%p848) target = $region60
        $region59: #{tpu_custom_call.1} parent=11 // pred_region
          _
        $region60: #{tpu_custom_call.1} parent=11 // pred_fallthru
          _
        // Predicated region
        $region61: #{tpu_custom_call.1} parent=11 // pred_check
          %p851 = pneg %p457
        $region62: #{tpu_custom_call.1} parent=11 // pred_check_branch
          %853 = sbr.rel (%p851) target = $region64
        $region63: #{tpu_custom_call.1} parent=11 // pred_region
          _
        $region64: #{tpu_custom_call.1} parent=11 // pred_fallthru
          _
        // Predicated region
        $region65: #{tpu_custom_call.1} parent=11 // pred_check
          %p854 = pneg %p478
        $region66: #{tpu_custom_call.1} parent=11 // pred_check_branch
          %856 = sbr.rel (%p854) target = $region68
        $region67: #{tpu_custom_call.1} parent=11 // pred_region
          _
        $region68: #{tpu_custom_call.1} parent=11 // pred_fallthru
          _
        // Predicated region
        $region69: #{tpu_custom_call.1} parent=11 // pred_check
          %p857 = pneg %p499
        $region70: #{tpu_custom_call.1} parent=11 // pred_check_branch
          %859 = sbr.rel (%p857) target = $region72
        $region71: #{tpu_custom_call.1} parent=11 // pred_region
          _
        $region72: #{tpu_custom_call.1} parent=11 // pred_fallthru
          _
        // Predicated region
        $region73: #{tpu_custom_call.1} parent=11 // pred_check
          %p860 = pneg %p520
        $region74: #{tpu_custom_call.1} parent=11 // pred_check_branch
          %862 = sbr.rel (%p860) target = $region76
        $region75: #{tpu_custom_call.1} parent=11 // pred_region
          _
        $region76: #{tpu_custom_call.1} parent=11 // pred_fallthru
          _
        // Predicated region
        $region77: #{tpu_custom_call.1} parent=11 // pred_check
          %p863 = pneg %p541
        $region78: #{tpu_custom_call.1} parent=11 // pred_check_branch
          %865 = sbr.rel (%p863) target = $region80
        $region79: #{tpu_custom_call.1} parent=11 // pred_region
          _
        $region80: #{tpu_custom_call.1} parent=11 // pred_fallthru
          _
        // Predicated region
        $region81: #{tpu_custom_call.1} parent=11 // pred_check
          %p866 = pneg %p562
        $region82: #{tpu_custom_call.1} parent=11 // pred_check_branch
          %868 = sbr.rel (%p866) target = $region84
        $region83: #{tpu_custom_call.1} parent=11 // pred_region
          _
        $region84: #{tpu_custom_call.1} parent=11 // pred_fallthru
          _
        // Predicated region
        $region85: #{tpu_custom_call.1} parent=11 // pred_check
          %p869 = pneg %p583
        $region86: #{tpu_custom_call.1} parent=11 // pred_check_branch
          %871 = sbr.rel (%p869) target = $region88
        $region87: #{tpu_custom_call.1} parent=11 // pred_region
          _
        $region88: #{tpu_custom_call.1} parent=11 // pred_fallthru
          _
        // Predicated region
        $region89: #{tpu_custom_call.1} parent=11 // pred_check
          %p872 = pneg %p604
        $region90: #{tpu_custom_call.1} parent=11 // pred_check_branch
          %874 = sbr.rel (%p872) target = $region92
        $region91: #{tpu_custom_call.1} parent=11 // pred_region
          _
        $region92: #{tpu_custom_call.1} parent=11 // pred_fallthru
          _
        // Predicated region
        $region93: #{tpu_custom_call.1} parent=11 // pred_check
          %p875 = pneg %p625
        $region94: #{tpu_custom_call.1} parent=11 // pred_check_branch
          %877 = sbr.rel (%p875) target = $region96
        $region95: #{tpu_custom_call.1} parent=11 // pred_region
          _
        $region96: #{tpu_custom_call.1} parent=11 // pred_fallthru
          _
        // Predicated region
        $region97: #{tpu_custom_call.1} parent=11 // pred_check
          %p878 = pneg %p646
        $region98: #{tpu_custom_call.1} parent=11 // pred_check_branch
          %880 = sbr.rel (%p878) target = $region100
        $region99: #{tpu_custom_call.1} parent=11 // pred_region
          _
        $region100: #{tpu_custom_call.1} parent=11 // pred_fallthru
          _
        // Predicated region
        $region101: #{tpu_custom_call.1} parent=11 // pred_check
          %p881 = pneg %p667
        $region102: #{tpu_custom_call.1} parent=11 // pred_check_branch
          %883 = sbr.rel (%p881) target = $region104
        $region103: #{tpu_custom_call.1} parent=11 // pred_region
          _
        $region104: #{tpu_custom_call.1} parent=11 // pred_fallthru
          _
        // Predicated region
        $region105: #{tpu_custom_call.1} parent=11 // pred_check
          %p884 = pneg %p688
        $region106: #{tpu_custom_call.1} parent=11 // pred_check_branch
          %886 = sbr.rel (%p884) target = $region108
        $region107: #{tpu_custom_call.1} parent=11 // pred_region
          _
        $region108: #{tpu_custom_call.1} parent=11 // pred_fallthru
          _
        // Predicated region
        $region109: #{tpu_custom_call.1} parent=11 // pred_check
          %p887 = pneg %p709
        $region110: #{tpu_custom_call.1} parent=11 // pred_check_branch
          %889 = sbr.rel (%p887) target = $region112
        $region111: #{tpu_custom_call.1} parent=11 // pred_region
          _
        $region112: #{tpu_custom_call.1} parent=11 // pred_fallthru
          _
        // Predicated region
        $region113: #{tpu_custom_call.1} parent=11 // pred_check
          %p890 = pneg %p730
        $region114: #{tpu_custom_call.1} parent=11 // pred_check_branch
          %892 = sbr.rel (%p890) target = $region116
        $region115: #{tpu_custom_call.1} parent=11 // pred_region
          _
        $region116: #{tpu_custom_call.1} parent=11 // pred_fallthru
          _
        // Predicated region
        $region117: #{tpu_custom_call.1} parent=11 // pred_check
          %p893 = pneg %p751
        $region118: #{tpu_custom_call.1} parent=11 // pred_check_branch
          %895 = sbr.rel (%p893) target = $region120
        $region119: #{tpu_custom_call.1} parent=11 // pred_region
          _
        $region120: #{tpu_custom_call.1} parent=11 // pred_fallthru
          _
        // Predicated region
        $region121: #{tpu_custom_call.1} parent=11 // pred_check
          %p896 = pneg %p772
        $region122: #{tpu_custom_call.1} parent=11 // pred_check_branch
          %898 = sbr.rel (%p896) target = $region124
        $region123: #{tpu_custom_call.1} parent=11 // pred_region
          _
        $region124: #{tpu_custom_call.1} parent=11 // pred_fallthru
          _
      $region12: #{tpu_custom_call.1} parent=5 // pred_fallthru
        _
      %p899 = scmp.lt.s32.totalorder %s76, 4
      // Predicated region
      $region125: #{tpu_custom_call.1} parent=5 // pred_check
        %p900 = pneg %p899
      $region126: #{tpu_custom_call.1} parent=5 // pred_check_branch
        %902 = sbr.rel (%p900) target = $region128
      $region127: #{tpu_custom_call.1} parent=5 // pred_region
        // Predicated region
        $region129: #{tpu_custom_call.1} parent=127 // pred_check
          %p903 = pneg %p116
        $region130: #{tpu_custom_call.1} parent=127 // pred_check_branch
          %905 = sbr.rel (%p903) target = $region132
        $region131: #{tpu_custom_call.1} parent=127 // pred_region
          %s906 = ssub.s32 %s84, 1
          %p907 = scmp.gt.s32.totalorder %s906, 0
          %s908 = scalar_select %p907, %s906, 0
          %s909 = smul.u32 16, %s908
          %p910 = scmp.lt.s32.totalorder %s83, 1
          %s911 = scalar_select %p910, %s83, 1
          %p912 = scmp.lt.s32.totalorder %s909, 31
          %s913 = scalar_select %p912, %s909, 31
          %s914 = smul.addr %s911, 32
          %s915 = sadd.s32 %s913, %s914
          %s916 = smul.addr %s915, 8
          %s917 = scalar_lea.vmem %s1, %s916
          %s918 = ssub.s32 %s84, 1
          %p919 = scmp.gt.s32.totalorder %s918, 0
          %s920 = scalar_select %p919, %s918, 0
          %s921 = smul.u32 16, %s920
        $region132: #{tpu_custom_call.1} parent=127 // pred_fallthru
          _
        // Predicated region
        $region133: #{tpu_custom_call.1} parent=127 // pred_check
          %p922 = pneg %p144
        $region134: #{tpu_custom_call.1} parent=127 // pred_check_branch
          %924 = sbr.rel (%p922) target = $region136
        $region135: #{tpu_custom_call.1} parent=127 // pred_region
          %s925 = smul.u32 16, %s84
          %p926 = scmp.lt.s32.totalorder %s83, 1
          %s927 = scalar_select %p926, %s83, 1
          %p928 = scmp.lt.s32.totalorder %s925, 31
          %s929 = scalar_select %p928, %s925, 31
          %s930 = smul.addr %s927, 32
          %s931 = sadd.s32 %s929, %s930
          %s932 = smul.addr %s931, 8
          %s933 = scalar_lea.vmem %s3, %s932
          %s934 = smul.u32 16, %s84
        $region136: #{tpu_custom_call.1} parent=127 // pred_fallthru
          _
        // Predicated region
        $region137: #{tpu_custom_call.1} parent=127 // pred_check
          %p935 = pneg %p178
        $region138: #{tpu_custom_call.1} parent=127 // pred_check_branch
          %937 = sbr.rel (%p935) target = $region140
        $region139: #{tpu_custom_call.1} parent=127 // pred_region
          %s938 = sadd.s32 %s84, 1
          %p939 = scmp.lt.s32.totalorder %s938, 1
          %s940 = scalar_select %p939, %s938, 1
          %s941 = smul.u32 16, %s940
          %p942 = scmp.lt.s32.totalorder %s83, 1
          %s943 = scalar_select %p942, %s83, 1
          %p944 = scmp.lt.s32.totalorder %s941, 31
          %s945 = scalar_select %p944, %s941, 31
          %s946 = smul.addr %s943, 32
          %s947 = sadd.s32 %s945, %s946
          %s948 = smul.addr %s947, 8
          %s949 = scalar_lea.vmem %s5, %s948
          %s950 = sadd.s32 %s84, 1
          %p951 = scmp.lt.s32.totalorder %s950, 1
          %s952 = scalar_select %p951, %s950, 1
          %s953 = smul.u32 16, %s952
        $region140: #{tpu_custom_call.1} parent=127 // pred_fallthru
          _
      $region128: #{tpu_custom_call.1} parent=5 // pred_fallthru
        _
      %p954 = scmp.le.s32.totalorder 1, %s76
      %p955 = scmp.lt.s32.totalorder %s76, 5
      %p956 = pnand %p954, %p955
      %p957 = pneg %p956
      // Predicated region
      $region141: #{tpu_custom_call.1} parent=5 // pred_check
        _
      $region142: #{tpu_custom_call.1} parent=5 // pred_check_branch
        %959 = sbr.rel (%p956) target = $region144
      $region143: #{tpu_custom_call.1} parent=5 // pred_region
        %s960 = ssub.s32 %s76, 1
        %s961 = ssub.s32 %s86, 1
        %p962 = scmp.gt.s32.totalorder %s961, 0
        %s963 = scalar_select %p962, %s961, 0
        %s964 = smul.u32 16, %s963
        %p965 = scmp.lt.s32.totalorder %s85, 1
        %s966 = scalar_select %p965, %s85, 1
        %p967 = scmp.lt.s32.totalorder %s964, 31
        %s968 = scalar_select %p967, %s964, 31
        %s969 = smul.addr %s966, 32
        %s970 = sadd.s32 %s968, %s969
        %s971 = smul.addr %s970, 8
        %s972 = scalar_lea.vmem %s1, %s971
        %p973 = pneg %p122
        %p974 = pneg %p119
        %s975 = smul.u32 16, %s86
        %p976 = scmp.lt.s32.totalorder %s85, 1
        %s977 = scalar_select %p976, %s85, 1
        %p978 = scmp.lt.s32.totalorder %s975, 31
        %s979 = scalar_select %p978, %s975, 31
        %s980 = smul.addr %s977, 32
        %s981 = sadd.s32 %s979, %s980
        %s982 = smul.addr %s981, 8
        %s983 = scalar_lea.vmem %s3, %s982
        %p984 = pneg %p150
        %p985 = pneg %p147
        %s986 = sadd.s32 %s86, 1
        %p987 = scmp.lt.s32.totalorder %s986, 1
        %s988 = scalar_select %p987, %s986, 1
        %s989 = smul.u32 16, %s988
        %p990 = scmp.lt.s32.totalorder %s85, 1
        %s991 = scalar_select %p990, %s85, 1
        %p992 = scmp.lt.s32.totalorder %s989, 31
        %s993 = scalar_select %p992, %s989, 31
        %s994 = smul.addr %s991, 32
        %s995 = sadd.s32 %s993, %s994
        %s996 = smul.addr %s995, 8
        %s997 = scalar_lea.vmem %s5, %s996
        %p998 = pneg %p184
        %p999 = pneg %p181
        %p1000 = pneg %p205
        %p1001 = pneg %p202
        %p1002 = pneg %p226
        %p1003 = pneg %p223
        %p1004 = pneg %p247
        %p1005 = pneg %p244
        %p1006 = pneg %p268
        %p1007 = pneg %p265
        %p1008 = pneg %p289
        %p1009 = pneg %p286
        %p1010 = pneg %p310
        %p1011 = pneg %p307
        %p1012 = pneg %p331
        %p1013 = pneg %p328
        %p1014 = pneg %p352
        %p1015 = pneg %p349
        %p1016 = pneg %p373
        %p1017 = pneg %p370
        %p1018 = pneg %p394
        %p1019 = pneg %p391
        %p1020 = pneg %p415
        %p1021 = pneg %p412
        %p1022 = pneg %p436
        %p1023 = pneg %p433
        %p1024 = pneg %p457
        %p1025 = pneg %p454
        %p1026 = pneg %p478
        %p1027 = pneg %p475
        %p1028 = pneg %p499
        %p1029 = pneg %p496
        %p1030 = pneg %p520
        %p1031 = pneg %p517
        %p1032 = pneg %p541
        %p1033 = pneg %p538
        %p1034 = pneg %p562
        %p1035 = pneg %p559
        %p1036 = pneg %p583
        %p1037 = pneg %p580
        %p1038 = pneg %p604
        %p1039 = pneg %p601
        %p1040 = pneg %p625
        %p1041 = pneg %p622
        %p1042 = pneg %p646
        %p1043 = pneg %p643
        %p1044 = pneg %p667
        %p1045 = pneg %p664
        %p1046 = pneg %p688
        %p1047 = pneg %p685
        %p1048 = pneg %p709
        %p1049 = pneg %p706
        %p1050 = pneg %p730
        %p1051 = pneg %p727
        %p1052 = pneg %p751
        %p1053 = pneg %p748
        %p1054 = pneg %p772
        %p1055 = pneg %p769
        %p1056 = pneg %p800
        %p1057 = pneg %p797
        %s1058 = sand.u32 %s787, 1
        %s1059 = scalar_lea.sflag [#allocation5], %s1058
        %s1060 = sand.u32 %s787, 1
        %s1061 = scalar_lea.vmem [#allocation4], %s1060
        %s1062 = ssub.s32 %s86, 1
        %p1063 = scmp.gt.s32.totalorder %s1062, 0
        %s1064 = scalar_select %p1063, %s1062, 0
        %s1065 = smul.u32 16, %s1064
        %p1066 = scmp.lt.s32.totalorder %s85, 1
        %s1067 = scalar_select %p1066, %s85, 1
        %p1068 = scmp.lt.s32.totalorder %s1065, 31
        %s1069 = scalar_select %p1068, %s1065, 31
        %s1070 = smul.addr %s1067, 32
        %s1071 = sadd.s32 %s1069, %s1070
        %s1072 = smul.addr %s1071, 8
        %s1073 = scalar_lea.vmem %s1, %s1072
        %s1074 = ssub.s32 %s86, 1
        %p1075 = scmp.gt.s32.totalorder %s1074, 0
        %s1076 = scalar_select %p1075, %s1074, 0
        %s1077 = smul.u32 16, %s1076
        %s1078 = smul.u32 16, %s86
        %p1079 = scmp.lt.s32.totalorder %s85, 1
        %s1080 = scalar_select %p1079, %s85, 1
        %p1081 = scmp.lt.s32.totalorder %s1078, 31
        %s1082 = scalar_select %p1081, %s1078, 31
        %s1083 = smul.addr %s1080, 32
        %s1084 = sadd.s32 %s1082, %s1083
        %s1085 = smul.addr %s1084, 8
        %s1086 = scalar_lea.vmem %s3, %s1085
        %s1087 = smul.u32 16, %s86
        %s1088 = sadd.s32 %s86, 1
        %p1089 = scmp.lt.s32.totalorder %s1088, 1
        %s1090 = scalar_select %p1089, %s1088, 1
        %s1091 = smul.u32 16, %s1090
        %p1092 = scmp.lt.s32.totalorder %s85, 1
        %s1093 = scalar_select %p1092, %s85, 1
        %p1094 = scmp.lt.s32.totalorder %s1091, 31
        %s1095 = scalar_select %p1094, %s1091, 31
        %s1096 = smul.addr %s1093, 32
        %s1097 = sadd.s32 %s1095, %s1096
        %s1098 = smul.addr %s1097, 8
        %s1099 = scalar_lea.vmem %s5, %s1098
        %s1100 = sadd.s32 %s86, 1
        %p1101 = scmp.lt.s32.totalorder %s1100, 1
        %s1102 = scalar_select %p1101, %s1100, 1
        %s1103 = smul.u32 16, %s1102
        %v1105 = vld [vmem:[%s1073 + $0x68] sm:$0xff]
        %v1106 = vld [vmem:[%s1073 + $0x70] sm:$0xff]
        %v1107 = vld [vmem:[%s1073 + $0x78] sm:$0xff]
        %v1108 = vld [vmem:[%s1086] sm:$0xff]
        %v1109 = vld [vmem:[%s1086 + $0x8] sm:$0xff]
        %v1110 = vld [vmem:[%s1086 + $0x10] sm:$0xff]
        %v1111 = vld [vmem:[%s1086 + $0x18] sm:$0xff]
        %v1112 = vld [vmem:[%s1086 + $0x20] sm:$0xff]
        %v1113 = vld [vmem:[%s1086 + $0x28] sm:$0xff]
        %v1114 = vld [vmem:[%s1086 + $0x30] sm:$0xff]
        %v1115 = vld [vmem:[%s1086 + $0x38] sm:$0xff]
        %v1116 = vld [vmem:[%s1086 + $0x40] sm:$0xff]
        %v1117 = vld [vmem:[%s1086 + $0x48] sm:$0xff]
        %v1118 = vld [vmem:[%s1086 + $0x50] sm:$0xff]
        %v1119 = vld [vmem:[%s1086 + $0x58] sm:$0xff]
        %v1120 = vld [vmem:[%s1086 + $0x60] sm:$0xff]
        %v1121 = vld [vmem:[%s1086 + $0x68] sm:$0xff]
        %v1122 = vld [vmem:[%s1086 + $0x70] sm:$0xff]
        %v1123 = vld [vmem:[%s1086 + $0x78] sm:$0xff]
        %v1124 = vld [vmem:[%s1099] sm:$0xff]
        %v1125 = vld [vmem:[%s1099 + $0x8] sm:$0xff]
        %v1126 = vld [vmem:[%s1099 + $0x10] sm:$0xff]
        %vm1130 = vcmask 1041408
        %v1131 = vrot.slane %v1105, 6
        %v1132 = vrot.slane %v1106, 6
        %v1133 = vsel %vm1130, %v1131, %v1132
        %v1134 = vrot.slane %v1107, 6
        %v1135 = vsel %vm1130, %v1132, %v1134
        %v1155 = vrot.slane %v1108, 6
        %v1156 = vrot.slane %v1109, 6
        %v1157 = vsel %vm1130, %v1155, %v1156
        %v1158 = vrot.slane %v1110, 6
        %v1159 = vsel %vm1130, %v1156, %v1158
        %v1160 = vrot.slane %v1111, 6
        %v1161 = vsel %vm1130, %v1158, %v1160
        %v1162 = vrot.slane %v1112, 6
        %v1163 = vsel %vm1130, %v1160, %v1162
        %v1164 = vrot.slane %v1113, 6
        %v1165 = vsel %vm1130, %v1162, %v1164
        %v1166 = vrot.slane %v1114, 6
        %v1167 = vsel %vm1130, %v1164, %v1166
        %v1168 = vrot.slane %v1115, 6
        %v1169 = vsel %vm1130, %v1166, %v1168
        %v1170 = vrot.slane %v1116, 6
        %v1171 = vsel %vm1130, %v1168, %v1170
        %v1172 = vrot.slane %v1117, 6
        %v1173 = vsel %vm1130, %v1170, %v1172
        %v1174 = vrot.slane %v1118, 6
        %v1175 = vsel %vm1130, %v1172, %v1174
        %v1176 = vrot.slane %v1119, 6
        %v1177 = vsel %vm1130, %v1174, %v1176
        %v1178 = vrot.slane %v1120, 6
        %v1179 = vsel %vm1130, %v1176, %v1178
        %v1180 = vrot.slane %v1121, 6
        %v1181 = vsel %vm1130, %v1178, %v1180
        %v1182 = vrot.slane %v1122, 6
        %v1183 = vsel %vm1130, %v1180, %v1182
        %v1184 = vrot.slane %v1123, 6
        %v1185 = vsel %vm1130, %v1182, %v1184
        %v1206 = vrot.slane %v1124, 6
        %v1207 = vrot.slane %v1125, 6
        %v1208 = vsel %vm1130, %v1206, %v1207
        %v1209 = vrot.slane %v1126, 6
        %v1210 = vsel %vm1130, %v1207, %v1209
        %v1214 = vsel %vm1130, %v1134, %v1155
        %v1215 = vsel %vm1130, %v1184, %v1206
        %1216 = vxpose.xlu0.b32.start [1/16] %v1133, 128
        %1217 = vxpose.xlu0.b32.cont [2/16] %v1135, 128
        %1218 = vxpose.xlu0.b32.cont [3/16] %v1214, 128
        %1219 = vxpose.xlu0.b32.cont [4/16] %v1157, 128
        %1220 = vxpose.xlu0.b32.cont [5/16] %v1159, 128
        %1221 = vxpose.xlu0.b32.cont [6/16] %v1161, 128
        %1222 = vxpose.xlu0.b32.cont [7/16] %v1163, 128
        %1223 = vxpose.xlu0.b32.cont [8/16] %v1165, 128
        %1224 = vxpose.xlu0.b32.cont [9/16] %v1167, 128
        %1225 = vxpose.xlu0.b32.cont [10/16] %v1169, 128
        %1226 = vxpose.xlu0.b32.cont [11/16] %v1171, 128
        %1227 = vxpose.xlu0.b32.cont [12/16] %v1173, 128
        %1228 = vxpose.xlu0.b32.cont [13/16] %v1175, 128
        %1229 = vxpose.xlu0.b32.cont [14/16] %v1177, 128
        %1230 = vxpose.xlu0.b32.cont [15/16] %v1179, 128
        %1231 = vxpose.xlu0.b32.end [16/16] %v1181, 128
        %v1232 = vpop.trf.xlu0
        %v1233 = vpop.trf.xlu0
        %v1234 = vpop.trf.xlu0
        %v1235 = vpop.trf.xlu0
        %v1236 = vpop.trf.xlu0
        %v1237 = vpop.trf.xlu0
        %v1238 = vpop.trf.xlu0
        %v1239 = vpop.trf.xlu0
        %v1240 = vpop.trf.xlu0
        %v1241 = vpop.trf.xlu0
        %v1242 = vpop.trf.xlu0
        %v1243 = vpop.trf.xlu0
        %v1244 = vpop.trf.xlu0
        %v1245 = vpop.trf.xlu0
        %v1246 = vpop.trf.xlu0
        %v1247 = vpop.trf.xlu0
        %1248 = vxpose.xlu0.b32.start [1/16] %v1183, 128
        %1249 = vxpose.xlu0.b32.cont [2/16] %v1185, 128
        %1250 = vxpose.xlu0.b32.cont [3/16] %v1215, 128
        %1251 = vxpose.xlu0.b32.cont [4/16] %v1208, 128
        %1252 = vxpose.xlu0.b32.cont [5/16] %v1210, 128
        %1253 = vxpose.xlu0.b32.cont [6/16] 0.0, 128
        %1254 = vxpose.xlu0.b32.cont [7/16] 0.0, 128
        %1255 = vxpose.xlu0.b32.cont [8/16] 0.0, 128
        %1256 = vxpose.xlu0.b32.cont [9/16] 0.0, 128
        %1257 = vxpose.xlu0.b32.cont [10/16] 0.0, 128
        %1258 = vxpose.xlu0.b32.cont [11/16] 0.0, 128
        %1259 = vxpose.xlu0.b32.cont [12/16] 0.0, 128
        %1260 = vxpose.xlu0.b32.cont [13/16] 0.0, 128
        %1261 = vxpose.xlu0.b32.cont [14/16] 0.0, 128
        %1262 = vxpose.xlu0.b32.cont [15/16] 0.0, 128
        %1263 = vxpose.xlu0.b32.end [16/16] 0.0, 128
        %v1264 = vpop.trf.xlu0
        %v1265 = vpop.trf.xlu0
        %v1266 = vpop.trf.xlu0
        %v1267 = vpop.trf.xlu0
        %v1268 = vpop.trf.xlu0
        %v1269 = vpop.trf.xlu0
        %v1270 = vpop.trf.xlu0
        %v1271 = vpop.trf.xlu0
        %v1272 = vpop.trf.xlu0
        %v1273 = vpop.trf.xlu0
        %v1274 = vpop.trf.xlu0
        %v1275 = vpop.trf.xlu0
        %v1276 = vpop.trf.xlu0
        %v1277 = vpop.trf.xlu0
        %v1278 = vpop.trf.xlu0
        %v1279 = vpop.trf.xlu0
        %s1280 = smul.u32 %s86, 128
        %s1281 = ssub.s32 %s1280, 18
        %v1282 = vlaneseq
        %v1283 = vand.u32 %v1282, 127
        %v1284 = vadd.s32 %v1283, 128
        %v1285 = vstv %s1281
        %v1286 = vadd.s32 %v1285, %v1283
        %v1287 = vadd.s32 %v1285, %v1284
        %vm1288 = vcmp.ge.s32.totalorder %v1286, 0
        %vm1289 = vcmp.ge.s32.totalorder %v1287, 0
        %vm1290 = vcmp.lt.s32.totalorder %v1286, 192
        %vm1291 = vcmp.lt.s32.totalorder %v1287, 192
        %vm1292 = vmand %vm1288, %vm1290
        %vm1293 = vmand %vm1289, %vm1291
        %v1294 = vsel %vm1292, 1, 0
        %v1295 = vsel %vm1293, 1, 0
        %v1296 = vcvt.s32.f32 %v1294
        %v1297 = vcvt.s32.f32 %v1295
        %v1298 = vmul.f32 %v1232, %v1296
        %v1299 = vmul.f32 %v1264, %v1297
        %v1300 = vmul.f32 %v1233, %v1296
        %v1301 = vmul.f32 %v1265, %v1297
        %v1302 = vmul.f32 %v1234, %v1296
        %v1303 = vmul.f32 %v1266, %v1297
        %v1304 = vmul.f32 %v1235, %v1296
        %v1305 = vmul.f32 %v1267, %v1297
        %v1306 = vld [vmem:[%s7] sm:$0xff]
        %v1307 = vld [vmem:[%s7 + $0x8] sm:$0xf]
        %v1308 = vld [vmem:[%s7 + $0xc] sm:$0xff]
        %v1309 = vld [vmem:[%s7 + $0x14] sm:$0xf]
        %v1310 = vld [vmem:[%s7 + $0x18] sm:$0xff]
        %v1311 = vld [vmem:[%s7 + $0x20] sm:$0xf]
        %v1312 = vld [vmem:[%s7 + $0x24] sm:$0xff]
        %v1313 = vld [vmem:[%s7 + $0x2c] sm:$0xf]
        %v1314 = vld [vmem:[%s7 + $0x30] sm:$0xff]
        %v1315 = vld [vmem:[%s7 + $0x38] sm:$0xf]
        %v1316 = vld [vmem:[%s7 + $0x3c] sm:$0xff]
        %v1317 = vld [vmem:[%s7 + $0x44] sm:$0xf]
        %v1318 = vld [vmem:[%s7 + $0x48] sm:$0xff]
        %v1319 = vld [vmem:[%s7 + $0x50] sm:$0xf]
        %v1320 = vld [vmem:[%s7 + $0x54] sm:$0xff]
        %v1321 = vld [vmem:[%s7 + $0x5c] sm:$0xf]
        %v1322 = vld [vmem:[%s7 + $0x60] sm:$0xff]
        %v1323 = vld [vmem:[%s7 + $0x68] sm:$0xf]
        %v1324 = vld [vmem:[%s7 + $0x6c] sm:$0xff]
        %v1325 = vld [vmem:[%s7 + $0x74] sm:$0xf]
        %v1326 = vld [vmem:[%s9] sm:$0xff]
        %v1327 = vld [vmem:[%s9 + $0x8] sm:$0xff]
        %v1328 = vld [vmem:[%s9 + $0x10] sm:$0xff]
        %v1329 = vld [vmem:[%s9 + $0x18] sm:$0xff]
        %v1330 = vld [vmem:[%s9 + $0x20] sm:$0xff]
        %v1331 = vld [vmem:[%s9 + $0x28] sm:$0xff]
        %v1332 = vld [vmem:[%s9 + $0x30] sm:$0xff]
        %v1333 = vld [vmem:[%s9 + $0x38] sm:$0xff]
        %v1334 = vld [vmem:[%s9 + $0x40] sm:$0xff]
        %v1335 = vld [vmem:[%s9 + $0x48] sm:$0xff]
        %1344 = vrot.lane.b32.xlu0 %v1298, 5
        %v1345 = vpop.permute.xlu0 %1344
        %1346 = vrot.lane.b32.xlu0 %v1299, 5
        %v1347 = vpop.permute.xlu0 %1346
        %1348 = vrot.lane.b32.xlu0 %v1300, 5
        %v1349 = vpop.permute.xlu0 %1348
        %1350 = vrot.lane.b32.xlu0 %v1301, 5
        %v1351 = vpop.permute.xlu0 %1350
        %1352 = vrot.lane.b32.xlu0 %v1302, 5
        %v1353 = vpop.permute.xlu0 %1352
        %1354 = vrot.lane.b32.xlu0 %v1303, 5
        %v1355 = vpop.permute.xlu0 %1354
        %1356 = vrot.lane.b32.xlu0 %v1304, 5
        %v1357 = vpop.permute.xlu0 %1356
        %1358 = vrot.lane.b32.xlu0 %v1305, 5
        %v1359 = vpop.permute.xlu0 %1358
        %vm1360 = vcmask 39936
        %v1361 = vsel %vm1360, %v1345, %v1347
        %v1362 = vsel %vm1360, %v1349, %v1351
        %v1363 = vsel %vm1360, %v1353, %v1355
        %v1364 = vsel %vm1360, %v1357, %v1359
        %v1373 = vsel %vm1360, 0.0, %v1345
        %v1374 = vsel %vm1360, 0.0, %v1349
        %v1375 = vsel %vm1360, 0.0, %v1353
        %v1376 = vsel %vm1360, 0.0, %v1357
        %vm1377 = vcmask 334848
        %v1378 = vsel %vm1377, %v1361, 0.0
        %v1379 = vsel %vm1377, %v1362, 0.0
        %v1380 = vsel %vm1377, %v1363, 0.0
        %v1381 = vsel %vm1377, %v1364, 0.0
        %1390 = vrot.lane.b32.xlu0 %v1373, 127
        %v1391 = vpop.permute.xlu0 %1390
        %1392 = vrot.lane.b32.xlu0 %v1378, 127
        %v1393 = vpop.permute.xlu0 %1392
        %1394 = vrot.lane.b32.xlu0 %v1374, 127
        %v1395 = vpop.permute.xlu0 %1394
        %1396 = vrot.lane.b32.xlu0 %v1379, 127
        %v1397 = vpop.permute.xlu0 %1396
        %1398 = vrot.lane.b32.xlu0 %v1375, 127
        %v1399 = vpop.permute.xlu0 %1398
        %1400 = vrot.lane.b32.xlu0 %v1380, 127
        %v1401 = vpop.permute.xlu0 %1400
        %1402 = vrot.lane.b32.xlu0 %v1376, 127
        %v1403 = vpop.permute.xlu0 %1402
        %1404 = vrot.lane.b32.xlu0 %v1381, 127
        %v1405 = vpop.permute.xlu0 %1404
        %vm1406 = vcmask 1039360
        %v1407 = vsel %vm1406, %v1391, %v1393
        %v1408 = vsel %vm1406, %v1395, %v1397
        %v1409 = vsel %vm1406, %v1399, %v1401
        %v1410 = vsel %vm1406, %v1403, %v1405
        %1419 = vrot.lane.b32.xlu0 %v1373, 126
        %v1420 = vpop.permute.xlu0 %1419
        %1421 = vrot.lane.b32.xlu0 %v1378, 126
        %v1422 = vpop.permute.xlu0 %1421
        %1423 = vrot.lane.b32.xlu0 %v1374, 126
        %v1424 = vpop.permute.xlu0 %1423
        %1425 = vrot.lane.b32.xlu0 %v1379, 126
        %v1426 = vpop.permute.xlu0 %1425
        %1427 = vrot.lane.b32.xlu0 %v1375, 126
        %v1428 = vpop.permute.xlu0 %1427
        %1429 = vrot.lane.b32.xlu0 %v1380, 126
        %v1430 = vpop.permute.xlu0 %1429
        %1431 = vrot.lane.b32.xlu0 %v1376, 126
        %v1432 = vpop.permute.xlu0 %1431
        %1433 = vrot.lane.b32.xlu0 %v1381, 126
        %v1434 = vpop.permute.xlu0 %1433
        %vm1435 = vcmask 1031168
        %v1436 = vsel %vm1435, %v1420, %v1422
        %v1437 = vsel %vm1435, %v1424, %v1426
        %v1438 = vsel %vm1435, %v1428, %v1430
        %v1439 = vsel %vm1435, %v1432, %v1434
        %1448 = vrot.lane.b32.xlu0 %v1373, 125
        %v1449 = vpop.permute.xlu0 %1448
        %1450 = vrot.lane.b32.xlu0 %v1378, 125
        %v1451 = vpop.permute.xlu0 %1450
        %1452 = vrot.lane.b32.xlu0 %v1374, 125
        %v1453 = vpop.permute.xlu0 %1452
        %1454 = vrot.lane.b32.xlu0 %v1379, 125
        %v1455 = vpop.permute.xlu0 %1454
        %1456 = vrot.lane.b32.xlu0 %v1375, 125
        %v1457 = vpop.permute.xlu0 %1456
        %1458 = vrot.lane.b32.xlu0 %v1380, 125
        %v1459 = vpop.permute.xlu0 %1458
        %1460 = vrot.lane.b32.xlu0 %v1376, 125
        %v1461 = vpop.permute.xlu0 %1460
        %1462 = vrot.lane.b32.xlu0 %v1381, 125
        %v1463 = vpop.permute.xlu0 %1462
        %vm1464 = vcmask 1022976
        %v1465 = vsel %vm1464, %v1449, %v1451
        %v1466 = vsel %vm1464, %v1453, %v1455
        %v1467 = vsel %vm1464, %v1457, %v1459
        %v1468 = vsel %vm1464, %v1461, %v1463
        %1477 = vrot.lane.b32.xlu0 %v1373, 124
        %v1478 = vpop.permute.xlu0 %1477
        %1479 = vrot.lane.b32.xlu0 %v1378, 124
        %v1480 = vpop.permute.xlu0 %1479
        %1481 = vrot.lane.b32.xlu0 %v1374, 124
        %v1482 = vpop.permute.xlu0 %1481
        %1483 = vrot.lane.b32.xlu0 %v1379, 124
        %v1484 = vpop.permute.xlu0 %1483
        %1485 = vrot.lane.b32.xlu0 %v1375, 124
        %v1486 = vpop.permute.xlu0 %1485
        %1487 = vrot.lane.b32.xlu0 %v1380, 124
        %v1488 = vpop.permute.xlu0 %1487
        %1489 = vrot.lane.b32.xlu0 %v1376, 124
        %v1490 = vpop.permute.xlu0 %1489
        %1491 = vrot.lane.b32.xlu0 %v1381, 124
        %v1492 = vpop.permute.xlu0 %1491
        %vm1493 = vcmask 1014784
        %v1494 = vsel %vm1493, %v1478, %v1480
        %v1495 = vsel %vm1493, %v1482, %v1484
        %v1496 = vsel %vm1493, %v1486, %v1488
        %v1497 = vsel %vm1493, %v1490, %v1492
        %1506 = vrot.lane.b32.xlu0 %v1373, 123
        %v1507 = vpop.permute.xlu0 %1506
        %1508 = vrot.lane.b32.xlu0 %v1378, 123
        %v1509 = vpop.permute.xlu0 %1508
        %1510 = vrot.lane.b32.xlu0 %v1374, 123
        %v1511 = vpop.permute.xlu0 %1510
        %1512 = vrot.lane.b32.xlu0 %v1379, 123
        %v1513 = vpop.permute.xlu0 %1512
        %1514 = vrot.lane.b32.xlu0 %v1375, 123
        %v1515 = vpop.permute.xlu0 %1514
        %1516 = vrot.lane.b32.xlu0 %v1380, 123
        %v1517 = vpop.permute.xlu0 %1516
        %1518 = vrot.lane.b32.xlu0 %v1376, 123
        %v1519 = vpop.permute.xlu0 %1518
        %1520 = vrot.lane.b32.xlu0 %v1381, 123
        %v1521 = vpop.permute.xlu0 %1520
        %vm1522 = vcmask 1006592
        %v1523 = vsel %vm1522, %v1507, %v1509
        %v1524 = vsel %vm1522, %v1511, %v1513
        %v1525 = vsel %vm1522, %v1515, %v1517
        %v1526 = vsel %vm1522, %v1519, %v1521
        %1535 = vrot.lane.b32.xlu0 %v1373, 122
        %v1536 = vpop.permute.xlu0 %1535
        %1537 = vrot.lane.b32.xlu0 %v1378, 122
        %v1538 = vpop.permute.xlu0 %1537
        %1539 = vrot.lane.b32.xlu0 %v1374, 122
        %v1540 = vpop.permute.xlu0 %1539
        %1541 = vrot.lane.b32.xlu0 %v1379, 122
        %v1542 = vpop.permute.xlu0 %1541
        %1543 = vrot.lane.b32.xlu0 %v1375, 122
        %v1544 = vpop.permute.xlu0 %1543
        %1545 = vrot.lane.b32.xlu0 %v1380, 122
        %v1546 = vpop.permute.xlu0 %1545
        %1547 = vrot.lane.b32.xlu0 %v1376, 122
        %v1548 = vpop.permute.xlu0 %1547
        %1549 = vrot.lane.b32.xlu0 %v1381, 122
        %v1550 = vpop.permute.xlu0 %1549
        %vm1551 = vcmask 998400
        %v1552 = vsel %vm1551, %v1536, %v1538
        %v1553 = vsel %vm1551, %v1540, %v1542
        %v1554 = vsel %vm1551, %v1544, %v1546
        %v1555 = vsel %vm1551, %v1548, %v1550
        %1564 = vrot.lane.b32.xlu0 %v1373, 121
        %v1565 = vpop.permute.xlu0 %1564
        %1566 = vrot.lane.b32.xlu0 %v1378, 121
        %v1567 = vpop.permute.xlu0 %1566
        %1568 = vrot.lane.b32.xlu0 %v1374, 121
        %v1569 = vpop.permute.xlu0 %1568
        %1570 = vrot.lane.b32.xlu0 %v1379, 121
        %v1571 = vpop.permute.xlu0 %1570
        %1572 = vrot.lane.b32.xlu0 %v1375, 121
        %v1573 = vpop.permute.xlu0 %1572
        %1574 = vrot.lane.b32.xlu0 %v1380, 121
        %v1575 = vpop.permute.xlu0 %1574
        %1576 = vrot.lane.b32.xlu0 %v1376, 121
        %v1577 = vpop.permute.xlu0 %1576
        %1578 = vrot.lane.b32.xlu0 %v1381, 121
        %v1579 = vpop.permute.xlu0 %1578
        %vm1580 = vcmask 990208
        %v1581 = vsel %vm1580, %v1565, %v1567
        %v1582 = vsel %vm1580, %v1569, %v1571
        %v1583 = vsel %vm1580, %v1573, %v1575
        %v1584 = vsel %vm1580, %v1577, %v1579
        %1593 = vrot.lane.b32.xlu0 %v1373, 120
        %v1594 = vpop.permute.xlu0 %1593
        %1595 = vrot.lane.b32.xlu0 %v1378, 120
        %v1596 = vpop.permute.xlu0 %1595
        %1597 = vrot.lane.b32.xlu0 %v1374, 120
        %v1598 = vpop.permute.xlu0 %1597
        %1599 = vrot.lane.b32.xlu0 %v1379, 120
        %v1600 = vpop.permute.xlu0 %1599
        %1601 = vrot.lane.b32.xlu0 %v1375, 120
        %v1602 = vpop.permute.xlu0 %1601
        %1603 = vrot.lane.b32.xlu0 %v1380, 120
        %v1604 = vpop.permute.xlu0 %1603
        %1605 = vrot.lane.b32.xlu0 %v1376, 120
        %v1606 = vpop.permute.xlu0 %1605
        %1607 = vrot.lane.b32.xlu0 %v1381, 120
        %v1608 = vpop.permute.xlu0 %1607
        %vm1609 = vcmask 982016
        %v1610 = vsel %vm1609, %v1594, %v1596
        %v1611 = vsel %vm1609, %v1598, %v1600
        %v1612 = vsel %vm1609, %v1602, %v1604
        %v1613 = vsel %vm1609, %v1606, %v1608
        %1622 = vrot.lane.b32.xlu0 %v1373, 119
        %v1623 = vpop.permute.xlu0 %1622
        %1624 = vrot.lane.b32.xlu0 %v1378, 119
        %v1625 = vpop.permute.xlu0 %1624
        %1626 = vrot.lane.b32.xlu0 %v1374, 119
        %v1627 = vpop.permute.xlu0 %1626
        %1628 = vrot.lane.b32.xlu0 %v1379, 119
        %v1629 = vpop.permute.xlu0 %1628
        %1630 = vrot.lane.b32.xlu0 %v1375, 119
        %v1631 = vpop.permute.xlu0 %1630
        %1632 = vrot.lane.b32.xlu0 %v1380, 119
        %v1633 = vpop.permute.xlu0 %1632
        %1634 = vrot.lane.b32.xlu0 %v1376, 119
        %v1635 = vpop.permute.xlu0 %1634
        %1636 = vrot.lane.b32.xlu0 %v1381, 119
        %v1637 = vpop.permute.xlu0 %1636
        %vm1638 = vcmask 973824
        %v1639 = vsel %vm1638, %v1623, %v1625
        %v1640 = vsel %vm1638, %v1627, %v1629
        %v1641 = vsel %vm1638, %v1631, %v1633
        %v1642 = vsel %vm1638, %v1635, %v1637
        %1651 = vrot.lane.b32.xlu0 %v1373, 118
        %v1652 = vpop.permute.xlu0 %1651
        %1653 = vrot.lane.b32.xlu0 %v1378, 118
        %v1654 = vpop.permute.xlu0 %1653
        %1655 = vrot.lane.b32.xlu0 %v1374, 118
        %v1656 = vpop.permute.xlu0 %1655
        %1657 = vrot.lane.b32.xlu0 %v1379, 118
        %v1658 = vpop.permute.xlu0 %1657
        %1659 = vrot.lane.b32.xlu0 %v1375, 118
        %v1660 = vpop.permute.xlu0 %1659
        %1661 = vrot.lane.b32.xlu0 %v1380, 118
        %v1662 = vpop.permute.xlu0 %1661
        %1663 = vrot.lane.b32.xlu0 %v1376, 118
        %v1664 = vpop.permute.xlu0 %1663
        %1665 = vrot.lane.b32.xlu0 %v1381, 118
        %v1666 = vpop.permute.xlu0 %1665
        %vm1667 = vcmask 965632
        %v1668 = vsel %vm1667, %v1652, %v1654
        %v1669 = vsel %vm1667, %v1656, %v1658
        %v1670 = vsel %vm1667, %v1660, %v1662
        %v1671 = vsel %vm1667, %v1664, %v1666
        %v1680 = vpack.c.bf16 %v1374, %v1373
        %v1681 = vpack.c.bf16 %v1379, %v1378
        %v1682 = vpack.c.bf16 %v1376, %v1375
        %v1683 = vpack.c.bf16 %v1381, %v1380
        %v1684 = vpack.c.bf16 %v1408, %v1407
        %v1685 = vpack.c.bf16 %v1397, %v1393
        %v1686 = vpack.c.bf16 %v1410, %v1409
        %v1687 = vpack.c.bf16 %v1405, %v1401
        %v1688 = vpack.c.bf16 %v1437, %v1436
        %v1689 = vpack.c.bf16 %v1426, %v1422
        %v1690 = vpack.c.bf16 %v1439, %v1438
        %v1691 = vpack.c.bf16 %v1434, %v1430
        %v1692 = vpack.c.bf16 %v1466, %v1465
        %v1693 = vpack.c.bf16 %v1455, %v1451
        %v1694 = vpack.c.bf16 %v1468, %v1467
        %v1695 = vpack.c.bf16 %v1463, %v1459
        %v1696 = vpack.c.bf16 %v1495, %v1494
        %v1697 = vpack.c.bf16 %v1484, %v1480
        %v1698 = vpack.c.bf16 %v1497, %v1496
        %v1699 = vpack.c.bf16 %v1492, %v1488
        %v1700 = vpack.c.bf16 %v1524, %v1523
        %v1701 = vpack.c.bf16 %v1513, %v1509
        %v1702 = vpack.c.bf16 %v1526, %v1525
        %v1703 = vpack.c.bf16 %v1521, %v1517
        %v1704 = vpack.c.bf16 %v1553, %v1552
        %v1705 = vpack.c.bf16 %v1542, %v1538
        %v1706 = vpack.c.bf16 %v1555, %v1554
        %v1707 = vpack.c.bf16 %v1550, %v1546
        %v1708 = vpack.c.bf16 %v1582, %v1581
        %v1709 = vpack.c.bf16 %v1571, %v1567
        %v1710 = vpack.c.bf16 %v1584, %v1583
        %v1711 = vpack.c.bf16 %v1579, %v1575
        %v1712 = vpack.c.bf16 %v1611, %v1610
        %v1713 = vpack.c.bf16 %v1600, %v1596
        %v1714 = vpack.c.bf16 %v1613, %v1612
        %v1715 = vpack.c.bf16 %v1608, %v1604
        %v1716 = vpack.c.bf16 %v1640, %v1639
        %v1717 = vpack.c.bf16 %v1629, %v1625
        %v1718 = vpack.c.bf16 %v1642, %v1641
        %v1719 = vpack.c.bf16 %v1637, %v1633
        %v1720 = vpack.c.bf16 %v1669, %v1668
        %v1721 = vpack.c.bf16 %v1658, %v1654
        %v1722 = vpack.c.bf16 %v1671, %v1670
        %v1723 = vpack.c.bf16 %v1666, %v1662
        %1725 = vset.pattern.permute.xlu0 0
        %1726 = vperm.xlu0 %1725, %v1326
        %v1727 = vpop.permute.xlu0 %1726
        %1730 = vset.pattern.permute.xlu0 0
        %1731 = vperm.xlu0 %1730, %v1327
        %v1732 = vpop.permute.xlu0 %1731
        %1735 = vset.pattern.permute.xlu0 0
        %1736 = vperm.xlu0 %1735, %v1328
        %v1737 = vpop.permute.xlu0 %1736
        %1740 = vset.pattern.permute.xlu0 0
        %1741 = vperm.xlu0 %1740, %v1329
        %v1742 = vpop.permute.xlu0 %1741
        %1745 = vset.pattern.permute.xlu0 0
        %1746 = vperm.xlu0 %1745, %v1330
        %v1747 = vpop.permute.xlu0 %1746
        %1750 = vset.pattern.permute.xlu0 0
        %1751 = vperm.xlu0 %1750, %v1331
        %v1752 = vpop.permute.xlu0 %1751
        %1755 = vset.pattern.permute.xlu0 0
        %1756 = vperm.xlu0 %1755, %v1332
        %v1757 = vpop.permute.xlu0 %1756
        %1760 = vset.pattern.permute.xlu0 0
        %1761 = vperm.xlu0 %1760, %v1333
        %v1762 = vpop.permute.xlu0 %1761
        %1765 = vset.pattern.permute.xlu0 0
        %1766 = vperm.xlu0 %1765, %v1334
        %v1767 = vpop.permute.xlu0 %1766
        %1770 = vset.pattern.permute.xlu0 0
        %1771 = vperm.xlu0 %1770, %v1335
        %v1772 = vpop.permute.xlu0 %1771
        %v1794 = vunpack.c.l.b16 %v1306
        %v1795 = vunpack.c.h.b16 %v1306
        %v1796 = vunpack.c.l.b16 %v1307
        %v1797 = vunpack.c.l.b16 %v1308
        %v1798 = vunpack.c.h.b16 %v1308
        %v1799 = vunpack.c.l.b16 %v1309
        %v1800 = vunpack.c.l.b16 %v1310
        %v1801 = vunpack.c.h.b16 %v1310
        %v1802 = vunpack.c.l.b16 %v1311
        %v1803 = vunpack.c.l.b16 %v1312
        %v1804 = vunpack.c.h.b16 %v1312
        %v1805 = vunpack.c.l.b16 %v1313
        %v1806 = vunpack.c.l.b16 %v1314
        %v1807 = vunpack.c.h.b16 %v1314
        %v1808 = vunpack.c.l.b16 %v1315
        %v1809 = vunpack.c.l.b16 %v1316
        %v1810 = vunpack.c.h.b16 %v1316
        %v1811 = vunpack.c.l.b16 %v1317
        %v1812 = vunpack.c.l.b16 %v1318
        %v1813 = vunpack.c.h.b16 %v1318
        %v1814 = vunpack.c.l.b16 %v1319
        %v1815 = vunpack.c.l.b16 %v1320
        %v1816 = vunpack.c.h.b16 %v1320
        %v1817 = vunpack.c.l.b16 %v1321
        %v1818 = vunpack.c.l.b16 %v1322
        %v1819 = vunpack.c.h.b16 %v1322
        %v1820 = vunpack.c.l.b16 %v1323
        %v1821 = vunpack.c.l.b16 %v1324
        %v1822 = vunpack.c.h.b16 %v1324
        %v1823 = vunpack.c.l.b16 %v1325
        %v1824 = vpack.c.b16 %v1797, %v1794
        %v1825 = vpack.c.b16 %v1798, %v1795
        %v1826 = vpack.c.b16 %v1799, %v1796
        %v1827 = vpack.c.b16 %v1803, %v1800
        %v1828 = vpack.c.b16 %v1804, %v1801
        %v1829 = vpack.c.b16 %v1805, %v1802
        %v1830 = vpack.c.b16 %v1809, %v1806
        %v1831 = vpack.c.b16 %v1810, %v1807
        %v1832 = vpack.c.b16 %v1811, %v1808
        %v1833 = vpack.c.b16 %v1815, %v1812
        %v1834 = vpack.c.b16 %v1816, %v1813
        %v1835 = vpack.c.b16 %v1817, %v1814
        %v1836 = vpack.c.b16 %v1821, %v1818
        %v1837 = vpack.c.b16 %v1822, %v1819
        %v1838 = vpack.c.b16 %v1823, %v1820
        %vm1849 = vcmask 785408
        %v1851 = vsel %vm1849, %v1826, 0
        %v1854 = vsel %vm1849, %v1829, 0
        %v1857 = vsel %vm1849, %v1832, 0
        %v1860 = vsel %vm1849, %v1835, 0
        %v1863 = vsel %vm1849, %v1838, 0
        %1865 = vmatprep.subr.bf16.mxu0 %v1681
        %1866 = vmatpush1.bf16.msra.mxu0 %v1680
        %1867 = vmatprep.subr.bf16.mxu0 %v1683
        %1868 = vmatpush1.bf16.msra.mxu0 %v1682
        %1869 = vmatprep.subr.bf16.mxu0 %v1685
        %1870 = vmatpush1.bf16.msra.mxu0 %v1684
        %1871 = vmatprep.subr.bf16.mxu0 %v1687
        %1872 = vmatpush1.bf16.msra.mxu0 %v1686
        %1873 = vmatprep.subr.bf16.mxu0 %v1689
        %1874 = vmatpush1.bf16.msra.mxu0 %v1688
        %1875 = vmatprep.subr.bf16.mxu0 %v1691
        %1876 = vmatpush1.bf16.msra.mxu0 %v1690
        %1877 = vmatprep.subr.bf16.mxu0 %v1693
        %1878 = vmatpush1.bf16.msra.mxu0 %v1692
        %1879 = vmatprep.subr.bf16.mxu0 %v1695
        %1880 = vmatpush1.bf16.msra.mxu0 %v1694
        %1881 = vmatprep.subr.bf16.mxu0 %v1697
        %1882 = vmatpush1.bf16.msra.mxu0 %v1696
        %1883 = vmatprep.subr.bf16.mxu0 %v1699
        %1884 = vmatpush1.bf16.msra.mxu0 %v1698
        %1885 = vmatprep.subr.bf16.mxu0 %v1701
        %1886 = vmatpush1.bf16.msra.mxu0 %v1700
        %1887 = vmatprep.subr.bf16.mxu0 %v1703
        %1888 = vmatpush1.bf16.msra.mxu0 %v1702
        %1889 = vmatprep.subr.bf16.mxu0 %v1705
        %1890 = vmatpush1.bf16.msra.mxu0 %v1704
        %1891 = vmatprep.subr.bf16.mxu0 %v1707
        %1892 = vmatpush1.bf16.msra.mxu0 %v1706
        %1893 = vmatprep.subr.bf16.mxu0 %v1709
        %1894 = vmatpush1.bf16.msra.mxu0 %v1708
        %1895 = vmatprep.subr.bf16.mxu0 %v1711
        %1896 = vmatpush1.bf16.msra.mxu0 %v1710
        %1897 = vmatprep.mubr.bf16.mxu0 %v1825
        %1898 = vmatmul.mubr.bf16.gmra.mrb[0].mxu0 %v1824
        %v1899 = vpop.f32.mrb[0].mxu0
        %v1900 = vadd.f32 %v1727, %v1899
        %v1901 = vpop.f32.mrb[0].mxu0
        %v1902 = vadd.f32 %v1727, %v1901
        %v1903 = vpop.f32.mrb[0].mxu0
        %v1904 = vadd.f32 %v1732, %v1903
        %v1905 = vpop.f32.mrb[0].mxu0
        %v1906 = vadd.f32 %v1732, %v1905
        %1907 = vmatprep.mubr.bf16.mxu0 %v1828
        %1908 = vmatmul.mubr.bf16.gmra.mrb[0].mxu0 %v1827
        %v1909 = vpop.f32.mrb[0].mxu0
        %v1910 = vadd.f32 %v1737, %v1909
        %v1911 = vpop.f32.mrb[0].mxu0
        %v1912 = vadd.f32 %v1737, %v1911
        %v1913 = vpop.f32.mrb[0].mxu0
        %v1914 = vadd.f32 %v1742, %v1913
        %v1915 = vpop.f32.mrb[0].mxu0
        %v1916 = vadd.f32 %v1742, %v1915
        %1917 = vmatprep.mubr.bf16.mxu0 %v1831
        %1918 = vmatmul.mubr.bf16.gmra.mrb[0].mxu0 %v1830
        %v1919 = vpop.f32.mrb[0].mxu0
        %v1920 = vadd.f32 %v1747, %v1919
        %v1921 = vpop.f32.mrb[0].mxu0
        %v1922 = vadd.f32 %v1747, %v1921
        %v1923 = vpop.f32.mrb[0].mxu0
        %v1924 = vadd.f32 %v1752, %v1923
        %v1925 = vpop.f32.mrb[0].mxu0
        %v1926 = vadd.f32 %v1752, %v1925
        %1927 = vmatprep.mubr.bf16.mxu0 %v1834
        %1928 = vmatmul.mubr.bf16.gmra.mrb[0].mxu0 %v1833
        %v1929 = vpop.f32.mrb[0].mxu0
        %v1930 = vadd.f32 %v1757, %v1929
        %v1931 = vpop.f32.mrb[0].mxu0
        %v1932 = vadd.f32 %v1757, %v1931
        %v1933 = vpop.f32.mrb[0].mxu0
        %v1934 = vadd.f32 %v1762, %v1933
        %v1935 = vpop.f32.mrb[0].mxu0
        %v1936 = vadd.f32 %v1762, %v1935
        %1937 = vmatprep.mubr.bf16.mxu0 %v1837
        %1938 = vmatmul.mubr.bf16.gmra.mrb[0].mxu0 %v1836
        %v1939 = vpop.f32.mrb[0].mxu0
        %v1940 = vadd.f32 %v1767, %v1939
        %v1941 = vpop.f32.mrb[0].mxu0
        %v1942 = vadd.f32 %v1767, %v1941
        %v1943 = vpop.f32.mrb[0].mxu0
        %v1944 = vadd.f32 %v1772, %v1943
        %v1945 = vpop.f32.mrb[0].mxu0
        %v1946 = vadd.f32 %v1772, %v1945
        %1947 = vdwg.mxu0
        %1948 = vmatprep.subr.bf16.mxu0 %v1713
        %1949 = vmatpush1.bf16.msra.mxu0 %v1712
        %1950 = vmatprep.subr.bf16.mxu0 %v1715
        %1951 = vmatpush1.bf16.msra.mxu0 %v1714
        %1952 = vmatprep.subr.bf16.mxu0 %v1717
        %1953 = vmatpush1.bf16.msra.mxu0 %v1716
        %1954 = vmatprep.subr.bf16.mxu0 %v1719
        %1955 = vmatpush1.bf16.msra.mxu0 %v1718
        %1956 = vmatprep.subr.bf16.mxu0 %v1721
        %1957 = vmatpush1.bf16.msra.mxu0 %v1720
        %1958 = vmatprep.subr.bf16.mxu0 %v1723
        %1959 = vmatpush1.bf16.msra.mxu0 %v1722
        %1960 = vmatprep.subr.bf16.mxu0 0
        %1961 = vmatpush1.bf16.msra.mxu0 0
        %1962 = vmatprep.subr.bf16.mxu0 0
        %1963 = vmatpush1.bf16.msra.mxu0 0
        %1964 = vmatprep.subr.bf16.mxu0 0
        %1965 = vmatpush1.bf16.msra.mxu0 0
        %1966 = vmatprep.subr.bf16.mxu0 0
        %1967 = vmatpush1.bf16.msra.mxu0 0
        %1968 = vmatprep.subr.bf16.mxu0 0
        %1969 = vmatpush1.bf16.msra.mxu0 0
        %1970 = vmatprep.subr.bf16.mxu0 0
        %1971 = vmatpush1.bf16.msra.mxu0 0
        %1972 = vmatprep.subr.bf16.mxu0 0
        %1973 = vmatpush1.bf16.msra.mxu0 0
        %1974 = vmatprep.subr.bf16.mxu0 0
        %1975 = vmatpush1.bf16.msra.mxu0 0
        %1976 = vmatprep.subr.bf16.mxu0 0
        %1977 = vmatpush1.bf16.msra.mxu0 0
        %1978 = vmatprep.subr.bf16.mxu0 0
        %1979 = vmatpush1.bf16.msra.mxu0 0
        %1980 = vmatprep.mubr.bf16.mxu0 0
        %1981 = vmatmul.mubr.bf16.gmra.mrb[0].mxu0 %v1851
        %v1982 = vpop.f32.mrb[0].mxu0
        %v1983 = vadd.f32 %v1900, %v1982
        %v1984 = vpop.f32.mrb[0].mxu0
        %v1985 = vadd.f32 %v1902, %v1984
        %v1986 = vpop.f32.mrb[0].mxu0
        %v1987 = vadd.f32 %v1904, %v1986
        %v1988 = vpop.f32.mrb[0].mxu0
        %v1989 = vadd.f32 %v1906, %v1988
        %1990 = vmatprep.mubr.bf16.mxu0 0
        %1991 = vmatmul.mubr.bf16.gmra.mrb[0].mxu0 %v1854
        %v1992 = vpop.f32.mrb[0].mxu0
        %v1993 = vadd.f32 %v1910, %v1992
        %v1994 = vpop.f32.mrb[0].mxu0
        %v1995 = vadd.f32 %v1912, %v1994
        %v1996 = vpop.f32.mrb[0].mxu0
        %v1997 = vadd.f32 %v1914, %v1996
        %v1998 = vpop.f32.mrb[0].mxu0
        %v1999 = vadd.f32 %v1916, %v1998
        %2000 = vmatprep.mubr.bf16.mxu0 0
        %2001 = vmatmul.mubr.bf16.gmra.mrb[0].mxu0 %v1857
        %v2002 = vpop.f32.mrb[0].mxu0
        %v2003 = vadd.f32 %v1920, %v2002
        %v2004 = vpop.f32.mrb[0].mxu0
        %v2005 = vadd.f32 %v1922, %v2004
        %v2006 = vpop.f32.mrb[0].mxu0
        %v2007 = vadd.f32 %v1924, %v2006
        %v2008 = vpop.f32.mrb[0].mxu0
        %v2009 = vadd.f32 %v1926, %v2008
        %2010 = vmatprep.mubr.bf16.mxu0 0
        %2011 = vmatmul.mubr.bf16.gmra.mrb[0].mxu0 %v1860
        %v2012 = vpop.f32.mrb[0].mxu0
        %v2013 = vadd.f32 %v1930, %v2012
        %v2014 = vpop.f32.mrb[0].mxu0
        %v2015 = vadd.f32 %v1932, %v2014
        %v2016 = vpop.f32.mrb[0].mxu0
        %v2017 = vadd.f32 %v1934, %v2016
        %v2018 = vpop.f32.mrb[0].mxu0
        %v2019 = vadd.f32 %v1936, %v2018
        %2020 = vmatprep.mubr.bf16.mxu0 0
        %2021 = vmatmul.mubr.bf16.gmra.mrb[0].mxu0 %v1863
        %v2022 = vpop.f32.mrb[0].mxu0
        %v2023 = vadd.f32 %v1940, %v2022
        %v2024 = vpop.f32.mrb[0].mxu0
        %v2025 = vadd.f32 %v1942, %v2024
        %v2026 = vpop.f32.mrb[0].mxu0
        %v2027 = vadd.f32 %v1944, %v2026
        %v2028 = vpop.f32.mrb[0].mxu0
        %v2029 = vadd.f32 %v1946, %v2028
        %2030 = vdwg.mxu0
        %v2031 = vmax.f32 %v1983, 0.0
        %v2032 = vmax.f32 %v1985, 0.0
        %v2033 = vmax.f32 %v1987, 0.0
        %v2034 = vmax.f32 %v1989, 0.0
        %v2035 = vmax.f32 %v1993, 0.0
        %v2036 = vmax.f32 %v1995, 0.0
        %v2037 = vmax.f32 %v1997, 0.0
        %v2038 = vmax.f32 %v1999, 0.0
        %v2039 = vmax.f32 %v2003, 0.0
        %v2040 = vmax.f32 %v2005, 0.0
        %v2041 = vmax.f32 %v2007, 0.0
        %v2042 = vmax.f32 %v2009, 0.0
        %v2043 = vmax.f32 %v2013, 0.0
        %v2044 = vmax.f32 %v2015, 0.0
        %v2045 = vmax.f32 %v2017, 0.0
        %v2046 = vmax.f32 %v2019, 0.0
        %v2047 = vmax.f32 %v2023, 0.0
        %v2048 = vmax.f32 %v2025, 0.0
        %v2049 = vmax.f32 %v2027, 0.0
        %v2050 = vmax.f32 %v2029, 0.0
        %v2051 = vmul.f32 %v2031, %v1296
        %v2052 = vmul.f32 %v2032, %v1297
        %v2053 = vmul.f32 %v2033, %v1296
        %v2054 = vmul.f32 %v2034, %v1297
        %v2055 = vmul.f32 %v2035, %v1296
        %v2056 = vmul.f32 %v2036, %v1297
        %v2057 = vmul.f32 %v2037, %v1296
        %v2058 = vmul.f32 %v2038, %v1297
        %v2059 = vmul.f32 %v2039, %v1296
        %v2060 = vmul.f32 %v2040, %v1297
        %v2061 = vmul.f32 %v2041, %v1296
        %v2062 = vmul.f32 %v2042, %v1297
        %v2063 = vmul.f32 %v2043, %v1296
        %v2064 = vmul.f32 %v2044, %v1297
        %v2065 = vmul.f32 %v2045, %v1296
        %v2066 = vmul.f32 %v2046, %v1297
        %v2067 = vmul.f32 %v2047, %v1296
        %v2068 = vmul.f32 %v2048, %v1297
        %v2069 = vmul.f32 %v2049, %v1296
        %v2070 = vmul.f32 %v2050, %v1297
        %v2071 = vld [vmem:[%s11] sm:$0xf]
        %v2072 = vld [vmem:[%s13] sm:$0xff]
        %2077 = vrot.lane.b32.xlu0 %v2051, 1
        %v2078 = vpop.permute.xlu0 %2077
        %2079 = vrot.lane.b32.xlu0 %v2052, 1
        %v2080 = vpop.permute.xlu0 %2079
        %2081 = vrot.lane.b32.xlu0 %v2053, 1
        %v2082 = vpop.permute.xlu0 %2081
        %2083 = vrot.lane.b32.xlu0 %v2054, 1
        %v2084 = vpop.permute.xlu0 %2083
        %vm2085 = vcmask 7168
        %v2086 = vsel %vm2085, %v2078, %v2080
        %v2087 = vsel %vm2085, %v2082, %v2084
        %v2092 = vsel %vm2085, 0.0, %v2078
        %v2093 = vsel %vm2085, 0.0, %v2082
        %vm2094 = vcmask 302080
        %v2095 = vsel %vm2094, %v2086, 0.0
        %v2096 = vsel %vm2094, %v2087, 0.0
        %2101 = vrot.lane.b32.xlu0 %v2092, 127
        %v2102 = vpop.permute.xlu0 %2101
        %2103 = vrot.lane.b32.xlu0 %v2095, 127
        %v2104 = vpop.permute.xlu0 %2103
        %2105 = vrot.lane.b32.xlu0 %v2093, 127
        %v2106 = vpop.permute.xlu0 %2105
        %2107 = vrot.lane.b32.xlu0 %v2096, 127
        %v2108 = vpop.permute.xlu0 %2107
        %v2109 = vsel %vm1406, %v2102, %v2104
        %v2110 = vsel %vm1406, %v2106, %v2108
        %2115 = vrot.lane.b32.xlu0 %v2092, 126
        %v2116 = vpop.permute.xlu0 %2115
        %2117 = vrot.lane.b32.xlu0 %v2095, 126
        %v2118 = vpop.permute.xlu0 %2117
        %2119 = vrot.lane.b32.xlu0 %v2093, 126
        %v2120 = vpop.permute.xlu0 %2119
        %2121 = vrot.lane.b32.xlu0 %v2096, 126
        %v2122 = vpop.permute.xlu0 %2121
        %v2123 = vsel %vm1435, %v2116, %v2118
        %v2124 = vsel %vm1435, %v2120, %v2122
        %v2129 = vpack.c.bf16 %v2093, %v2092
        %v2130 = vpack.c.bf16 %v2096, %v2095
        %v2131 = vpack.c.bf16 %v2110, %v2109
        %v2132 = vpack.c.bf16 %v2108, %v2104
        %v2133 = vpack.c.bf16 %v2124, %v2123
        %v2134 = vpack.c.bf16 %v2122, %v2118
        %2136 = vset.pattern.permute.xlu0 0
        %2137 = vperm.xlu0 %2136, %v2072
        %v2138 = vpop.permute.xlu0 %2137
        %vm2140 = vcmask 392192
        %v2142 = vsel %vm2140, %v2071, 0
        %2144 = vmatprep.subr.bf16.mxu0 %v2130
        %2145 = vmatpush1.bf16.msra.mxu0 %v2129
        %2146 = vmatprep.subr.bf16.mxu0 %v2132
        %2147 = vmatpush1.bf16.msra.mxu0 %v2131
        %2148 = vmatprep.subr.bf16.mxu0 %v2134
        %2149 = vmatpush1.bf16.msra.mxu0 %v2133
        %2150 = vmatprep.subr.bf16.mxu0 0
        %2151 = vmatpush1.bf16.msra.mxu0 0
        %2152 = vmatprep.subr.bf16.mxu0 0
        %2153 = vmatpush1.bf16.msra.mxu0 0
        %2154 = vmatprep.subr.bf16.mxu0 0
        %2155 = vmatpush1.bf16.msra.mxu0 0
        %2156 = vmatprep.subr.bf16.mxu0 0
        %2157 = vmatpush1.bf16.msra.mxu0 0
        %2158 = vmatprep.subr.bf16.mxu0 0
        %2159 = vmatpush1.bf16.msra.mxu0 0
        %2160 = vmatprep.subr.bf16.mxu0 0
        %2161 = vmatpush1.bf16.msra.mxu0 0
        %2162 = vmatprep.subr.bf16.mxu0 0
        %2163 = vmatpush1.bf16.msra.mxu0 0
        %2164 = vmatprep.subr.bf16.mxu0 0
        %2165 = vmatpush1.bf16.msra.mxu0 0
        %2166 = vmatprep.subr.bf16.mxu0 0
        %2167 = vmatpush1.bf16.msra.mxu0 0
        %2168 = vmatprep.subr.bf16.mxu0 0
        %2169 = vmatpush1.bf16.msra.mxu0 0
        %2170 = vmatprep.subr.bf16.mxu0 0
        %2171 = vmatpush1.bf16.msra.mxu0 0
        %2172 = vmatprep.subr.bf16.mxu0 0
        %2173 = vmatpush1.bf16.msra.mxu0 0
        %2174 = vmatprep.subr.bf16.mxu0 0
        %2175 = vmatpush1.bf16.msra.mxu0 0
        %2176 = vmatprep.mubr.bf16.mxu0 0
        %2177 = vmatmul.mubr.bf16.gmra.mrb[0].mxu0 %v2142
        %v2178 = vpop.f32.mrb[0].mxu0
        %v2179 = vadd.f32 %v2138, %v2178
        %v2180 = vpop.f32.mrb[0].mxu0
        %v2181 = vadd.f32 %v2138, %v2180
        %v2182 = vpop.f32.mrb[0].mxu0
        %v2183 = vpop.f32.mrb[0].mxu0
        %2184 = vdwg.mxu0
        %v2185 = vmax.f32 %v2179, 0.0
        %v2186 = vmax.f32 %v2181, 0.0
        %v2187 = vmul.f32 %v2185, %v1296
        %v2188 = vmul.f32 %v2186, %v1297
        %v2189 = vld [vmem:[%s31] sm:$0x3]
        %v2190 = vld [vmem:[%s33] sm:$0xf]
        %2193 = vrot.lane.b32.xlu0 %v2187, 1
        %v2194 = vpop.permute.xlu0 %2193
        %2195 = vrot.lane.b32.xlu0 %v2188, 1
        %v2196 = vpop.permute.xlu0 %2195
        %v2197 = vsel %vm2085, %v2194, %v2196
        %v2200 = vsel %vm2085, 0.0, %v2194
        %v2201 = vsel %vm2094, %v2197, 0.0
        %2204 = vrot.lane.b32.xlu0 %v2200, 127
        %v2205 = vpop.permute.xlu0 %2204
        %2206 = vrot.lane.b32.xlu0 %v2201, 127
        %v2207 = vpop.permute.xlu0 %2206
        %v2208 = vsel %vm1406, %v2205, %v2207
        %2211 = vrot.lane.b32.xlu0 %v2200, 126
        %v2212 = vpop.permute.xlu0 %2211
        %2213 = vrot.lane.b32.xlu0 %v2201, 126
        %v2214 = vpop.permute.xlu0 %2213
        %v2215 = vsel %vm1435, %v2212, %v2214
        %v2218 = vpack.c.bf16 %v2208, %v2200
        %v2219 = vpack.c.bf16 %v2207, %v2201
        %v2220 = vpack.c.bf16 %v2215, %v2215
        %v2221 = vpack.c.bf16 %v2214, %v2214
        %2223 = vset.pattern.permute.xlu0 0
        %2224 = vperm.xlu0 %2223, %v2190
        %v2225 = vpop.permute.xlu0 %2224
        %vm2227 = vcmask 195584
        %v2229 = vsel %vm2227, %v2189, 0
        %vm2231 = vcmask 1043456
        %v2233 = vsel %vm2231, %v2220, 0
        %v2236 = vsel %vm2231, %v2221, 0
        %2238 = vmatprep.subr.bf16.mxu0 %v2219
        %2239 = vmatpush1.bf16.msra.mxu0 %v2218
        %2240 = vmatprep.subr.bf16.mxu0 %v2236
        %2241 = vmatpush1.bf16.msra.mxu0 %v2233
        %2242 = vmatprep.subr.bf16.mxu0 0
        %2243 = vmatpush1.bf16.msra.mxu0 0
        %2244 = vmatprep.subr.bf16.mxu0 0
        %2245 = vmatpush1.bf16.msra.mxu0 0
        %2246 = vmatprep.subr.bf16.mxu0 0
        %2247 = vmatpush1.bf16.msra.mxu0 0
        %2248 = vmatprep.subr.bf16.mxu0 0
        %2249 = vmatpush1.bf16.msra.mxu0 0
        %2250 = vmatprep.subr.bf16.mxu0 0
        %2251 = vmatpush1.bf16.msra.mxu0 0
        %2252 = vmatprep.subr.bf16.mxu0 0
        %2253 = vmatpush1.bf16.msra.mxu0 0
        %2254 = vmatprep.subr.bf16.mxu0 0
        %2255 = vmatpush1.bf16.msra.mxu0 0
        %2256 = vmatprep.subr.bf16.mxu0 0
        %2257 = vmatpush1.bf16.msra.mxu0 0
        %2258 = vmatprep.subr.bf16.mxu0 0
        %2259 = vmatpush1.bf16.msra.mxu0 0
        %2260 = vmatprep.subr.bf16.mxu0 0
        %2261 = vmatpush1.bf16.msra.mxu0 0
        %2262 = vmatprep.subr.bf16.mxu0 0
        %2263 = vmatpush1.bf16.msra.mxu0 0
        %2264 = vmatprep.subr.bf16.mxu0 0
        %2265 = vmatpush1.bf16.msra.mxu0 0
        %2266 = vmatprep.subr.bf16.mxu0 0
        %2267 = vmatpush1.bf16.msra.mxu0 0
        %2268 = vmatprep.subr.bf16.mxu0 0
        %2269 = vmatpush1.bf16.msra.mxu0 0
        %2270 = vmatprep.mubr.bf16.mxu0 0
        %2271 = vmatmul.mubr.bf16.gmra.mrb[0].mxu0 %v2229
        %v2272 = vpop.f32.mrb[0].mxu0
        %v2273 = vadd.f32 %v2225, %v2272
        %v2274 = vpop.f32.mrb[0].mxu0
        %v2275 = vadd.f32 %v2225, %v2274
        %v2276 = vpop.f32.mrb[0].mxu0
        %v2277 = vpop.f32.mrb[0].mxu0
        %2278 = vdwg.mxu0
        %v2279 = vmax.f32 %v2273, 0.0
        %v2280 = vmax.f32 %v2275, 0.0
        %v2281 = vmul.f32 %v2279, %v1296
        %v2282 = vmul.f32 %v2280, %v1297
        %v2283 = vld [vmem:[%s15] sm:$0xf]
        %v2284 = vld [vmem:[%s17] sm:$0xff]
        %2289 = vrot.lane.b32.xlu0 %v2055, 2
        %v2290 = vpop.permute.xlu0 %2289
        %2291 = vrot.lane.b32.xlu0 %v2056, 2
        %v2292 = vpop.permute.xlu0 %2291
        %2293 = vrot.lane.b32.xlu0 %v2057, 2
        %v2294 = vpop.permute.xlu0 %2293
        %2295 = vrot.lane.b32.xlu0 %v2058, 2
        %v2296 = vpop.permute.xlu0 %2295
        %vm2297 = vcmask 15360
        %v2298 = vsel %vm2297, %v2290, %v2292
        %v2299 = vsel %vm2297, %v2294, %v2296
        %v2304 = vsel %vm2297, 0.0, %v2290
        %v2305 = vsel %vm2297, 0.0, %v2294
        %vm2306 = vcmask 310272
        %v2307 = vsel %vm2306, %v2298, 0.0
        %v2308 = vsel %vm2306, %v2299, 0.0
        %2313 = vrot.lane.b32.xlu0 %v2304, 127
        %v2314 = vpop.permute.xlu0 %2313
        %2315 = vrot.lane.b32.xlu0 %v2307, 127
        %v2316 = vpop.permute.xlu0 %2315
        %2317 = vrot.lane.b32.xlu0 %v2305, 127
        %v2318 = vpop.permute.xlu0 %2317
        %2319 = vrot.lane.b32.xlu0 %v2308, 127
        %v2320 = vpop.permute.xlu0 %2319
        %v2321 = vsel %vm1406, %v2314, %v2316
        %v2322 = vsel %vm1406, %v2318, %v2320
        %2327 = vrot.lane.b32.xlu0 %v2304, 126
        %v2328 = vpop.permute.xlu0 %2327
        %2329 = vrot.lane.b32.xlu0 %v2307, 126
        %v2330 = vpop.permute.xlu0 %2329
        %2331 = vrot.lane.b32.xlu0 %v2305, 126
        %v2332 = vpop.permute.xlu0 %2331
        %2333 = vrot.lane.b32.xlu0 %v2308, 126
        %v2334 = vpop.permute.xlu0 %2333
        %v2335 = vsel %vm1435, %v2328, %v2330
        %v2336 = vsel %vm1435, %v2332, %v2334
        %2341 = vrot.lane.b32.xlu0 %v2304, 125
        %v2342 = vpop.permute.xlu0 %2341
        %2343 = vrot.lane.b32.xlu0 %v2307, 125
        %v2344 = vpop.permute.xlu0 %2343
        %2345 = vrot.lane.b32.xlu0 %v2305, 125
        %v2346 = vpop.permute.xlu0 %2345
        %2347 = vrot.lane.b32.xlu0 %v2308, 125
        %v2348 = vpop.permute.xlu0 %2347
        %v2349 = vsel %vm1464, %v2342, %v2344
        %v2350 = vsel %vm1464, %v2346, %v2348
        %2355 = vrot.lane.b32.xlu0 %v2304, 124
        %v2356 = vpop.permute.xlu0 %2355
        %2357 = vrot.lane.b32.xlu0 %v2307, 124
        %v2358 = vpop.permute.xlu0 %2357
        %2359 = vrot.lane.b32.xlu0 %v2305, 124
        %v2360 = vpop.permute.xlu0 %2359
        %2361 = vrot.lane.b32.xlu0 %v2308, 124
        %v2362 = vpop.permute.xlu0 %2361
        %v2363 = vsel %vm1493, %v2356, %v2358
        %v2364 = vsel %vm1493, %v2360, %v2362
        %v2369 = vpack.c.bf16 %v2305, %v2304
        %v2370 = vpack.c.bf16 %v2308, %v2307
        %v2371 = vpack.c.bf16 %v2322, %v2321
        %v2372 = vpack.c.bf16 %v2320, %v2316
        %v2373 = vpack.c.bf16 %v2336, %v2335
        %v2374 = vpack.c.bf16 %v2334, %v2330
        %v2375 = vpack.c.bf16 %v2350, %v2349
        %v2376 = vpack.c.bf16 %v2348, %v2344
        %v2377 = vpack.c.bf16 %v2364, %v2363
        %v2378 = vpack.c.bf16 %v2362, %v2358
        %2380 = vset.pattern.permute.xlu0 0
        %2381 = vperm.xlu0 %2380, %v2284
        %v2382 = vpop.permute.xlu0 %2381
        %vm2384 = vcmask 654336
        %v2386 = vsel %vm2384, %v2283, 0
        %2388 = vmatprep.subr.bf16.mxu0 %v2370
        %2389 = vmatpush1.bf16.msra.mxu0 %v2369
        %2390 = vmatprep.subr.bf16.mxu0 %v2372
        %2391 = vmatpush1.bf16.msra.mxu0 %v2371
        %2392 = vmatprep.subr.bf16.mxu0 %v2374
        %2393 = vmatpush1.bf16.msra.mxu0 %v2373
        %2394 = vmatprep.subr.bf16.mxu0 %v2376
        %2395 = vmatpush1.bf16.msra.mxu0 %v2375
        %2396 = vmatprep.subr.bf16.mxu0 %v2378
        %2397 = vmatpush1.bf16.msra.mxu0 %v2377
        %2398 = vmatprep.subr.bf16.mxu0 0
        %2399 = vmatpush1.bf16.msra.mxu0 0
        %2400 = vmatprep.subr.bf16.mxu0 0
        %2401 = vmatpush1.bf16.msra.mxu0 0
        %2402 = vmatprep.subr.bf16.mxu0 0
        %2403 = vmatpush1.bf16.msra.mxu0 0
        %2404 = vmatprep.subr.bf16.mxu0 0
        %2405 = vmatpush1.bf16.msra.mxu0 0
        %2406 = vmatprep.subr.bf16.mxu0 0
        %2407 = vmatpush1.bf16.msra.mxu0 0
        %2408 = vmatprep.subr.bf16.mxu0 0
        %2409 = vmatpush1.bf16.msra.mxu0 0
        %2410 = vmatprep.subr.bf16.mxu0 0
        %2411 = vmatpush1.bf16.msra.mxu0 0
        %2412 = vmatprep.subr.bf16.mxu0 0
        %2413 = vmatpush1.bf16.msra.mxu0 0
        %2414 = vmatprep.subr.bf16.mxu0 0
        %2415 = vmatpush1.bf16.msra.mxu0 0
        %2416 = vmatprep.subr.bf16.mxu0 0
        %2417 = vmatpush1.bf16.msra.mxu0 0
        %2418 = vmatprep.subr.bf16.mxu0 0
        %2419 = vmatpush1.bf16.msra.mxu0 0
        %2420 = vmatprep.mubr.bf16.mxu0 0
        %2421 = vmatmul.mubr.bf16.gmra.mrb[0].mxu0 %v2386
        %v2422 = vpop.f32.mrb[0].mxu0
        %v2423 = vadd.f32 %v2382, %v2422
        %v2424 = vpop.f32.mrb[0].mxu0
        %v2425 = vadd.f32 %v2382, %v2424
        %v2426 = vpop.f32.mrb[0].mxu0
        %v2427 = vpop.f32.mrb[0].mxu0
        %2428 = vdwg.mxu0
        %v2429 = vmax.f32 %v2423, 0.0
        %v2430 = vmax.f32 %v2425, 0.0
        %v2431 = vmul.f32 %v2429, %v1296
        %v2432 = vmul.f32 %v2430, %v1297
        %v2433 = vld [vmem:[%s35] sm:$0x3]
        %v2434 = vld [vmem:[%s37] sm:$0xf]
        %2437 = vrot.lane.b32.xlu0 %v2431, 2
        %v2438 = vpop.permute.xlu0 %2437
        %2439 = vrot.lane.b32.xlu0 %v2432, 2
        %v2440 = vpop.permute.xlu0 %2439
        %v2441 = vsel %vm2297, %v2438, %v2440
        %v2444 = vsel %vm2297, 0.0, %v2438
        %v2445 = vsel %vm2306, %v2441, 0.0
        %2448 = vrot.lane.b32.xlu0 %v2444, 127
        %v2449 = vpop.permute.xlu0 %2448
        %2450 = vrot.lane.b32.xlu0 %v2445, 127
        %v2451 = vpop.permute.xlu0 %2450
        %v2452 = vsel %vm1406, %v2449, %v2451
        %2455 = vrot.lane.b32.xlu0 %v2444, 126
        %v2456 = vpop.permute.xlu0 %2455
        %2457 = vrot.lane.b32.xlu0 %v2445, 126
        %v2458 = vpop.permute.xlu0 %2457
        %v2459 = vsel %vm1435, %v2456, %v2458
        %2462 = vrot.lane.b32.xlu0 %v2444, 125
        %v2463 = vpop.permute.xlu0 %2462
        %2464 = vrot.lane.b32.xlu0 %v2445, 125
        %v2465 = vpop.permute.xlu0 %2464
        %v2466 = vsel %vm1464, %v2463, %v2465
        %2469 = vrot.lane.b32.xlu0 %v2444, 124
        %v2470 = vpop.permute.xlu0 %2469
        %2471 = vrot.lane.b32.xlu0 %v2445, 124
        %v2472 = vpop.permute.xlu0 %2471
        %v2473 = vsel %vm1493, %v2470, %v2472
        %v2476 = vpack.c.bf16 %v2452, %v2444
        %v2477 = vpack.c.bf16 %v2451, %v2445
        %v2478 = vpack.c.bf16 %v2466, %v2459
        %v2479 = vpack.c.bf16 %v2465, %v2458
        %v2480 = vpack.c.bf16 %v2473, %v2473
        %v2481 = vpack.c.bf16 %v2472, %v2472
        %2483 = vset.pattern.permute.xlu0 0
        %2484 = vperm.xlu0 %2483, %v2434
        %v2485 = vpop.permute.xlu0 %2484
        %vm2487 = vcmask 326656
        %v2489 = vsel %vm2487, %v2433, 0
        %v2492 = vsel %vm2231, %v2480, 0
        %v2495 = vsel %vm2231, %v2481, 0
        %2497 = vmatprep.subr.bf16.mxu0 %v2477
        %2498 = vmatpush1.bf16.msra.mxu0 %v2476
        %2499 = vmatprep.subr.bf16.mxu0 %v2479
        %2500 = vmatpush1.bf16.msra.mxu0 %v2478
        %2501 = vmatprep.subr.bf16.mxu0 %v2495
        %2502 = vmatpush1.bf16.msra.mxu0 %v2492
        %2503 = vmatprep.subr.bf16.mxu0 0
        %2504 = vmatpush1.bf16.msra.mxu0 0
        %2505 = vmatprep.subr.bf16.mxu0 0
        %2506 = vmatpush1.bf16.msra.mxu0 0
        %2507 = vmatprep.subr.bf16.mxu0 0
        %2508 = vmatpush1.bf16.msra.mxu0 0
        %2509 = vmatprep.subr.bf16.mxu0 0
        %2510 = vmatpush1.bf16.msra.mxu0 0
        %2511 = vmatprep.subr.bf16.mxu0 0
        %2512 = vmatpush1.bf16.msra.mxu0 0
        %2513 = vmatprep.subr.bf16.mxu0 0
        %2514 = vmatpush1.bf16.msra.mxu0 0
        %2515 = vmatprep.subr.bf16.mxu0 0
        %2516 = vmatpush1.bf16.msra.mxu0 0
        %2517 = vmatprep.subr.bf16.mxu0 0
        %2518 = vmatpush1.bf16.msra.mxu0 0
        %2519 = vmatprep.subr.bf16.mxu0 0
        %2520 = vmatpush1.bf16.msra.mxu0 0
        %2521 = vmatprep.subr.bf16.mxu0 0
        %2522 = vmatpush1.bf16.msra.mxu0 0
        %2523 = vmatprep.subr.bf16.mxu0 0
        %2524 = vmatpush1.bf16.msra.mxu0 0
        %2525 = vmatprep.subr.bf16.mxu0 0
        %2526 = vmatpush1.bf16.msra.mxu0 0
        %2527 = vmatprep.subr.bf16.mxu0 0
        %2528 = vmatpush1.bf16.msra.mxu0 0
        %2529 = vmatprep.mubr.bf16.mxu0 0
        %2530 = vmatmul.mubr.bf16.gmra.mrb[0].mxu0 %v2489
        %v2531 = vpop.f32.mrb[0].mxu0
        %v2532 = vadd.f32 %v2485, %v2531
        %v2533 = vpop.f32.mrb[0].mxu0
        %v2534 = vadd.f32 %v2485, %v2533
        %v2535 = vpop.f32.mrb[0].mxu0
        %v2536 = vpop.f32.mrb[0].mxu0
        %2537 = vdwg.mxu0
        %v2538 = vmax.f32 %v2532, 0.0
        %v2539 = vmax.f32 %v2534, 0.0
        %v2540 = vmul.f32 %v2538, %v1296
        %v2541 = vmul.f32 %v2539, %v1297
        %v2542 = vadd.f32 %v2281, %v2540
        %v2543 = vadd.f32 %v2282, %v2541
        %v2544 = vld [vmem:[%s19] sm:$0xf]
        %v2545 = vld [vmem:[%s21] sm:$0xff]
        %2550 = vrot.lane.b32.xlu0 %v2059, 3
        %v2551 = vpop.permute.xlu0 %2550
        %2552 = vrot.lane.b32.xlu0 %v2060, 3
        %v2553 = vpop.permute.xlu0 %2552
        %2554 = vrot.lane.b32.xlu0 %v2061, 3
        %v2555 = vpop.permute.xlu0 %2554
        %2556 = vrot.lane.b32.xlu0 %v2062, 3
        %v2557 = vpop.permute.xlu0 %2556
        %vm2558 = vcmask 23552
        %v2559 = vsel %vm2558, %v2551, %v2553
        %v2560 = vsel %vm2558, %v2555, %v2557
        %v2565 = vsel %vm2558, 0.0, %v2551
        %v2566 = vsel %vm2558, 0.0, %v2555
        %vm2567 = vcmask 318464
        %v2568 = vsel %vm2567, %v2559, 0.0
        %v2569 = vsel %vm2567, %v2560, 0.0
        %2574 = vrot.lane.b32.xlu0 %v2565, 127
        %v2575 = vpop.permute.xlu0 %2574
        %2576 = vrot.lane.b32.xlu0 %v2568, 127
        %v2577 = vpop.permute.xlu0 %2576
        %2578 = vrot.lane.b32.xlu0 %v2566, 127
        %v2579 = vpop.permute.xlu0 %2578
        %2580 = vrot.lane.b32.xlu0 %v2569, 127
        %v2581 = vpop.permute.xlu0 %2580
        %v2582 = vsel %vm1406, %v2575, %v2577
        %v2583 = vsel %vm1406, %v2579, %v2581
        %2588 = vrot.lane.b32.xlu0 %v2565, 126
        %v2589 = vpop.permute.xlu0 %2588
        %2590 = vrot.lane.b32.xlu0 %v2568, 126
        %v2591 = vpop.permute.xlu0 %2590
        %2592 = vrot.lane.b32.xlu0 %v2566, 126
        %v2593 = vpop.permute.xlu0 %2592
        %2594 = vrot.lane.b32.xlu0 %v2569, 126
        %v2595 = vpop.permute.xlu0 %2594
        %v2596 = vsel %vm1435, %v2589, %v2591
        %v2597 = vsel %vm1435, %v2593, %v2595
        %2602 = vrot.lane.b32.xlu0 %v2565, 125
        %v2603 = vpop.permute.xlu0 %2602
        %2604 = vrot.lane.b32.xlu0 %v2568, 125
        %v2605 = vpop.permute.xlu0 %2604
        %2606 = vrot.lane.b32.xlu0 %v2566, 125
        %v2607 = vpop.permute.xlu0 %2606
        %2608 = vrot.lane.b32.xlu0 %v2569, 125
        %v2609 = vpop.permute.xlu0 %2608
        %v2610 = vsel %vm1464, %v2603, %v2605
        %v2611 = vsel %vm1464, %v2607, %v2609
        %2616 = vrot.lane.b32.xlu0 %v2565, 124
        %v2617 = vpop.permute.xlu0 %2616
        %2618 = vrot.lane.b32.xlu0 %v2568, 124
        %v2619 = vpop.permute.xlu0 %2618
        %2620 = vrot.lane.b32.xlu0 %v2566, 124
        %v2621 = vpop.permute.xlu0 %2620
        %2622 = vrot.lane.b32.xlu0 %v2569, 124
        %v2623 = vpop.permute.xlu0 %2622
        %v2624 = vsel %vm1493, %v2617, %v2619
        %v2625 = vsel %vm1493, %v2621, %v2623
        %2630 = vrot.lane.b32.xlu0 %v2565, 123
        %v2631 = vpop.permute.xlu0 %2630
        %2632 = vrot.lane.b32.xlu0 %v2568, 123
        %v2633 = vpop.permute.xlu0 %2632
        %2634 = vrot.lane.b32.xlu0 %v2566, 123
        %v2635 = vpop.permute.xlu0 %2634
        %2636 = vrot.lane.b32.xlu0 %v2569, 123
        %v2637 = vpop.permute.xlu0 %2636
        %v2638 = vsel %vm1522, %v2631, %v2633
        %v2639 = vsel %vm1522, %v2635, %v2637
        %2644 = vrot.lane.b32.xlu0 %v2565, 122
        %v2645 = vpop.permute.xlu0 %2644
        %2646 = vrot.lane.b32.xlu0 %v2568, 122
        %v2647 = vpop.permute.xlu0 %2646
        %2648 = vrot.lane.b32.xlu0 %v2566, 122
        %v2649 = vpop.permute.xlu0 %2648
        %2650 = vrot.lane.b32.xlu0 %v2569, 122
        %v2651 = vpop.permute.xlu0 %2650
        %v2652 = vsel %vm1551, %v2645, %v2647
        %v2653 = vsel %vm1551, %v2649, %v2651
        %v2658 = vpack.c.bf16 %v2566, %v2565
        %v2659 = vpack.c.bf16 %v2569, %v2568
        %v2660 = vpack.c.bf16 %v2583, %v2582
        %v2661 = vpack.c.bf16 %v2581, %v2577
        %v2662 = vpack.c.bf16 %v2597, %v2596
        %v2663 = vpack.c.bf16 %v2595, %v2591
        %v2664 = vpack.c.bf16 %v2611, %v2610
        %v2665 = vpack.c.bf16 %v2609, %v2605
        %v2666 = vpack.c.bf16 %v2625, %v2624
        %v2667 = vpack.c.bf16 %v2623, %v2619
        %v2668 = vpack.c.bf16 %v2639, %v2638
        %v2669 = vpack.c.bf16 %v2637, %v2633
        %v2670 = vpack.c.bf16 %v2653, %v2652
        %v2671 = vpack.c.bf16 %v2651, %v2647
        %2673 = vset.pattern.permute.xlu0 0
        %2674 = vperm.xlu0 %2673, %v2545
        %v2675 = vpop.permute.xlu0 %2674
        %vm2677 = vcmask 916480
        %v2679 = vsel %vm2677, %v2544, 0
        %2681 = vmatprep.subr.bf16.mxu0 %v2659
        %2682 = vmatpush1.bf16.msra.mxu0 %v2658
        %2683 = vmatprep.subr.bf16.mxu0 %v2661
        %2684 = vmatpush1.bf16.msra.mxu0 %v2660
        %2685 = vmatprep.subr.bf16.mxu0 %v2663
        %2686 = vmatpush1.bf16.msra.mxu0 %v2662
        %2687 = vmatprep.subr.bf16.mxu0 %v2665
        %2688 = vmatpush1.bf16.msra.mxu0 %v2664
        %2689 = vmatprep.subr.bf16.mxu0 %v2667
        %2690 = vmatpush1.bf16.msra.mxu0 %v2666
        %2691 = vmatprep.subr.bf16.mxu0 %v2669
        %2692 = vmatpush1.bf16.msra.mxu0 %v2668
        %2693 = vmatprep.subr.bf16.mxu0 %v2671
        %2694 = vmatpush1.bf16.msra.mxu0 %v2670
        %2695 = vmatprep.subr.bf16.mxu0 0
        %2696 = vmatpush1.bf16.msra.mxu0 0
        %2697 = vmatprep.subr.bf16.mxu0 0
        %2698 = vmatpush1.bf16.msra.mxu0 0
        %2699 = vmatprep.subr.bf16.mxu0 0
        %2700 = vmatpush1.bf16.msra.mxu0 0
        %2701 = vmatprep.subr.bf16.mxu0 0
        %2702 = vmatpush1.bf16.msra.mxu0 0
        %2703 = vmatprep.subr.bf16.mxu0 0
        %2704 = vmatpush1.bf16.msra.mxu0 0
        %2705 = vmatprep.subr.bf16.mxu0 0
        %2706 = vmatpush1.bf16.msra.mxu0 0
        %2707 = vmatprep.subr.bf16.mxu0 0
        %2708 = vmatpush1.bf16.msra.mxu0 0
        %2709 = vmatprep.subr.bf16.mxu0 0
        %2710 = vmatpush1.bf16.msra.mxu0 0
        %2711 = vmatprep.subr.bf16.mxu0 0
        %2712 = vmatpush1.bf16.msra.mxu0 0
        %2713 = vmatprep.mubr.bf16.mxu0 0
        %2714 = vmatmul.mubr.bf16.gmra.mrb[0].mxu0 %v2679
        %v2715 = vpop.f32.mrb[0].mxu0
        %v2716 = vadd.f32 %v2675, %v2715
        %v2717 = vpop.f32.mrb[0].mxu0
        %v2718 = vadd.f32 %v2675, %v2717
        %v2719 = vpop.f32.mrb[0].mxu0
        %v2720 = vpop.f32.mrb[0].mxu0
        %2721 = vdwg.mxu0
        %v2722 = vmax.f32 %v2716, 0.0
        %v2723 = vmax.f32 %v2718, 0.0
        %v2724 = vmul.f32 %v2722, %v1296
        %v2725 = vmul.f32 %v2723, %v1297
        %v2726 = vld [vmem:[%s39] sm:$0x3]
        %v2727 = vld [vmem:[%s41] sm:$0xf]
        %2730 = vrot.lane.b32.xlu0 %v2724, 3
        %v2731 = vpop.permute.xlu0 %2730
        %2732 = vrot.lane.b32.xlu0 %v2725, 3
        %v2733 = vpop.permute.xlu0 %2732
        %v2734 = vsel %vm2558, %v2731, %v2733
        %v2737 = vsel %vm2558, 0.0, %v2731
        %v2738 = vsel %vm2567, %v2734, 0.0
        %2741 = vrot.lane.b32.xlu0 %v2737, 127
        %v2742 = vpop.permute.xlu0 %2741
        %2743 = vrot.lane.b32.xlu0 %v2738, 127
        %v2744 = vpop.permute.xlu0 %2743
        %v2745 = vsel %vm1406, %v2742, %v2744
        %2748 = vrot.lane.b32.xlu0 %v2737, 126
        %v2749 = vpop.permute.xlu0 %2748
        %2750 = vrot.lane.b32.xlu0 %v2738, 126
        %v2751 = vpop.permute.xlu0 %2750
        %v2752 = vsel %vm1435, %v2749, %v2751
        %2755 = vrot.lane.b32.xlu0 %v2737, 125
        %v2756 = vpop.permute.xlu0 %2755
        %2757 = vrot.lane.b32.xlu0 %v2738, 125
        %v2758 = vpop.permute.xlu0 %2757
        %v2759 = vsel %vm1464, %v2756, %v2758
        %2762 = vrot.lane.b32.xlu0 %v2737, 124
        %v2763 = vpop.permute.xlu0 %2762
        %2764 = vrot.lane.b32.xlu0 %v2738, 124
        %v2765 = vpop.permute.xlu0 %2764
        %v2766 = vsel %vm1493, %v2763, %v2765
        %2769 = vrot.lane.b32.xlu0 %v2737, 123
        %v2770 = vpop.permute.xlu0 %2769
        %2771 = vrot.lane.b32.xlu0 %v2738, 123
        %v2772 = vpop.permute.xlu0 %2771
        %v2773 = vsel %vm1522, %v2770, %v2772
        %2776 = vrot.lane.b32.xlu0 %v2737, 122
        %v2777 = vpop.permute.xlu0 %2776
        %2778 = vrot.lane.b32.xlu0 %v2738, 122
        %v2779 = vpop.permute.xlu0 %2778
        %v2780 = vsel %vm1551, %v2777, %v2779
        %v2783 = vpack.c.bf16 %v2745, %v2737
        %v2784 = vpack.c.bf16 %v2744, %v2738
        %v2785 = vpack.c.bf16 %v2759, %v2752
        %v2786 = vpack.c.bf16 %v2758, %v2751
        %v2787 = vpack.c.bf16 %v2773, %v2766
        %v2788 = vpack.c.bf16 %v2772, %v2765
        %v2789 = vpack.c.bf16 %v2780, %v2780
        %v2790 = vpack.c.bf16 %v2779, %v2779
        %2792 = vset.pattern.permute.xlu0 0
        %2793 = vperm.xlu0 %2792, %v2727
        %v2794 = vpop.permute.xlu0 %2793
        %vm2796 = vcmask 457728
        %v2798 = vsel %vm2796, %v2726, 0
        %v2801 = vsel %vm2231, %v2789, 0
        %v2804 = vsel %vm2231, %v2790, 0
        %2806 = vmatprep.subr.bf16.mxu0 %v2784
        %2807 = vmatpush1.bf16.msra.mxu0 %v2783
        %2808 = vmatprep.subr.bf16.mxu0 %v2786
        %2809 = vmatpush1.bf16.msra.mxu0 %v2785
        %2810 = vmatprep.subr.bf16.mxu0 %v2788
        %2811 = vmatpush1.bf16.msra.mxu0 %v2787
        %2812 = vmatprep.subr.bf16.mxu0 %v2804
        %2813 = vmatpush1.bf16.msra.mxu0 %v2801
        %2814 = vmatprep.subr.bf16.mxu0 0
        %2815 = vmatpush1.bf16.msra.mxu0 0
        %2816 = vmatprep.subr.bf16.mxu0 0
        %2817 = vmatpush1.bf16.msra.mxu0 0
        %2818 = vmatprep.subr.bf16.mxu0 0
        %2819 = vmatpush1.bf16.msra.mxu0 0
        %2820 = vmatprep.subr.bf16.mxu0 0
        %2821 = vmatpush1.bf16.msra.mxu0 0
        %2822 = vmatprep.subr.bf16.mxu0 0
        %2823 = vmatpush1.bf16.msra.mxu0 0
        %2824 = vmatprep.subr.bf16.mxu0 0
        %2825 = vmatpush1.bf16.msra.mxu0 0
        %2826 = vmatprep.subr.bf16.mxu0 0
        %2827 = vmatpush1.bf16.msra.mxu0 0
        %2828 = vmatprep.subr.bf16.mxu0 0
        %2829 = vmatpush1.bf16.msra.mxu0 0
        %2830 = vmatprep.subr.bf16.mxu0 0
        %2831 = vmatpush1.bf16.msra.mxu0 0
        %2832 = vmatprep.subr.bf16.mxu0 0
        %2833 = vmatpush1.bf16.msra.mxu0 0
        %2834 = vmatprep.subr.bf16.mxu0 0
        %2835 = vmatpush1.bf16.msra.mxu0 0
        %2836 = vmatprep.subr.bf16.mxu0 0
        %2837 = vmatpush1.bf16.msra.mxu0 0
        %2838 = vmatprep.mubr.bf16.mxu0 0
        %2839 = vmatmul.mubr.bf16.gmra.mrb[0].mxu0 %v2798
        %v2840 = vpop.f32.mrb[0].mxu0
        %v2841 = vadd.f32 %v2794, %v2840
        %v2842 = vpop.f32.mrb[0].mxu0
        %v2843 = vadd.f32 %v2794, %v2842
        %v2844 = vpop.f32.mrb[0].mxu0
        %v2845 = vpop.f32.mrb[0].mxu0
        %2846 = vdwg.mxu0
        %v2847 = vmax.f32 %v2841, 0.0
        %v2848 = vmax.f32 %v2843, 0.0
        %v2849 = vmul.f32 %v2847, %v1296
        %v2850 = vmul.f32 %v2848, %v1297
        %v2851 = vadd.f32 %v2542, %v2849
        %v2852 = vadd.f32 %v2543, %v2850
        %v2853 = vld [vmem:[%s23] sm:$0xff]
        %v2854 = vld [vmem:[%s25] sm:$0xff]
        %2859 = vrot.lane.b32.xlu0 %v2063, 4
        %v2860 = vpop.permute.xlu0 %2859
        %2861 = vrot.lane.b32.xlu0 %v2064, 4
        %v2862 = vpop.permute.xlu0 %2861
        %2863 = vrot.lane.b32.xlu0 %v2065, 4
        %v2864 = vpop.permute.xlu0 %2863
        %2865 = vrot.lane.b32.xlu0 %v2066, 4
        %v2866 = vpop.permute.xlu0 %2865
        %vm2867 = vcmask 31744
        %v2868 = vsel %vm2867, %v2860, %v2862
        %v2869 = vsel %vm2867, %v2864, %v2866
        %v2874 = vsel %vm2867, 0.0, %v2860
        %v2875 = vsel %vm2867, 0.0, %v2864
        %v2876 = vsel %vm2487, %v2868, 0.0
        %v2877 = vsel %vm2487, %v2869, 0.0
        %2882 = vrot.lane.b32.xlu0 %v2874, 127
        %v2883 = vpop.permute.xlu0 %2882
        %2884 = vrot.lane.b32.xlu0 %v2876, 127
        %v2885 = vpop.permute.xlu0 %2884
        %2886 = vrot.lane.b32.xlu0 %v2875, 127
        %v2887 = vpop.permute.xlu0 %2886
        %2888 = vrot.lane.b32.xlu0 %v2877, 127
        %v2889 = vpop.permute.xlu0 %2888
        %v2890 = vsel %vm1406, %v2883, %v2885
        %v2891 = vsel %vm1406, %v2887, %v2889
        %2896 = vrot.lane.b32.xlu0 %v2874, 126
        %v2897 = vpop.permute.xlu0 %2896
        %2898 = vrot.lane.b32.xlu0 %v2876, 126
        %v2899 = vpop.permute.xlu0 %2898
        %2900 = vrot.lane.b32.xlu0 %v2875, 126
        %v2901 = vpop.permute.xlu0 %2900
        %2902 = vrot.lane.b32.xlu0 %v2877, 126
        %v2903 = vpop.permute.xlu0 %2902
        %v2904 = vsel %vm1435, %v2897, %v2899
        %v2905 = vsel %vm1435, %v2901, %v2903
        %2910 = vrot.lane.b32.xlu0 %v2874, 125
        %v2911 = vpop.permute.xlu0 %2910
        %2912 = vrot.lane.b32.xlu0 %v2876, 125
        %v2913 = vpop.permute.xlu0 %2912
        %2914 = vrot.lane.b32.xlu0 %v2875, 125
        %v2915 = vpop.permute.xlu0 %2914
        %2916 = vrot.lane.b32.xlu0 %v2877, 125
        %v2917 = vpop.permute.xlu0 %2916
        %v2918 = vsel %vm1464, %v2911, %v2913
        %v2919 = vsel %vm1464, %v2915, %v2917
        %2924 = vrot.lane.b32.xlu0 %v2874, 124
        %v2925 = vpop.permute.xlu0 %2924
        %2926 = vrot.lane.b32.xlu0 %v2876, 124
        %v2927 = vpop.permute.xlu0 %2926
        %2928 = vrot.lane.b32.xlu0 %v2875, 124
        %v2929 = vpop.permute.xlu0 %2928
        %2930 = vrot.lane.b32.xlu0 %v2877, 124
        %v2931 = vpop.permute.xlu0 %2930
        %v2932 = vsel %vm1493, %v2925, %v2927
        %v2933 = vsel %vm1493, %v2929, %v2931
        %2938 = vrot.lane.b32.xlu0 %v2874, 123
        %v2939 = vpop.permute.xlu0 %2938
        %2940 = vrot.lane.b32.xlu0 %v2876, 123
        %v2941 = vpop.permute.xlu0 %2940
        %2942 = vrot.lane.b32.xlu0 %v2875, 123
        %v2943 = vpop.permute.xlu0 %2942
        %2944 = vrot.lane.b32.xlu0 %v2877, 123
        %v2945 = vpop.permute.xlu0 %2944
        %v2946 = vsel %vm1522, %v2939, %v2941
        %v2947 = vsel %vm1522, %v2943, %v2945
        %2952 = vrot.lane.b32.xlu0 %v2874, 122
        %v2953 = vpop.permute.xlu0 %2952
        %2954 = vrot.lane.b32.xlu0 %v2876, 122
        %v2955 = vpop.permute.xlu0 %2954
        %2956 = vrot.lane.b32.xlu0 %v2875, 122
        %v2957 = vpop.permute.xlu0 %2956
        %2958 = vrot.lane.b32.xlu0 %v2877, 122
        %v2959 = vpop.permute.xlu0 %2958
        %v2960 = vsel %vm1551, %v2953, %v2955
        %v2961 = vsel %vm1551, %v2957, %v2959
        %2966 = vrot.lane.b32.xlu0 %v2874, 121
        %v2967 = vpop.permute.xlu0 %2966
        %2968 = vrot.lane.b32.xlu0 %v2876, 121
        %v2969 = vpop.permute.xlu0 %2968
        %2970 = vrot.lane.b32.xlu0 %v2875, 121
        %v2971 = vpop.permute.xlu0 %2970
        %2972 = vrot.lane.b32.xlu0 %v2877, 121
        %v2973 = vpop.permute.xlu0 %2972
        %v2974 = vsel %vm1580, %v2967, %v2969
        %v2975 = vsel %vm1580, %v2971, %v2973
        %2980 = vrot.lane.b32.xlu0 %v2874, 120
        %v2981 = vpop.permute.xlu0 %2980
        %2982 = vrot.lane.b32.xlu0 %v2876, 120
        %v2983 = vpop.permute.xlu0 %2982
        %2984 = vrot.lane.b32.xlu0 %v2875, 120
        %v2985 = vpop.permute.xlu0 %2984
        %2986 = vrot.lane.b32.xlu0 %v2877, 120
        %v2987 = vpop.permute.xlu0 %2986
        %v2988 = vsel %vm1609, %v2981, %v2983
        %v2989 = vsel %vm1609, %v2985, %v2987
        %v2994 = vpack.c.bf16 %v2875, %v2874
        %v2995 = vpack.c.bf16 %v2877, %v2876
        %v2996 = vpack.c.bf16 %v2891, %v2890
        %v2997 = vpack.c.bf16 %v2889, %v2885
        %v2998 = vpack.c.bf16 %v2905, %v2904
        %v2999 = vpack.c.bf16 %v2903, %v2899
        %v3000 = vpack.c.bf16 %v2919, %v2918
        %v3001 = vpack.c.bf16 %v2917, %v2913
        %v3002 = vpack.c.bf16 %v2933, %v2932
        %v3003 = vpack.c.bf16 %v2931, %v2927
        %v3004 = vpack.c.bf16 %v2947, %v2946
        %v3005 = vpack.c.bf16 %v2945, %v2941
        %v3006 = vpack.c.bf16 %v2961, %v2960
        %v3007 = vpack.c.bf16 %v2959, %v2955
        %v3008 = vpack.c.bf16 %v2975, %v2974
        %v3009 = vpack.c.bf16 %v2973, %v2969
        %v3010 = vpack.c.bf16 %v2989, %v2988
        %v3011 = vpack.c.bf16 %v2987, %v2983
        %3013 = vset.pattern.permute.xlu0 0
        %3014 = vperm.xlu0 %3013, %v2854
        %v3015 = vpop.permute.xlu0 %3014
        %v3018 = vunpack.c.l.b16 %v2853
        %v3019 = vunpack.c.h.b16 %v2853
        %v3020 = vpack.c.b16 %v3018, %v3018
        %v3021 = vpack.c.b16 %v3019, %v3019
        %vm3023 = vcmask 130048
        %v3025 = vsel %vm3023, %v3021, 0
        %3027 = vmatprep.subr.bf16.mxu0 %v2995
        %3028 = vmatpush1.bf16.msra.mxu0 %v2994
        %3029 = vmatprep.subr.bf16.mxu0 %v2997
        %3030 = vmatpush1.bf16.msra.mxu0 %v2996
        %3031 = vmatprep.subr.bf16.mxu0 %v2999
        %3032 = vmatpush1.bf16.msra.mxu0 %v2998
        %3033 = vmatprep.subr.bf16.mxu0 %v3001
        %3034 = vmatpush1.bf16.msra.mxu0 %v3000
        %3035 = vmatprep.subr.bf16.mxu0 %v3003
        %3036 = vmatpush1.bf16.msra.mxu0 %v3002
        %3037 = vmatprep.subr.bf16.mxu0 %v3005
        %3038 = vmatpush1.bf16.msra.mxu0 %v3004
        %3039 = vmatprep.subr.bf16.mxu0 %v3007
        %3040 = vmatpush1.bf16.msra.mxu0 %v3006
        %3041 = vmatprep.subr.bf16.mxu0 %v3009
        %3042 = vmatpush1.bf16.msra.mxu0 %v3008
        %3043 = vmatprep.subr.bf16.mxu0 %v3011
        %3044 = vmatpush1.bf16.msra.mxu0 %v3010
        %3045 = vmatprep.subr.bf16.mxu0 0
        %3046 = vmatpush1.bf16.msra.mxu0 0
        %3047 = vmatprep.subr.bf16.mxu0 0
        %3048 = vmatpush1.bf16.msra.mxu0 0
        %3049 = vmatprep.subr.bf16.mxu0 0
        %3050 = vmatpush1.bf16.msra.mxu0 0
        %3051 = vmatprep.subr.bf16.mxu0 0
        %3052 = vmatpush1.bf16.msra.mxu0 0
        %3053 = vmatprep.subr.bf16.mxu0 0
        %3054 = vmatpush1.bf16.msra.mxu0 0
        %3055 = vmatprep.subr.bf16.mxu0 0
        %3056 = vmatpush1.bf16.msra.mxu0 0
        %3057 = vmatprep.subr.bf16.mxu0 0
        %3058 = vmatpush1.bf16.msra.mxu0 0
        %3059 = vmatprep.mubr.bf16.mxu0 %v3025
        %3060 = vmatmul.mubr.bf16.gmra.mrb[0].mxu0 %v3020
        %v3061 = vpop.f32.mrb[0].mxu0
        %v3062 = vadd.f32 %v3015, %v3061
        %v3063 = vpop.f32.mrb[0].mxu0
        %v3064 = vadd.f32 %v3015, %v3063
        %v3065 = vpop.f32.mrb[0].mxu0
        %v3066 = vpop.f32.mrb[0].mxu0
        %3067 = vdwg.mxu0
        %v3068 = vmax.f32 %v3062, 0.0
        %v3069 = vmax.f32 %v3064, 0.0
        %v3070 = vmul.f32 %v3068, %v1296
        %v3071 = vmul.f32 %v3069, %v1297
        %v3072 = vld [vmem:[%s43] sm:$0x3]
        %v3073 = vld [vmem:[%s45] sm:$0xf]
        %3076 = vrot.lane.b32.xlu0 %v3070, 4
        %v3077 = vpop.permute.xlu0 %3076
        %3078 = vrot.lane.b32.xlu0 %v3071, 4
        %v3079 = vpop.permute.xlu0 %3078
        %v3080 = vsel %vm2867, %v3077, %v3079
        %v3083 = vsel %vm2867, 0.0, %v3077
        %v3084 = vsel %vm2487, %v3080, 0.0
        %3087 = vrot.lane.b32.xlu0 %v3083, 127
        %v3088 = vpop.permute.xlu0 %3087
        %3089 = vrot.lane.b32.xlu0 %v3084, 127
        %v3090 = vpop.permute.xlu0 %3089
        %v3091 = vsel %vm1406, %v3088, %v3090
        %3094 = vrot.lane.b32.xlu0 %v3083, 126
        %v3095 = vpop.permute.xlu0 %3094
        %3096 = vrot.lane.b32.xlu0 %v3084, 126
        %v3097 = vpop.permute.xlu0 %3096
        %v3098 = vsel %vm1435, %v3095, %v3097
        %3101 = vrot.lane.b32.xlu0 %v3083, 125
        %v3102 = vpop.permute.xlu0 %3101
        %3103 = vrot.lane.b32.xlu0 %v3084, 125
        %v3104 = vpop.permute.xlu0 %3103
        %v3105 = vsel %vm1464, %v3102, %v3104
        %3108 = vrot.lane.b32.xlu0 %v3083, 124
        %v3109 = vpop.permute.xlu0 %3108
        %3110 = vrot.lane.b32.xlu0 %v3084, 124
        %v3111 = vpop.permute.xlu0 %3110
        %v3112 = vsel %vm1493, %v3109, %v3111
        %3115 = vrot.lane.b32.xlu0 %v3083, 123
        %v3116 = vpop.permute.xlu0 %3115
        %3117 = vrot.lane.b32.xlu0 %v3084, 123
        %v3118 = vpop.permute.xlu0 %3117
        %v3119 = vsel %vm1522, %v3116, %v3118
        %3122 = vrot.lane.b32.xlu0 %v3083, 122
        %v3123 = vpop.permute.xlu0 %3122
        %3124 = vrot.lane.b32.xlu0 %v3084, 122
        %v3125 = vpop.permute.xlu0 %3124
        %v3126 = vsel %vm1551, %v3123, %v3125
        %3129 = vrot.lane.b32.xlu0 %v3083, 121
        %v3130 = vpop.permute.xlu0 %3129
        %3131 = vrot.lane.b32.xlu0 %v3084, 121
        %v3132 = vpop.permute.xlu0 %3131
        %v3133 = vsel %vm1580, %v3130, %v3132
        %3136 = vrot.lane.b32.xlu0 %v3083, 120
        %v3137 = vpop.permute.xlu0 %3136
        %3138 = vrot.lane.b32.xlu0 %v3084, 120
        %v3139 = vpop.permute.xlu0 %3138
        %v3140 = vsel %vm1609, %v3137, %v3139
        %v3143 = vpack.c.bf16 %v3091, %v3083
        %v3144 = vpack.c.bf16 %v3090, %v3084
        %v3145 = vpack.c.bf16 %v3105, %v3098
        %v3146 = vpack.c.bf16 %v3104, %v3097
        %v3147 = vpack.c.bf16 %v3119, %v3112
        %v3148 = vpack.c.bf16 %v3118, %v3111
        %v3149 = vpack.c.bf16 %v3133, %v3126
        %v3150 = vpack.c.bf16 %v3132, %v3125
        %v3151 = vpack.c.bf16 %v3140, %v3140
        %v3152 = vpack.c.bf16 %v3139, %v3139
        %3154 = vset.pattern.permute.xlu0 0
        %3155 = vperm.xlu0 %3154, %v3073
        %v3156 = vpop.permute.xlu0 %3155
        %vm3158 = vcmask 588800
        %v3160 = vsel %vm3158, %v3072, 0
        %v3163 = vsel %vm2231, %v3151, 0
        %v3166 = vsel %vm2231, %v3152, 0
        %3168 = vmatprep.subr.bf16.mxu0 %v3144
        %3169 = vmatpush1.bf16.msra.mxu0 %v3143
        %3170 = vmatprep.subr.bf16.mxu0 %v3146
        %3171 = vmatpush1.bf16.msra.mxu0 %v3145
        %3172 = vmatprep.subr.bf16.mxu0 %v3148
        %3173 = vmatpush1.bf16.msra.mxu0 %v3147
        %3174 = vmatprep.subr.bf16.mxu0 %v3150
        %3175 = vmatpush1.bf16.msra.mxu0 %v3149
        %3176 = vmatprep.subr.bf16.mxu0 %v3166
        %3177 = vmatpush1.bf16.msra.mxu0 %v3163
        %3178 = vmatprep.subr.bf16.mxu0 0
        %3179 = vmatpush1.bf16.msra.mxu0 0
        %3180 = vmatprep.subr.bf16.mxu0 0
        %3181 = vmatpush1.bf16.msra.mxu0 0
        %3182 = vmatprep.subr.bf16.mxu0 0
        %3183 = vmatpush1.bf16.msra.mxu0 0
        %3184 = vmatprep.subr.bf16.mxu0 0
        %3185 = vmatpush1.bf16.msra.mxu0 0
        %3186 = vmatprep.subr.bf16.mxu0 0
        %3187 = vmatpush1.bf16.msra.mxu0 0
        %3188 = vmatprep.subr.bf16.mxu0 0
        %3189 = vmatpush1.bf16.msra.mxu0 0
        %3190 = vmatprep.subr.bf16.mxu0 0
        %3191 = vmatpush1.bf16.msra.mxu0 0
        %3192 = vmatprep.subr.bf16.mxu0 0
        %3193 = vmatpush1.bf16.msra.mxu0 0
        %3194 = vmatprep.subr.bf16.mxu0 0
        %3195 = vmatpush1.bf16.msra.mxu0 0
        %3196 = vmatprep.subr.bf16.mxu0 0
        %3197 = vmatpush1.bf16.msra.mxu0 0
        %3198 = vmatprep.subr.bf16.mxu0 0
        %3199 = vmatpush1.bf16.msra.mxu0 0
        %3200 = vmatprep.mubr.bf16.mxu0 0
        %3201 = vmatmul.mubr.bf16.gmra.mrb[0].mxu0 %v3160
        %v3202 = vpop.f32.mrb[0].mxu0
        %v3203 = vadd.f32 %v3156, %v3202
        %v3204 = vpop.f32.mrb[0].mxu0
        %v3205 = vadd.f32 %v3156, %v3204
        %v3206 = vpop.f32.mrb[0].mxu0
        %v3207 = vpop.f32.mrb[0].mxu0
        %3208 = vdwg.mxu0
        %v3209 = vmax.f32 %v3203, 0.0
        %v3210 = vmax.f32 %v3205, 0.0
        %v3211 = vmul.f32 %v3209, %v1296
        %v3212 = vmul.f32 %v3210, %v1297
        %v3213 = vadd.f32 %v2851, %v3211
        %v3214 = vadd.f32 %v2852, %v3212
        %v3215 = vld [vmem:[%s27] sm:$0xff]
        %v3216 = vld [vmem:[%s29] sm:$0xff]
        %3221 = vrot.lane.b32.xlu0 %v2067, 5
        %v3222 = vpop.permute.xlu0 %3221
        %3223 = vrot.lane.b32.xlu0 %v2068, 5
        %v3224 = vpop.permute.xlu0 %3223
        %3225 = vrot.lane.b32.xlu0 %v2069, 5
        %v3226 = vpop.permute.xlu0 %3225
        %3227 = vrot.lane.b32.xlu0 %v2070, 5
        %v3228 = vpop.permute.xlu0 %3227
        %v3229 = vsel %vm1360, %v3222, %v3224
        %v3230 = vsel %vm1360, %v3226, %v3228
        %v3235 = vsel %vm1360, 0.0, %v3222
        %v3236 = vsel %vm1360, 0.0, %v3226
        %v3237 = vsel %vm1377, %v3229, 0.0
        %v3238 = vsel %vm1377, %v3230, 0.0
        %3243 = vrot.lane.b32.xlu0 %v3235, 127
        %v3244 = vpop.permute.xlu0 %3243
        %3245 = vrot.lane.b32.xlu0 %v3237, 127
        %v3246 = vpop.permute.xlu0 %3245
        %3247 = vrot.lane.b32.xlu0 %v3236, 127
        %v3248 = vpop.permute.xlu0 %3247
        %3249 = vrot.lane.b32.xlu0 %v3238, 127
        %v3250 = vpop.permute.xlu0 %3249
        %v3251 = vsel %vm1406, %v3244, %v3246
        %v3252 = vsel %vm1406, %v3248, %v3250
        %3257 = vrot.lane.b32.xlu0 %v3235, 126
        %v3258 = vpop.permute.xlu0 %3257
        %3259 = vrot.lane.b32.xlu0 %v3237, 126
        %v3260 = vpop.permute.xlu0 %3259
        %3261 = vrot.lane.b32.xlu0 %v3236, 126
        %v3262 = vpop.permute.xlu0 %3261
        %3263 = vrot.lane.b32.xlu0 %v3238, 126
        %v3264 = vpop.permute.xlu0 %3263
        %v3265 = vsel %vm1435, %v3258, %v3260
        %v3266 = vsel %vm1435, %v3262, %v3264
        %3271 = vrot.lane.b32.xlu0 %v3235, 125
        %v3272 = vpop.permute.xlu0 %3271
        %3273 = vrot.lane.b32.xlu0 %v3237, 125
        %v3274 = vpop.permute.xlu0 %3273
        %3275 = vrot.lane.b32.xlu0 %v3236, 125
        %v3276 = vpop.permute.xlu0 %3275
        %3277 = vrot.lane.b32.xlu0 %v3238, 125
        %v3278 = vpop.permute.xlu0 %3277
        %v3279 = vsel %vm1464, %v3272, %v3274
        %v3280 = vsel %vm1464, %v3276, %v3278
        %3285 = vrot.lane.b32.xlu0 %v3235, 124
        %v3286 = vpop.permute.xlu0 %3285
        %3287 = vrot.lane.b32.xlu0 %v3237, 124
        %v3288 = vpop.permute.xlu0 %3287
        %3289 = vrot.lane.b32.xlu0 %v3236, 124
        %v3290 = vpop.permute.xlu0 %3289
        %3291 = vrot.lane.b32.xlu0 %v3238, 124
        %v3292 = vpop.permute.xlu0 %3291
        %v3293 = vsel %vm1493, %v3286, %v3288
        %v3294 = vsel %vm1493, %v3290, %v3292
        %3299 = vrot.lane.b32.xlu0 %v3235, 123
        %v3300 = vpop.permute.xlu0 %3299
        %3301 = vrot.lane.b32.xlu0 %v3237, 123
        %v3302 = vpop.permute.xlu0 %3301
        %3303 = vrot.lane.b32.xlu0 %v3236, 123
        %v3304 = vpop.permute.xlu0 %3303
        %3305 = vrot.lane.b32.xlu0 %v3238, 123
        %v3306 = vpop.permute.xlu0 %3305
        %v3307 = vsel %vm1522, %v3300, %v3302
        %v3308 = vsel %vm1522, %v3304, %v3306
        %3313 = vrot.lane.b32.xlu0 %v3235, 122
        %v3314 = vpop.permute.xlu0 %3313
        %3315 = vrot.lane.b32.xlu0 %v3237, 122
        %v3316 = vpop.permute.xlu0 %3315
        %3317 = vrot.lane.b32.xlu0 %v3236, 122
        %v3318 = vpop.permute.xlu0 %3317
        %3319 = vrot.lane.b32.xlu0 %v3238, 122
        %v3320 = vpop.permute.xlu0 %3319
        %v3321 = vsel %vm1551, %v3314, %v3316
        %v3322 = vsel %vm1551, %v3318, %v3320
        %3327 = vrot.lane.b32.xlu0 %v3235, 121
        %v3328 = vpop.permute.xlu0 %3327
        %3329 = vrot.lane.b32.xlu0 %v3237, 121
        %v3330 = vpop.permute.xlu0 %3329
        %3331 = vrot.lane.b32.xlu0 %v3236, 121
        %v3332 = vpop.permute.xlu0 %3331
        %3333 = vrot.lane.b32.xlu0 %v3238, 121
        %v3334 = vpop.permute.xlu0 %3333
        %v3335 = vsel %vm1580, %v3328, %v3330
        %v3336 = vsel %vm1580, %v3332, %v3334
        %3341 = vrot.lane.b32.xlu0 %v3235, 120
        %v3342 = vpop.permute.xlu0 %3341
        %3343 = vrot.lane.b32.xlu0 %v3237, 120
        %v3344 = vpop.permute.xlu0 %3343
        %3345 = vrot.lane.b32.xlu0 %v3236, 120
        %v3346 = vpop.permute.xlu0 %3345
        %3347 = vrot.lane.b32.xlu0 %v3238, 120
        %v3348 = vpop.permute.xlu0 %3347
        %v3349 = vsel %vm1609, %v3342, %v3344
        %v3350 = vsel %vm1609, %v3346, %v3348
        %3355 = vrot.lane.b32.xlu0 %v3235, 119
        %v3356 = vpop.permute.xlu0 %3355
        %3357 = vrot.lane.b32.xlu0 %v3237, 119
        %v3358 = vpop.permute.xlu0 %3357
        %3359 = vrot.lane.b32.xlu0 %v3236, 119
        %v3360 = vpop.permute.xlu0 %3359
        %3361 = vrot.lane.b32.xlu0 %v3238, 119
        %v3362 = vpop.permute.xlu0 %3361
        %v3363 = vsel %vm1638, %v3356, %v3358
        %v3364 = vsel %vm1638, %v3360, %v3362
        %3369 = vrot.lane.b32.xlu0 %v3235, 118
        %v3370 = vpop.permute.xlu0 %3369
        %3371 = vrot.lane.b32.xlu0 %v3237, 118
        %v3372 = vpop.permute.xlu0 %3371
        %3373 = vrot.lane.b32.xlu0 %v3236, 118
        %v3374 = vpop.permute.xlu0 %3373
        %3375 = vrot.lane.b32.xlu0 %v3238, 118
        %v3376 = vpop.permute.xlu0 %3375
        %v3377 = vsel %vm1667, %v3370, %v3372
        %v3378 = vsel %vm1667, %v3374, %v3376
        %v3383 = vpack.c.bf16 %v3236, %v3235
        %v3384 = vpack.c.bf16 %v3238, %v3237
        %v3385 = vpack.c.bf16 %v3252, %v3251
        %v3386 = vpack.c.bf16 %v3250, %v3246
        %v3387 = vpack.c.bf16 %v3266, %v3265
        %v3388 = vpack.c.bf16 %v3264, %v3260
        %v3389 = vpack.c.bf16 %v3280, %v3279
        %v3390 = vpack.c.bf16 %v3278, %v3274
        %v3391 = vpack.c.bf16 %v3294, %v3293
        %v3392 = vpack.c.bf16 %v3292, %v3288
        %v3393 = vpack.c.bf16 %v3308, %v3307
        %v3394 = vpack.c.bf16 %v3306, %v3302
        %v3395 = vpack.c.bf16 %v3322, %v3321
        %v3396 = vpack.c.bf16 %v3320, %v3316
        %v3397 = vpack.c.bf16 %v3336, %v3335
        %v3398 = vpack.c.bf16 %v3334, %v3330
        %v3399 = vpack.c.bf16 %v3350, %v3349
        %v3400 = vpack.c.bf16 %v3348, %v3344
        %v3401 = vpack.c.bf16 %v3364, %v3363
        %v3402 = vpack.c.bf16 %v3362, %v3358
        %v3403 = vpack.c.bf16 %v3378, %v3377
        %v3404 = vpack.c.bf16 %v3376, %v3372
        %3406 = vset.pattern.permute.xlu0 0
        %3407 = vperm.xlu0 %3406, %v3216
        %v3408 = vpop.permute.xlu0 %3407
        %v3411 = vunpack.c.l.b16 %v3215
        %v3412 = vunpack.c.h.b16 %v3215
        %v3413 = vpack.c.b16 %v3411, %v3411
        %v3414 = vpack.c.b16 %v3412, %v3412
        %v3417 = vsel %vm2140, %v3414, 0
        %3419 = vmatprep.subr.bf16.mxu0 %v3384
        %3420 = vmatpush1.bf16.msra.mxu0 %v3383
        %3421 = vmatprep.subr.bf16.mxu0 %v3386
        %3422 = vmatpush1.bf16.msra.mxu0 %v3385
        %3423 = vmatprep.subr.bf16.mxu0 %v3388
        %3424 = vmatpush1.bf16.msra.mxu0 %v3387
        %3425 = vmatprep.subr.bf16.mxu0 %v3390
        %3426 = vmatpush1.bf16.msra.mxu0 %v3389
        %3427 = vmatprep.subr.bf16.mxu0 %v3392
        %3428 = vmatpush1.bf16.msra.mxu0 %v3391
        %3429 = vmatprep.subr.bf16.mxu0 %v3394
        %3430 = vmatpush1.bf16.msra.mxu0 %v3393
        %3431 = vmatprep.subr.bf16.mxu0 %v3396
        %3432 = vmatpush1.bf16.msra.mxu0 %v3395
        %3433 = vmatprep.subr.bf16.mxu0 %v3398
        %3434 = vmatpush1.bf16.msra.mxu0 %v3397
        %3435 = vmatprep.subr.bf16.mxu0 %v3400
        %3436 = vmatpush1.bf16.msra.mxu0 %v3399
        %3437 = vmatprep.subr.bf16.mxu0 %v3402
        %3438 = vmatpush1.bf16.msra.mxu0 %v3401
        %3439 = vmatprep.subr.bf16.mxu0 %v3404
        %3440 = vmatpush1.bf16.msra.mxu0 %v3403
        %3441 = vmatprep.subr.bf16.mxu0 0
        %3442 = vmatpush1.bf16.msra.mxu0 0
        %3443 = vmatprep.subr.bf16.mxu0 0
        %3444 = vmatpush1.bf16.msra.mxu0 0
        %3445 = vmatprep.subr.bf16.mxu0 0
        %3446 = vmatpush1.bf16.msra.mxu0 0
        %3447 = vmatprep.subr.bf16.mxu0 0
        %3448 = vmatpush1.bf16.msra.mxu0 0
        %3449 = vmatprep.subr.bf16.mxu0 0
        %3450 = vmatpush1.bf16.msra.mxu0 0
        %3451 = vmatprep.mubr.bf16.mxu0 %v3417
        %3452 = vmatmul.mubr.bf16.gmra.mrb[0].mxu0 %v3413
        %v3453 = vpop.f32.mrb[0].mxu0
        %v3454 = vadd.f32 %v3408, %v3453
        %v3455 = vpop.f32.mrb[0].mxu0
        %v3456 = vadd.f32 %v3408, %v3455
        %v3457 = vpop.f32.mrb[0].mxu0
        %v3458 = vpop.f32.mrb[0].mxu0
        %3459 = vdwg.mxu0
        %v3460 = vmax.f32 %v3454, 0.0
        %v3461 = vmax.f32 %v3456, 0.0
        %v3462 = vmul.f32 %v3460, %v1296
        %v3463 = vmul.f32 %v3461, %v1297
        %v3464 = vld [vmem:[%s47] sm:$0x3]
        %v3465 = vld [vmem:[%s49] sm:$0xf]
        %3468 = vrot.lane.b32.xlu0 %v3462, 5
        %v3469 = vpop.permute.xlu0 %3468
        %3470 = vrot.lane.b32.xlu0 %v3463, 5
        %v3471 = vpop.permute.xlu0 %3470
        %v3472 = vsel %vm1360, %v3469, %v3471
        %v3475 = vsel %vm1360, 0.0, %v3469
        %v3476 = vsel %vm1377, %v3472, 0.0
        %3479 = vrot.lane.b32.xlu0 %v3475, 127
        %v3480 = vpop.permute.xlu0 %3479
        %3481 = vrot.lane.b32.xlu0 %v3476, 127
        %v3482 = vpop.permute.xlu0 %3481
        %v3483 = vsel %vm1406, %v3480, %v3482
        %3486 = vrot.lane.b32.xlu0 %v3475, 126
        %v3487 = vpop.permute.xlu0 %3486
        %3488 = vrot.lane.b32.xlu0 %v3476, 126
        %v3489 = vpop.permute.xlu0 %3488
        %v3490 = vsel %vm1435, %v3487, %v3489
        %3493 = vrot.lane.b32.xlu0 %v3475, 125
        %v3494 = vpop.permute.xlu0 %3493
        %3495 = vrot.lane.b32.xlu0 %v3476, 125
        %v3496 = vpop.permute.xlu0 %3495
        %v3497 = vsel %vm1464, %v3494, %v3496
        %3500 = vrot.lane.b32.xlu0 %v3475, 124
        %v3501 = vpop.permute.xlu0 %3500
        %3502 = vrot.lane.b32.xlu0 %v3476, 124
        %v3503 = vpop.permute.xlu0 %3502
        %v3504 = vsel %vm1493, %v3501, %v3503
        %3507 = vrot.lane.b32.xlu0 %v3475, 123
        %v3508 = vpop.permute.xlu0 %3507
        %3509 = vrot.lane.b32.xlu0 %v3476, 123
        %v3510 = vpop.permute.xlu0 %3509
        %v3511 = vsel %vm1522, %v3508, %v3510
        %3514 = vrot.lane.b32.xlu0 %v3475, 122
        %v3515 = vpop.permute.xlu0 %3514
        %3516 = vrot.lane.b32.xlu0 %v3476, 122
        %v3517 = vpop.permute.xlu0 %3516
        %v3518 = vsel %vm1551, %v3515, %v3517
        %3521 = vrot.lane.b32.xlu0 %v3475, 121
        %v3522 = vpop.permute.xlu0 %3521
        %3523 = vrot.lane.b32.xlu0 %v3476, 121
        %v3524 = vpop.permute.xlu0 %3523
        %v3525 = vsel %vm1580, %v3522, %v3524
        %3528 = vrot.lane.b32.xlu0 %v3475, 120
        %v3529 = vpop.permute.xlu0 %3528
        %3530 = vrot.lane.b32.xlu0 %v3476, 120
        %v3531 = vpop.permute.xlu0 %3530
        %v3532 = vsel %vm1609, %v3529, %v3531
        %3535 = vrot.lane.b32.xlu0 %v3475, 119
        %v3536 = vpop.permute.xlu0 %3535
        %3537 = vrot.lane.b32.xlu0 %v3476, 119
        %v3538 = vpop.permute.xlu0 %3537
        %v3539 = vsel %vm1638, %v3536, %v3538
        %3542 = vrot.lane.b32.xlu0 %v3475, 118
        %v3543 = vpop.permute.xlu0 %3542
        %3544 = vrot.lane.b32.xlu0 %v3476, 118
        %v3545 = vpop.permute.xlu0 %3544
        %v3546 = vsel %vm1667, %v3543, %v3545
        %v3549 = vpack.c.bf16 %v3483, %v3475
        %v3550 = vpack.c.bf16 %v3482, %v3476
        %v3551 = vpack.c.bf16 %v3497, %v3490
        %v3552 = vpack.c.bf16 %v3496, %v3489
        %v3553 = vpack.c.bf16 %v3511, %v3504
        %v3554 = vpack.c.bf16 %v3510, %v3503
        %v3555 = vpack.c.bf16 %v3525, %v3518
        %v3556 = vpack.c.bf16 %v3524, %v3517
        %v3557 = vpack.c.bf16 %v3539, %v3532
        %v3558 = vpack.c.bf16 %v3538, %v3531
        %v3559 = vpack.c.bf16 %v3546, %v3546
        %v3560 = vpack.c.bf16 %v3545, %v3545
        %3562 = vset.pattern.permute.xlu0 0
        %3563 = vperm.xlu0 %3562, %v3465
        %v3564 = vpop.permute.xlu0 %3563
        %vm3566 = vcmask 719872
        %v3568 = vsel %vm3566, %v3464, 0
        %v3571 = vsel %vm2231, %v3559, 0
        %v3574 = vsel %vm2231, %v3560, 0
        %3576 = vmatprep.subr.bf16.mxu0 %v3550
        %3577 = vmatpush1.bf16.msra.mxu0 %v3549
        %3578 = vmatprep.subr.bf16.mxu0 %v3552
        %3579 = vmatpush1.bf16.msra.mxu0 %v3551
        %3580 = vmatprep.subr.bf16.mxu0 %v3554
        %3581 = vmatpush1.bf16.msra.mxu0 %v3553
        %3582 = vmatprep.subr.bf16.mxu0 %v3556
        %3583 = vmatpush1.bf16.msra.mxu0 %v3555
        %3584 = vmatprep.subr.bf16.mxu0 %v3558
        %3585 = vmatpush1.bf16.msra.mxu0 %v3557
        %3586 = vmatprep.subr.bf16.mxu0 %v3574
        %3587 = vmatpush1.bf16.msra.mxu0 %v3571
        %3588 = vmatprep.subr.bf16.mxu0 0
        %3589 = vmatpush1.bf16.msra.mxu0 0
        %3590 = vmatprep.subr.bf16.mxu0 0
        %3591 = vmatpush1.bf16.msra.mxu0 0
        %3592 = vmatprep.subr.bf16.mxu0 0
        %3593 = vmatpush1.bf16.msra.mxu0 0
        %3594 = vmatprep.subr.bf16.mxu0 0
        %3595 = vmatpush1.bf16.msra.mxu0 0
        %3596 = vmatprep.subr.bf16.mxu0 0
        %3597 = vmatpush1.bf16.msra.mxu0 0
        %3598 = vmatprep.subr.bf16.mxu0 0
        %3599 = vmatpush1.bf16.msra.mxu0 0
        %3600 = vmatprep.subr.bf16.mxu0 0
        %3601 = vmatpush1.bf16.msra.mxu0 0
        %3602 = vmatprep.subr.bf16.mxu0 0
        %3603 = vmatpush1.bf16.msra.mxu0 0
        %3604 = vmatprep.subr.bf16.mxu0 0
        %3605 = vmatpush1.bf16.msra.mxu0 0
        %3606 = vmatprep.subr.bf16.mxu0 0
        %3607 = vmatpush1.bf16.msra.mxu0 0
        %3608 = vmatprep.mubr.bf16.mxu0 0
        %3609 = vmatmul.mubr.bf16.gmra.mrb[0].mxu0 %v3568
        %v3610 = vpop.f32.mrb[0].mxu0
        %v3611 = vadd.f32 %v3564, %v3610
        %v3612 = vpop.f32.mrb[0].mxu0
        %v3613 = vadd.f32 %v3564, %v3612
        %v3614 = vpop.f32.mrb[0].mxu0
        %v3615 = vpop.f32.mrb[0].mxu0
        %3616 = vdwg.mxu0
        %v3617 = vmax.f32 %v3611, 0.0
        %v3618 = vmax.f32 %v3613, 0.0
        %v3619 = vmul.f32 %v3617, %v1296
        %v3620 = vmul.f32 %v3618, %v1297
        %v3621 = vadd.f32 %v3213, %v3619
        %v3622 = vadd.f32 %v3214, %v3620
        %v3623 = vld [vmem:[%s51] sm:$0x1]
        %v3624 = vld [vmem:[%s53] sm:$0x3]
        %3627 = vrot.lane.b32.xlu0 %v3621, 1
        %v3628 = vpop.permute.xlu0 %3627
        %3629 = vrot.lane.b32.xlu0 %v3622, 1
        %v3630 = vpop.permute.xlu0 %3629
        %v3631 = vsel %vm2085, %v3628, %v3630
        %v3634 = vsel %vm2085, 0.0, %v3628
        %v3635 = vsel %vm2094, %v3631, 0.0
        %v3638 = vrot.slane %v3634, 4
        %v3639 = vrot.slane %v3635, 4
        %3640 = vrot.lane.b32.xlu0 %v3638, 127
        %v3641 = vpop.permute.xlu0 %3640
        %3642 = vrot.lane.b32.xlu0 %v3639, 127
        %v3643 = vpop.permute.xlu0 %3642
        %v3644 = vsel %vm1406, %v3641, %v3643
        %3647 = vrot.lane.b32.xlu0 %v3634, 126
        %v3648 = vpop.permute.xlu0 %3647
        %3649 = vrot.lane.b32.xlu0 %v3635, 126
        %v3650 = vpop.permute.xlu0 %3649
        %v3651 = vsel %vm1435, %v3648, %v3650
        %v3654 = vsel %vm2231, %v3634, %v3644
        %v3655 = vsel %vm2231, %v3635, %v3643
        %v3656 = vpack.c.bf16 %v3651, %v3654
        %v3657 = vpack.c.bf16 %v3650, %v3655
        %3659 = vset.pattern.permute.xlu0 0
        %3660 = vperm.xlu0 %3659, %v3624
        %v3661 = vpop.permute.xlu0 %3660
        %vm3663 = vcmask 97280
        %v3665 = vsel %vm3663, %v3623, 0
        %vm3667 = vcmask 1045504
        %v3669 = vsel %vm3667, %v3656, 0
        %v3672 = vsel %vm3667, %v3657, 0
        %3674 = vmatprep.subr.bf16.mxu0 %v3672
        %3675 = vmatpush1.bf16.msra.mxu0 %v3669
        %3676 = vmatprep.subr.bf16.mxu0 0
        %3677 = vmatpush1.bf16.msra.mxu0 0
        %3678 = vmatprep.subr.bf16.mxu0 0
        %3679 = vmatpush1.bf16.msra.mxu0 0
        %3680 = vmatprep.subr.bf16.mxu0 0
        %3681 = vmatpush1.bf16.msra.mxu0 0
        %3682 = vmatprep.subr.bf16.mxu0 0
        %3683 = vmatpush1.bf16.msra.mxu0 0
        %3684 = vmatprep.subr.bf16.mxu0 0
        %3685 = vmatpush1.bf16.msra.mxu0 0
        %3686 = vmatprep.subr.bf16.mxu0 0
        %3687 = vmatpush1.bf16.msra.mxu0 0
        %3688 = vmatprep.subr.bf16.mxu0 0
        %3689 = vmatpush1.bf16.msra.mxu0 0
        %3690 = vmatprep.subr.bf16.mxu0 0
        %3691 = vmatpush1.bf16.msra.mxu0 0
        %3692 = vmatprep.subr.bf16.mxu0 0
        %3693 = vmatpush1.bf16.msra.mxu0 0
        %3694 = vmatprep.subr.bf16.mxu0 0
        %3695 = vmatpush1.bf16.msra.mxu0 0
        %3696 = vmatprep.subr.bf16.mxu0 0
        %3697 = vmatpush1.bf16.msra.mxu0 0
        %3698 = vmatprep.subr.bf16.mxu0 0
        %3699 = vmatpush1.bf16.msra.mxu0 0
        %3700 = vmatprep.subr.bf16.mxu0 0
        %3701 = vmatpush1.bf16.msra.mxu0 0
        %3702 = vmatprep.subr.bf16.mxu0 0
        %3703 = vmatpush1.bf16.msra.mxu0 0
        %3704 = vmatprep.subr.bf16.mxu0 0
        %3705 = vmatpush1.bf16.msra.mxu0 0
        %3706 = vmatprep.mubr.bf16.mxu0 0
        %3707 = vmatmul.mubr.bf16.gmra.mrb[0].mxu0 %v3665
        %v3708 = vpop.f32.mrb[0].mxu0
        %v3709 = vadd.f32 %v3661, %v3708
        %v3710 = vpop.f32.mrb[0].mxu0
        %v3711 = vadd.f32 %v3661, %v3710
        %v3712 = vpop.f32.mrb[0].mxu0
        %v3713 = vpop.f32.mrb[0].mxu0
        %3714 = vdwg.mxu0
        %v3715 = vmax.f32 %v3709, 0.0
        %v3716 = vmax.f32 %v3711, 0.0
        %v3717 = vmul.f32 %v3715, %v1296
        %v3718 = vmul.f32 %v3716, %v1297
        %v3719 = vld [vmem:[%s55] sm:$0x1]
        %v3720 = vld [vmem:[#allocation2] sm:$0x1]
        %3723 = vrot.lane.b32.xlu0 %v3717, 1
        %v3724 = vpop.permute.xlu0 %3723
        %3725 = vrot.lane.b32.xlu0 %v3718, 1
        %v3726 = vpop.permute.xlu0 %3725
        %v3727 = vsel %vm2085, %v3724, %v3726
        %v3730 = vsel %vm2085, 0.0, %v3724
        %v3731 = vsel %vm2094, %v3727, 0.0
        %v3734 = vrot.slane %v3730, 6
        %v3735 = vrot.slane %v3731, 6
        %3736 = vrot.lane.b32.xlu0 %v3734, 127
        %v3737 = vpop.permute.xlu0 %3736
        %3738 = vrot.lane.b32.xlu0 %v3735, 127
        %v3739 = vpop.permute.xlu0 %3738
        %v3740 = vsel %vm1406, %v3737, %v3739
        %v3743 = vrot.slane %v3730, 4
        %v3744 = vrot.slane %v3731, 4
        %3745 = vrot.lane.b32.xlu0 %v3743, 126
        %v3746 = vpop.permute.xlu0 %3745
        %3747 = vrot.lane.b32.xlu0 %v3744, 126
        %v3748 = vpop.permute.xlu0 %3747
        %v3749 = vsel %vm1435, %v3746, %v3748
        %v3752 = vsel %vm1130, %v3730, %v3740
        %v3753 = vsel %vm1130, %v3731, %v3739
        %v3754 = vsel %vm2231, %v3752, %v3749
        %v3755 = vsel %vm2231, %v3753, %v3748
        %v3756 = vpack.c.bf16 %v3754, %v3754
        %v3757 = vpack.c.bf16 %v3755, %v3755
        %3759 = vset.pattern.permute.xlu0 0
        %3760 = vperm.xlu0 %3759, %v3720
        %v3761 = vpop.permute.xlu0 %3760
        %v3763 = vlaneseq
        %v3764 = vshrl.u32 %v3763, 7
        %v3765 = vsub.s32 0, %v3764
        %v3766 = vrot.slane %v3761, %v3765
        %vm3767 = vcmask 48128
        %v3769 = vsel %vm3767, %v3719, 0
        %vm3771 = vcmask 1042432
        %v3773 = vsel %vm3771, %v3756, 0
        %v3776 = vsel %vm3771, %v3757, 0
        %3778 = vmatprep.subr.bf16.mxu0 %v3776
        %3779 = vmatpush1.bf16.msra.mxu0 %v3773
        %3780 = vmatprep.subr.bf16.mxu0 0
        %3781 = vmatpush1.bf16.msra.mxu0 0
        %3782 = vmatprep.subr.bf16.mxu0 0
        %3783 = vmatpush1.bf16.msra.mxu0 0
        %3784 = vmatprep.subr.bf16.mxu0 0
        %3785 = vmatpush1.bf16.msra.mxu0 0
        %3786 = vmatprep.subr.bf16.mxu0 0
        %3787 = vmatpush1.bf16.msra.mxu0 0
        %3788 = vmatprep.subr.bf16.mxu0 0
        %3789 = vmatpush1.bf16.msra.mxu0 0
        %3790 = vmatprep.subr.bf16.mxu0 0
        %3791 = vmatpush1.bf16.msra.mxu0 0
        %3792 = vmatprep.subr.bf16.mxu0 0
        %3793 = vmatpush1.bf16.msra.mxu0 0
        %3794 = vmatprep.subr.bf16.mxu0 0
        %3795 = vmatpush1.bf16.msra.mxu0 0
        %3796 = vmatprep.subr.bf16.mxu0 0
        %3797 = vmatpush1.bf16.msra.mxu0 0
        %3798 = vmatprep.subr.bf16.mxu0 0
        %3799 = vmatpush1.bf16.msra.mxu0 0
        %3800 = vmatprep.subr.bf16.mxu0 0
        %3801 = vmatpush1.bf16.msra.mxu0 0
        %3802 = vmatprep.subr.bf16.mxu0 0
        %3803 = vmatpush1.bf16.msra.mxu0 0
        %3804 = vmatprep.subr.bf16.mxu0 0
        %3805 = vmatpush1.bf16.msra.mxu0 0
        %3806 = vmatprep.subr.bf16.mxu0 0
        %3807 = vmatpush1.bf16.msra.mxu0 0
        %3808 = vmatprep.subr.bf16.mxu0 0
        %3809 = vmatpush1.bf16.msra.mxu0 0
        %3810 = vmatprep.mubr.bf16.mxu0 0
        %3811 = vmatmul.mubr.bf16.gmra.mrb[0].mxu0 %v3769
        %v3812 = vpop.f32.mrb[0].mxu0
        %v3813 = vadd.f32 %v3766, %v3812
        %v3814 = vpop.f32.mrb[0].mxu0
        %v3815 = vadd.f32 %v3766, %v3814
        %v3816 = vpop.f32.mrb[0].mxu0
        %v3817 = vpop.f32.mrb[0].mxu0
        %3818 = vdwg.mxu0
        %v3819 = vmax.f32 %v3813, 0.0
        %v3820 = vmax.f32 %v3815, 0.0
        %v3821 = vmul.f32 %v3819, %v1296
        %v3822 = vmul.f32 %v3820, %v1297
        %v3823 = vld [vmem:[%s59] sm:$0x1]
        %v3824 = vld [vmem:[#allocation3] sm:$0x1]
        %3827 = vrot.lane.b32.xlu0 %v3821, 1
        %v3828 = vpop.permute.xlu0 %3827
        %3829 = vrot.lane.b32.xlu0 %v3822, 1
        %v3830 = vpop.permute.xlu0 %3829
        %v3831 = vsel %vm2085, %v3828, %v3830
        %v3834 = vsel %vm2085, 0.0, %v3828
        %v3835 = vsel %vm2094, %v3831, 0.0
        %v3838 = vrot.slane %v3834, 7
        %v3839 = vrot.slane %v3835, 7
        %3840 = vrot.lane.b32.xlu0 %v3838, 127
        %v3841 = vpop.permute.xlu0 %3840
        %3842 = vrot.lane.b32.xlu0 %v3839, 127
        %v3843 = vpop.permute.xlu0 %3842
        %v3844 = vsel %vm1406, %v3841, %v3843
        %v3847 = vrot.slane %v3834, 6
        %v3848 = vrot.slane %v3835, 6
        %3849 = vrot.lane.b32.xlu0 %v3847, 126
        %v3850 = vpop.permute.xlu0 %3849
        %3851 = vrot.lane.b32.xlu0 %v3848, 126
        %v3852 = vpop.permute.xlu0 %3851
        %v3853 = vsel %vm1435, %v3850, %v3852
        %vm3856 = vcmask 1040384
        %v3857 = vsel %vm3856, %v3834, %v3844
        %v3858 = vsel %vm3856, %v3835, %v3843
        %v3859 = vsel %vm1130, %v3857, %v3853
        %v3860 = vsel %vm1130, %v3858, %v3852
        %v3861 = vpack.c.bf16 %v3859, %v3859
        %v3862 = vpack.c.bf16 %v3860, %v3860
        %3864 = vset.pattern.permute.xlu0 0
        %3865 = vperm.xlu0 %3864, %v3824
        %v3866 = vpop.permute.xlu0 %3865
        %v3868 = vlaneseq
        %v3869 = vshrl.u32 %v3868, 7
        %v3870 = vsub.s32 0, %v3869
        %v3871 = vrot.slane %v3866, %v3870
        %v3873 = vsel %vm2558, %v3823, 0
        %v3875 = vsel %vm3856, 4294967295, 65535
        %v3876 = vsel %vm1130, %v3875, 0
        %v3878 = vand.u32 %v3861, %v3876
        %v3881 = vand.u32 %v3862, %v3876
        %3883 = vmatprep.subr.bf16.mxu0 %v3881
        %3884 = vmatpush1.bf16.msra.mxu0 %v3878
        %3885 = vmatprep.subr.bf16.mxu0 0
        %3886 = vmatpush1.bf16.msra.mxu0 0
        %3887 = vmatprep.subr.bf16.mxu0 0
        %3888 = vmatpush1.bf16.msra.mxu0 0
        %3889 = vmatprep.subr.bf16.mxu0 0
        %3890 = vmatpush1.bf16.msra.mxu0 0
        %3891 = vmatprep.subr.bf16.mxu0 0
        %3892 = vmatpush1.bf16.msra.mxu0 0
        %3893 = vmatprep.subr.bf16.mxu0 0
        %3894 = vmatpush1.bf16.msra.mxu0 0
        %3895 = vmatprep.subr.bf16.mxu0 0
        %3896 = vmatpush1.bf16.msra.mxu0 0
        %3897 = vmatprep.subr.bf16.mxu0 0
        %3898 = vmatpush1.bf16.msra.mxu0 0
        %3899 = vmatprep.subr.bf16.mxu0 0
        %3900 = vmatpush1.bf16.msra.mxu0 0
        %3901 = vmatprep.subr.bf16.mxu0 0
        %3902 = vmatpush1.bf16.msra.mxu0 0
        %3903 = vmatprep.subr.bf16.mxu0 0
        %3904 = vmatpush1.bf16.msra.mxu0 0
        %3905 = vmatprep.subr.bf16.mxu0 0
        %3906 = vmatpush1.bf16.msra.mxu0 0
        %3907 = vmatprep.subr.bf16.mxu0 0
        %3908 = vmatpush1.bf16.msra.mxu0 0
        %3909 = vmatprep.subr.bf16.mxu0 0
        %3910 = vmatpush1.bf16.msra.mxu0 0
        %3911 = vmatprep.subr.bf16.mxu0 0
        %3912 = vmatpush1.bf16.msra.mxu0 0
        %3913 = vmatprep.subr.bf16.mxu0 0
        %3914 = vmatpush1.bf16.msra.mxu0 0
        %3915 = vmatprep.mubr.bf16.mxu0 0
        %3916 = vmatmul.mubr.bf16.gmra.mrb[0].mxu0 %v3873
        %v3917 = vpop.f32.mrb[0].mxu0
        %v3918 = vadd.f32 %v3871, %v3917
        %v3919 = vpop.f32.mrb[0].mxu0
        %v3920 = vadd.f32 %v3871, %v3919
        %v3921 = vpop.f32.mrb[0].mxu0
        %v3922 = vpop.f32.mrb[0].mxu0
        %3923 = vdwg.mxu0
        %v3924 = vxor.u32 %v3918, 2147483648
        %v3925 = vxor.u32 %v3920, 2147483648
        %v3926 = vmul.f32 %v3924, 1.442695
        %v3927 = vpow.pop %v3926
        %v3928 = vmul.f32 %v3925, 1.442695
        %v3929 = vpow.pop %v3928
        %v3930 = vadd.f32 %v3927, 1.0
        %v3931 = vadd.f32 %v3929, 1.0
        %v3932 = vrcp.pop %v3930
        %v3933 = vmul.f32 1.0, %v3932
        %v3934 = vrcp.pop %v3931
        %v3935 = vmul.f32 1.0, %v3934
        %3938 = vrot.lane.b32.xlu0 %v3933, 110
        %v3939 = vpop.permute.xlu0 %3938
        %3940 = vrot.lane.b32.xlu0 %v3935, 110
        %v3941 = vpop.permute.xlu0 %3940
        %vm3942 = vcmask 900096
        %v3943 = vsel %vm3942, %v3939, %v3941
        %3945 = vst [vmem:[%s1061] sm:$0x1] %v3943
        %s3946 = sand.u32 %s787, 1
        %s3947 = scalar_lea.sflag [#allocation5], %s3946
        %s3948 = sand.u32 %s787, 1
        %s3949 = scalar_lea.vmem [#allocation4], %s3948
        // Predicated region
        $region145: #{tpu_custom_call.1} parent=143 // pred_check
          %p3950 = pneg %p797
        $region146: #{tpu_custom_call.1} parent=143 // pred_check_branch
          %3952 = sbr.rel (%p3950) target = $region148
        $region147: #{tpu_custom_call.1} parent=143 // pred_region
          %s3954 = ssub.s32 16, 16
          %3955 = vsyncadd %s3947, %s3954
          %s3956 = smul.addr %s85, 2
          %s3957 = sadd.s32 %s86, %s3956
          %s3958 = smul.addr %s3957, 16
          %s3959 = scalar_lea.hbm %s63, %s3958
          %s3961 = sshll.u32 %s3949, 4
          %s3962 = int_to_ptr.vmem [resolvable:$true] %s3961
          %3964 = dma.vmem_to_hbm [thread:$0]  %s3962, 16, %s3959, %s3947
        $region148: #{tpu_custom_call.1} parent=143 // pred_fallthru
          _
      $region144: #{tpu_custom_call.1} parent=5 // pred_fallthru
        _
      %p3965 = scmp.le.s32.totalorder 2, %s76
      // Predicated region
      $region149: #{tpu_custom_call.1} parent=5 // pred_check
        %p3966 = pneg %p3965
      $region150: #{tpu_custom_call.1} parent=5 // pred_check_branch
        %3968 = sbr.rel (%p3966) target = $region152
      $region151: #{tpu_custom_call.1} parent=5 // pred_region
        %s3969 = ssub.s32 %s76, 2
        // Predicated region
        $region153: #{tpu_custom_call.1} parent=151 // pred_check
          %p3970 = pneg %p803
        $region154: #{tpu_custom_call.1} parent=151 // pred_check_branch
          %3972 = sbr.rel (%p3970) target = $region156
        $region155: #{tpu_custom_call.1} parent=151 // pred_region
          %s3973 = sand.u32 %s788, 1
          %s3974 = scalar_lea.sflag [#allocation5], %s3973
          %s3975 = sand.u32 %s788, 1
          %s3976 = scalar_lea.vmem [#allocation4], %s3975
          %3977 = dma.done %s3974, 16
        $region156: #{tpu_custom_call.1} parent=151 // pred_fallthru
          _
      $region152: #{tpu_custom_call.1} parent=5 // pred_fallthru
        _
    $region6: #{tpu_custom_call.1} parent=1 // loop_footer
      %s80 = sadd.s32 1, %s76
    $region7: #{tpu_custom_call.1} parent=1 // loop_footer_branch
      %75 = sbr.rel target = $region3
    $region8: #{tpu_custom_call.1} parent=1 // loop_exit
      _
    %3978 = vsyncpa [#allocation5], 1
    %s3979 = scalar_lea.sflag [#allocation5], 1
    %3980 = vsyncpa %s3979, 1

</llo_original>
